<compile_context>
chip_gen: v7x
topology: tpu7x:2x2x1
jax: 0.10.0
libtpu: 0.0.40
codegen_flags: <defaults>
</compile_context>

<pallas_src>
import functools

import jax
import jax.numpy as jnp
from jax.experimental import pallas as pl
from jax.experimental.pallas import tpu as pltpu

LEVEL = 3  # module default


def _pair_sums(a, b):
    """(3, R, C), (3, R, C) -> (3, 3) with S[j, i] = sum_rc a[j] * b[i].

    VPU multiply + full reduce per channel pair.  Avoids the pathological
    (3, K) x (K, 3) MXU contraction and any reshape/relayout of the 2-D tile.
    """
    rows = []
    for j in range(3):
        cols = [jnp.sum(a[j] * b[i], axis=(0, 1), keepdims=True)  # (1, 1)
                for i in range(3)]
        rows.append(jnp.concatenate(cols, axis=1))                # (1, 3)
    return jnp.concatenate(rows, axis=0)                          # (3, 3)


def _squashed_sq(g):
    # sigmoid(g) * 2 - 1 == tanh(g / 2): a single EUP transcendental.
    s = jnp.tanh(0.5 * g)
    return (s * s).astype(jnp.float32)   # accumulate pair sums in f32


def _exclusion_level_kernel(*refs, tile_rows, compute_dtype, has_halo):
    """One (batch, row-tile) grid step.

    x*_ref   : (1, 3, TH, W) image row tile
    x*h_ref  : (1, 3, HALO, W) first rows of the *next* row tile (only when
               the level is row-tiled)
    sum*_ref : (1, 1, 3, 3) partial sums S[j,i] = sum grad1_s[j]^2*grad2_s[i]^2
    """
    if has_halo:
        x1_ref, x2_ref, x1h_ref, x2h_ref, sumx_ref, sumy_ref = refs
    else:
        x1_ref, x2_ref, sumx_ref, sumy_ref = refs

    x1 = x1_ref[0].astype(compute_dtype)     # (3, TH, W)
    x2 = x2_ref[0].astype(compute_dtype)

    # y-direction gradients (along W / lane axis): fully local to the tile.
    gy1 = _squashed_sq(x1[:, :, 1:] - x1[:, :, :-1])
    gy2 = _squashed_sq(x2[:, :, 1:] - x2[:, :, :-1])
    sumy_ref[0, 0] = _pair_sums(gy1, gy2)

    # x-direction gradients (along H / sublane axis): interior rows of tile.
    gx1 = _squashed_sq(x1[:, 1:, :] - x1[:, :-1, :])
    gx2 = _squashed_sq(x2[:, 1:, :] - x2[:, :-1, :])
    sx = _pair_sums(gx1, gx2)

    if has_halo:
        # Boundary gradx row between this tile and the next.  On the last
        # tile the halo block index is clamped, so mask the contribution.
        t = pl.program_id(1)
        last = pl.num_programs(1) - 1
        h1 = x1h_ref[0, :, 0:1, :].astype(compute_dtype)   # (3, 1, W)
        h2 = x2h_ref[0, :, 0:1, :].astype(compute_dtype)
        bx1 = _squashed_sq(h1 - x1[:, tile_rows - 1:tile_rows, :])
        bx2 = _squashed_sq(h2 - x2[:, tile_rows - 1:tile_rows, :])
        bvalid = (t < last).astype(jnp.float32)
        sx = sx + bvalid * _pair_sums(bx1, bx2)

    sumx_ref[0, 0] = sx


def _vmem_capacity_bytes():
    try:
        return int(pltpu.get_tpu_info().vmem_capacity_bytes)
    except Exception:
        return 64 << 20   # conservative default (v7x per-TensorCore VMEM)


def _choose_tile_rows(h, w, itemsize, budget_bytes, max_tile_rows):
    """Largest row tile (aligned multiple dividing h, or h itself) whose
    per-step footprint fits the budget."""
    row_align = 8 if itemsize >= 4 else 16

    def footprint(th):
        blk = 3 * th * w
        # 2 images x 2 pipeline buffers of input tiles + ~8 tile-sized
        # gradient / squared-gradient temporaries (f32).
        return 2 * 2 * blk * itemsize + 8 * blk * 4

    limit = h if max_tile_rows is None else min(h, max_tile_rows)
    cands = [h] if h <= limit else []
    if h % row_align == 0:
        cands += [th for th in range(row_align, min(h, limit) + 1, row_align)
                  if h % th == 0]
    cands = sorted(set(cands), reverse=True)
    for th in cands:
        if footprint(th) <= budget_bytes:
            return th, footprint(th)
    th = cands[-1] if cands else h
    return th, footprint(th)


def _exclusion_level(img1, img2, *, compute_dtype, max_tile_rows):
    """Returns the 9 x-direction and 9 y-direction means for one level."""
    n, c, h, w = img1.shape
    assert c == 3, "ExclusionLoss._all_comb hard-codes 3 channels"

    if img1.dtype != compute_dtype:
        img1 = img1.astype(compute_dtype)   # halves HBM traffic on bf16 path
        img2 = img2.astype(compute_dtype)
    itemsize = jnp.dtype(compute_dtype).itemsize
    row_align = 8 if itemsize >= 4 else 16

    vmem_cap = _vmem_capacity_bytes()
    th, footprint = _choose_tile_rows(h, w, itemsize, vmem_cap // 4,
                                      max_tile_rows)
    nrt = h // th
    has_halo = nrt > 1

    img_spec = pl.BlockSpec((1, 3, th, w), lambda b, t: (b, 0, t, 0))
    in_specs = [img_spec, img_spec]
    operands = [img1, img2]
    if has_halo:
        hb = th // row_align                 # row-aligned blocks per tile
        last_blk = h // row_align - 1
        halo_spec = pl.BlockSpec(
            (1, 3, row_align, w),
            lambda b, t: (b, 0, jnp.minimum((t + 1) * hb, last_blk), 0))
        in_specs += [halo_spec, halo_spec]
        operands += [img1, img2]

    out_spec = pl.BlockSpec((1, 1, 3, 3), lambda b, t: (b, t, 0, 0))
    out_shape = jax.ShapeDtypeStruct((n, nrt, 3, 3), jnp.float32)

    elems = n * 3 * h * w
    cost = pl.CostEstimate(
        flops=int(60 * elems),
        transcendentals=int(4 * elems),
        bytes_accessed=int(2 * elems * itemsize + 2 * n * nrt * 9 * 4),
    )
    # Derive the VMEM limit from the real tile footprint; never request the
    # whole physical VMEM (64 MiB == the entire v7x TensorCore VMEM).
    vmem_limit = int(min(max(2 * footprint, 32 << 20), int(0.8 * vmem_cap)))

    sumx, sumy = pl.pallas_call(
        functools.partial(_exclusion_level_kernel, tile_rows=th,
                          compute_dtype=compute_dtype, has_halo=has_halo),
        grid=(n, nrt),
        in_specs=in_specs,
        out_specs=(out_spec, out_spec),
        out_shape=(out_shape, out_shape),
        compiler_params=pltpu.CompilerParams(
            dimension_semantics=("parallel", "parallel"),
            vmem_limit_bytes=vmem_limit,
        ),
        cost_estimate=cost,
    )(*operands)

    # Per-(batch, row-tile) partial sums -> global means.  PyTorch mean
    # denominators: gradx over (N, H-1, W), grady over (N, H, W-1).
    mean_x = jnp.sum(sumx, axis=(0, 1)) / float(n * (h - 1) * w)
    mean_y = jnp.sum(sumy, axis=(0, 1)) / float(n * h * (w - 1))
    # S[j, i] -> _all_comb order (i outer, j inner); cosmetic, the final loss
    # sums all 9 entries anyway.
    return mean_x.T.reshape(-1), mean_y.T.reshape(-1)


def _avg_pool2(x):
    # torch.nn.AvgPool2d(2, stride=2) on NCHW (drops a trailing odd row/col).
    # TODO(synk): fuse into the level kernel as a second output (v5e HBM win).
    n, c, h, w = x.shape
    x = x[:, :, : (h // 2) * 2, : (w // 2) * 2]
    return x.reshape(n, c, h // 2, 2, w // 2, 2).mean(axis=(3, 5))


def exclusion_loss(img1, img2, level=LEVEL, *, compute_dtype=jnp.float32,
                   max_tile_rows=None):
    mean_x, mean_y = [], []
    for _ in range(level):
        mx, my = _exclusion_level(img1, img2, compute_dtype=compute_dtype,
                                  max_tile_rows=max_tile_rows)
        mean_x.append(mx)
        mean_y.append(my)
        img1 = _avg_pool2(img1)
        img2 = _avg_pool2(img2)
    gradx_loss = jnp.concatenate(mean_x) ** 0.25
    grady_loss = jnp.concatenate(mean_y) ** 0.25
    loss_gradxy = (jnp.sum(gradx_loss) / (level * 9)
                   + jnp.sum(grady_loss) / (level * 9))
    return loss_gradxy / 2.0


def _exclusion_loss_ref(img1, img2, level=LEVEL):
    """Pure-JAX mirror of the PyTorch forward, for verification."""
    gradx_terms, grady_terms = [], []
    for _ in range(level):
        gx1 = img1[:, :, 1:, :] - img1[:, :, :-1, :]
        gy1 = img1[:, :, :, 1:] - img1[:, :, :, :-1]
        gx2 = img2[:, :, 1:, :] - img2[:, :, :-1, :]
        gy2 = img2[:, :, :, 1:] - img2[:, :, :, :-1]
        gx1s = jax.nn.sigmoid(gx1) * 2 - 1
        gy1s = jax.nn.sigmoid(gy1) * 2 - 1
        gx2s = jax.nn.sigmoid(gx2) * 2 - 1
        gy2s = jax.nn.sigmoid(gy2) * 2 - 1
        for i in range(3):
            for j in range(3):
                gradx_terms.append(jnp.mean(gx1s[:, j] ** 2 * gx2s[:, i] ** 2) ** 0.25)
                grady_terms.append(jnp.mean(gy1s[:, j] ** 2 * gy2s[:, i] ** 2) ** 0.25)
        img1 = _avg_pool2(img1)
        img2 = _avg_pool2(img2)
    return (sum(gradx_terms) / (level * 9) + sum(grady_terms) / (level * 9)) / 2.0


if __name__ == "__main__":
    key = jax.random.PRNGKey(0)
    k1, k2, k3, k4 = jax.random.split(key, 4)
    # The module's _all_comb hard-codes 3 channels -> inputs are (N, 3, H, W).
    img1 = jax.random.uniform(k1, (2, 3, 16, 16), dtype=jnp.float32)
    img2 = jax.random.uniform(k2, (2, 3, 16, 16), dtype=jnp.float32)

    # 1) f32, default tiling (full image per grid step at this size).
    loss = jax.block_until_ready(jax.jit(exclusion_loss)(img1, img2))
    ref = _exclusion_loss_ref(img1, img2)
    assert jnp.allclose(loss, ref, rtol=1e-3, atol=1e-5), (float(loss), float(ref))

    # 2) f32 with forced row tiling: exercises the multi-tile halo path.
    img1b = jax.random.uniform(k3, (2, 3, 32, 32), dtype=jnp.float32)
    img2b = jax.random.uniform(k4, (2, 3, 32, 32), dtype=jnp.float32)
    loss_t = jax.block_until_ready(
        jax.jit(functools.partial(exclusion_loss, max_tile_rows=8))(img1b, img2b))
    ref_t = _exclusion_loss_ref(img1b, img2b)
    assert jnp.allclose(loss_t, ref_t, rtol=1e-3, atol=1e-5), (float(loss_t), float(ref_t))

    # 3) bf16 elementwise path (v6e/v7x optimization; f32 pair-sum accumulation).
    loss_bf16 = jax.block_until_ready(
        jax.jit(functools.partial(exclusion_loss, compute_dtype=jnp.bfloat16))(img1, img2))
    assert jnp.allclose(loss_bf16, ref, rtol=3e-2, atol=1e-3), (float(loss_bf16), float(ref))

    print("KERNEL_OK")
</pallas_src>

<mosaic_0001>
module attributes {stable_mosaic.version = 11 : i64} {
  func.func @_exclusion_level_kernel(%arg0: i32, %arg1: i32, %arg2: memref<1x3x4x4xf32, #tpu.memory_space<vmem>>, %arg3: memref<1x3x4x4xf32, #tpu.memory_space<vmem>>, %arg4: memref<1x1x3x3xf32, #tpu.memory_space<vmem>>, %arg5: memref<1x1x3x3xf32, #tpu.memory_space<vmem>>) attributes {dimension_semantics = [#tpu.dimension_semantics<parallel>, #tpu.dimension_semantics<parallel>], iteration_bounds = array<i64: 2, 1>, scalar_prefetch = 0 : i64, scratch_operands = 0 : i64, tpu.core_type = #tpu.core_type<tc>, window_params = [{transform_indices = @transform_0, window_bounds = array<i64: 1, 3, 4, 4>}, {transform_indices = @transform_1, window_bounds = array<i64: 1, 3, 4, 4>}, {transform_indices = @transform_2, window_bounds = array<i64: 1, 1, 3, 3>}, {transform_indices = @transform_3, window_bounds = array<i64: 1, 1, 3, 3>}]} {
    %c0 = arith.constant 0 : index
    %c0_0 = arith.constant 0 : index
    %c0_1 = arith.constant 0 : index
    %c0_2 = arith.constant 0 : index
    %0 = vector.load %arg2[%c0, %c0_0, %c0_1, %c0_2] : memref<1x3x4x4xf32, #tpu.memory_space<vmem>>, vector<1x3x4x4xf32>
    %1 = vector.shape_cast %0 : vector<1x3x4x4xf32> to vector<3x4x4xf32>
    %c0_3 = arith.constant 0 : index
    %c0_4 = arith.constant 0 : index
    %c0_5 = arith.constant 0 : index
    %c0_6 = arith.constant 0 : index
    %2 = vector.load %arg3[%c0_3, %c0_4, %c0_5, %c0_6] : memref<1x3x4x4xf32, #tpu.memory_space<vmem>>, vector<1x3x4x4xf32>
    %3 = vector.shape_cast %2 : vector<1x3x4x4xf32> to vector<3x4x4xf32>
    %4 = vector.extract_strided_slice %1 {offsets = [0, 0, 1], sizes = [3, 4, 3], strides = [1, 1, 1]} : vector<3x4x4xf32> to vector<3x4x3xf32>
    %5 = vector.extract_strided_slice %1 {offsets = [0, 0, 0], sizes = [3, 4, 3], strides = [1, 1, 1]} : vector<3x4x4xf32> to vector<3x4x3xf32>
    %6 = arith.subf %4, %5 : vector<3x4x3xf32>
    %cst = arith.constant 5.000000e-01 : f32
    %7 = vector.broadcast %cst : f32 to vector<3x4x3xf32>
    %8 = arith.mulf %7, %6 : vector<3x4x3xf32>
    %9 = math.tanh %8 : vector<3x4x3xf32>
    %10 = arith.mulf %9, %9 : vector<3x4x3xf32>
    %11 = vector.extract_strided_slice %3 {offsets = [0, 0, 1], sizes = [3, 4, 3], strides = [1, 1, 1]} : vector<3x4x4xf32> to vector<3x4x3xf32>
    %12 = vector.extract_strided_slice %3 {offsets = [0, 0, 0], sizes = [3, 4, 3], strides = [1, 1, 1]} : vector<3x4x4xf32> to vector<3x4x3xf32>
    %13 = arith.subf %11, %12 : vector<3x4x3xf32>
    %cst_7 = arith.constant 5.000000e-01 : f32
    %14 = vector.broadcast %cst_7 : f32 to vector<3x4x3xf32>
    %15 = arith.mulf %14, %13 : vector<3x4x3xf32>
    %16 = math.tanh %15 : vector<3x4x3xf32>
    %17 = arith.mulf %16, %16 : vector<3x4x3xf32>
    %18 = vector.extract_strided_slice %10 {offsets = [0, 0, 0], sizes = [1, 4, 3], strides = [1, 1, 1]} : vector<3x4x3xf32> to vector<1x4x3xf32>
    %19 = vector.shape_cast %18 : vector<1x4x3xf32> to vector<4x3xf32>
    %20 = vector.extract_strided_slice %17 {offsets = [0, 0, 0], sizes = [1, 4, 3], strides = [1, 1, 1]} : vector<3x4x3xf32> to vector<1x4x3xf32>
    %21 = vector.shape_cast %20 : vector<1x4x3xf32> to vector<4x3xf32>
    %22 = arith.mulf %19, %21 : vector<4x3xf32>
    %23 = vector.shape_cast %22 : vector<4x3xf32> to vector<1x4x3xf32>
    %cst_8 = arith.constant dense<0.000000e+00> : vector<1xf32>
    %24 = vector.multi_reduction <add>, %23, %cst_8 [1, 2] : vector<1x4x3xf32> to vector<1xf32>
    %25 = vector.shape_cast %24 : vector<1xf32> to vector<1x1x1xf32>
    %26 = vector.extract %25[0, 0, 0] : f32 from vector<1x1x1xf32>
    %27 = vector.broadcast %26 : f32 to vector<1x1xf32>
    %28 = vector.extract_strided_slice %10 {offsets = [0, 0, 0], sizes = [1, 4, 3], strides = [1, 1, 1]} : vector<3x4x3xf32> to vector<1x4x3xf32>
    %29 = vector.shape_cast %28 : vector<1x4x3xf32> to vector<4x3xf32>
    %30 = vector.extract_strided_slice %17 {offsets = [1, 0, 0], sizes = [1, 4, 3], strides = [1, 1, 1]} : vector<3x4x3xf32> to vector<1x4x3xf32>
    %31 = vector.shape_cast %30 : vector<1x4x3xf32> to vector<4x3xf32>
    %32 = arith.mulf %29, %31 : vector<4x3xf32>
    %33 = vector.shape_cast %32 : vector<4x3xf32> to vector<1x4x3xf32>
    %cst_9 = arith.constant dense<0.000000e+00> : vector<1xf32>
    %34 = vector.multi_reduction <add>, %33, %cst_9 [1, 2] : vector<1x4x3xf32> to vector<1xf32>
    %35 = vector.shape_cast %34 : vector<1xf32> to vector<1x1x1xf32>
    %36 = vector.extract %35[0, 0, 0] : f32 from vector<1x1x1xf32>
    %37 = vector.broadcast %36 : f32 to vector<1x1xf32>
    %38 = vector.extract_strided_slice %10 {offsets = [0, 0, 0], sizes = [1, 4, 3], strides = [1, 1, 1]} : vector<3x4x3xf32> to vector<1x4x3xf32>
    %39 = vector.shape_cast %38 : vector<1x4x3xf32> to vector<4x3xf32>
    %40 = vector.extract_strided_slice %17 {offsets = [2, 0, 0], sizes = [1, 4, 3], strides = [1, 1, 1]} : vector<3x4x3xf32> to vector<1x4x3xf32>
    %41 = vector.shape_cast %40 : vector<1x4x3xf32> to vector<4x3xf32>
    %42 = arith.mulf %39, %41 : vector<4x3xf32>
    %43 = vector.shape_cast %42 : vector<4x3xf32> to vector<1x4x3xf32>
    %cst_10 = arith.constant dense<0.000000e+00> : vector<1xf32>
    %44 = vector.multi_reduction <add>, %43, %cst_10 [1, 2] : vector<1x4x3xf32> to vector<1xf32>
    %45 = vector.shape_cast %44 : vector<1xf32> to vector<1x1x1xf32>
    %46 = vector.extract %45[0, 0, 0] : f32 from vector<1x1x1xf32>
    %47 = vector.broadcast %46 : f32 to vector<1x1xf32>
    %48 = tpu.concatenate %27, %37, %47 in 1 : vector<1x1xf32>, vector<1x1xf32>, vector<1x1xf32> -> vector<1x3xf32>
    %49 = vector.extract_strided_slice %10 {offsets = [1, 0, 0], sizes = [1, 4, 3], strides = [1, 1, 1]} : vector<3x4x3xf32> to vector<1x4x3xf32>
    %50 = vector.shape_cast %49 : vector<1x4x3xf32> to vector<4x3xf32>
    %51 = vector.extract_strided_slice %17 {offsets = [0, 0, 0], sizes = [1, 4, 3], strides = [1, 1, 1]} : vector<3x4x3xf32> to vector<1x4x3xf32>
    %52 = vector.shape_cast %51 : vector<1x4x3xf32> to vector<4x3xf32>
    %53 = arith.mulf %50, %52 : vector<4x3xf32>
    %54 = vector.shape_cast %53 : vector<4x3xf32> to vector<1x4x3xf32>
    %cst_11 = arith.constant dense<0.000000e+00> : vector<1xf32>
    %55 = vector.multi_reduction <add>, %54, %cst_11 [1, 2] : vector<1x4x3xf32> to vector<1xf32>
    %56 = vector.shape_cast %55 : vector<1xf32> to vector<1x1x1xf32>
    %57 = vector.extract %56[0, 0, 0] : f32 from vector<1x1x1xf32>
    %58 = vector.broadcast %57 : f32 to vector<1x1xf32>
    %59 = vector.extract_strided_slice %10 {offsets = [1, 0, 0], sizes = [1, 4, 3], strides = [1, 1, 1]} : vector<3x4x3xf32> to vector<1x4x3xf32>
    %60 = vector.shape_cast %59 : vector<1x4x3xf32> to vector<4x3xf32>
    %61 = vector.extract_strided_slice %17 {offsets = [1, 0, 0], sizes = [1, 4, 3], strides = [1, 1, 1]} : vector<3x4x3xf32> to vector<1x4x3xf32>
    %62 = vector.shape_cast %61 : vector<1x4x3xf32> to vector<4x3xf32>
    %63 = arith.mulf %60, %62 : vector<4x3xf32>
    %64 = vector.shape_cast %63 : vector<4x3xf32> to vector<1x4x3xf32>
    %cst_12 = arith.constant dense<0.000000e+00> : vector<1xf32>
    %65 = vector.multi_reduction <add>, %64, %cst_12 [1, 2] : vector<1x4x3xf32> to vector<1xf32>
    %66 = vector.shape_cast %65 : vector<1xf32> to vector<1x1x1xf32>
    %67 = vector.extract %66[0, 0, 0] : f32 from vector<1x1x1xf32>
    %68 = vector.broadcast %67 : f32 to vector<1x1xf32>
    %69 = vector.extract_strided_slice %10 {offsets = [1, 0, 0], sizes = [1, 4, 3], strides = [1, 1, 1]} : vector<3x4x3xf32> to vector<1x4x3xf32>
    %70 = vector.shape_cast %69 : vector<1x4x3xf32> to vector<4x3xf32>
    %71 = vector.extract_strided_slice %17 {offsets = [2, 0, 0], sizes = [1, 4, 3], strides = [1, 1, 1]} : vector<3x4x3xf32> to vector<1x4x3xf32>
    %72 = vector.shape_cast %71 : vector<1x4x3xf32> to vector<4x3xf32>
    %73 = arith.mulf %70, %72 : vector<4x3xf32>
    %74 = vector.shape_cast %73 : vector<4x3xf32> to vector<1x4x3xf32>
    %cst_13 = arith.constant dense<0.000000e+00> : vector<1xf32>
    %75 = vector.multi_reduction <add>, %74, %cst_13 [1, 2] : vector<1x4x3xf32> to vector<1xf32>
    %76 = vector.shape_cast %75 : vector<1xf32> to vector<1x1x1xf32>
    %77 = vector.extract %76[0, 0, 0] : f32 from vector<1x1x1xf32>
    %78 = vector.broadcast %77 : f32 to vector<1x1xf32>
    %79 = tpu.concatenate %58, %68, %78 in 1 : vector<1x1xf32>, vector<1x1xf32>, vector<1x1xf32> -> vector<1x3xf32>
    %80 = vector.extract_strided_slice %10 {offsets = [2, 0, 0], sizes = [1, 4, 3], strides = [1, 1, 1]} : vector<3x4x3xf32> to vector<1x4x3xf32>
    %81 = vector.shape_cast %80 : vector<1x4x3xf32> to vector<4x3xf32>
    %82 = vector.extract_strided_slice %17 {offsets = [0, 0, 0], sizes = [1, 4, 3], strides = [1, 1, 1]} : vector<3x4x3xf32> to vector<1x4x3xf32>
    %83 = vector.shape_cast %82 : vector<1x4x3xf32> to vector<4x3xf32>
    %84 = arith.mulf %81, %83 : vector<4x3xf32>
    %85 = vector.shape_cast %84 : vector<4x3xf32> to vector<1x4x3xf32>
    %cst_14 = arith.constant dense<0.000000e+00> : vector<1xf32>
    %86 = vector.multi_reduction <add>, %85, %cst_14 [1, 2] : vector<1x4x3xf32> to vector<1xf32>
    %87 = vector.shape_cast %86 : vector<1xf32> to vector<1x1x1xf32>
    %88 = vector.extract %87[0, 0, 0] : f32 from vector<1x1x1xf32>
    %89 = vector.broadcast %88 : f32 to vector<1x1xf32>
    %90 = vector.extract_strided_slice %10 {offsets = [2, 0, 0], sizes = [1, 4, 3], strides = [1, 1, 1]} : vector<3x4x3xf32> to vector<1x4x3xf32>
    %91 = vector.shape_cast %90 : vector<1x4x3xf32> to vector<4x3xf32>
    %92 = vector.extract_strided_slice %17 {offsets = [1, 0, 0], sizes = [1, 4, 3], strides = [1, 1, 1]} : vector<3x4x3xf32> to vector<1x4x3xf32>
    %93 = vector.shape_cast %92 : vector<1x4x3xf32> to vector<4x3xf32>
    %94 = arith.mulf %91, %93 : vector<4x3xf32>
    %95 = vector.shape_cast %94 : vector<4x3xf32> to vector<1x4x3xf32>
    %cst_15 = arith.constant dense<0.000000e+00> : vector<1xf32>
    %96 = vector.multi_reduction <add>, %95, %cst_15 [1, 2] : vector<1x4x3xf32> to vector<1xf32>
    %97 = vector.shape_cast %96 : vector<1xf32> to vector<1x1x1xf32>
    %98 = vector.extract %97[0, 0, 0] : f32 from vector<1x1x1xf32>
    %99 = vector.broadcast %98 : f32 to vector<1x1xf32>
    %100 = vector.extract_strided_slice %10 {offsets = [2, 0, 0], sizes = [1, 4, 3], strides = [1, 1, 1]} : vector<3x4x3xf32> to vector<1x4x3xf32>
    %101 = vector.shape_cast %100 : vector<1x4x3xf32> to vector<4x3xf32>
    %102 = vector.extract_strided_slice %17 {offsets = [2, 0, 0], sizes = [1, 4, 3], strides = [1, 1, 1]} : vector<3x4x3xf32> to vector<1x4x3xf32>
    %103 = vector.shape_cast %102 : vector<1x4x3xf32> to vector<4x3xf32>
    %104 = arith.mulf %101, %103 : vector<4x3xf32>
    %105 = vector.shape_cast %104 : vector<4x3xf32> to vector<1x4x3xf32>
    %cst_16 = arith.constant dense<0.000000e+00> : vector<1xf32>
    %106 = vector.multi_reduction <add>, %105, %cst_16 [1, 2] : vector<1x4x3xf32> to vector<1xf32>
    %107 = vector.shape_cast %106 : vector<1xf32> to vector<1x1x1xf32>
    %108 = vector.extract %107[0, 0, 0] : f32 from vector<1x1x1xf32>
    %109 = vector.broadcast %108 : f32 to vector<1x1xf32>
    %110 = tpu.concatenate %89, %99, %109 in 1 : vector<1x1xf32>, vector<1x1xf32>, vector<1x1xf32> -> vector<1x3xf32>
    %111 = tpu.concatenate %48, %79, %110 in 0 : vector<1x3xf32>, vector<1x3xf32>, vector<1x3xf32> -> vector<3x3xf32>
    %c0_17 = arith.constant 0 : index
    %c0_18 = arith.constant 0 : index
    %c0_19 = arith.constant 0 : index
    %c0_20 = arith.constant 0 : index
    %112 = vector.load %arg5[%c0_17, %c0_18, %c0_19, %c0_20] : memref<1x1x3x3xf32, #tpu.memory_space<vmem>>, vector<1x1x3x3xf32>
    %113 = vector.shape_cast %112 : vector<1x1x3x3xf32> to vector<3x3xf32>
    %114 = vector.shape_cast %111 : vector<3x3xf32> to vector<1x1x3x3xf32>
    tpu.vector_store %arg5[%c0_17, %c0_18, %c0_19, %c0_20], %114 {strides = array<i32>} : memref<1x1x3x3xf32, #tpu.memory_space<vmem>>, vector<1x1x3x3xf32>,
    %115 = vector.extract_strided_slice %1 {offsets = [0, 1, 0], sizes = [3, 3, 4], strides = [1, 1, 1]} : vector<3x4x4xf32> to vector<3x3x4xf32>
    %116 = vector.extract_strided_slice %1 {offsets = [0, 0, 0], sizes = [3, 3, 4], strides = [1, 1, 1]} : vector<3x4x4xf32> to vector<3x3x4xf32>
    %117 = arith.subf %115, %116 : vector<3x3x4xf32>
    %cst_21 = arith.constant 5.000000e-01 : f32
    %118 = vector.broadcast %cst_21 : f32 to vector<3x3x4xf32>
    %119 = arith.mulf %118, %117 : vector<3x3x4xf32>
    %120 = math.tanh %119 : vector<3x3x4xf32>
    %121 = arith.mulf %120, %120 : vector<3x3x4xf32>
    %122 = vector.extract_strided_slice %3 {offsets = [0, 1, 0], sizes = [3, 3, 4], strides = [1, 1, 1]} : vector<3x4x4xf32> to vector<3x3x4xf32>
    %123 = vector.extract_strided_slice %3 {offsets = [0, 0, 0], sizes = [3, 3, 4], strides = [1, 1, 1]} : vector<3x4x4xf32> to vector<3x3x4xf32>
    %124 = arith.subf %122, %123 : vector<3x3x4xf32>
    %cst_22 = arith.constant 5.000000e-01 : f32
    %125 = vector.broadcast %cst_22 : f32 to vector<3x3x4xf32>
    %126 = arith.mulf %125, %124 : vector<3x3x4xf32>
    %127 = math.tanh %126 : vector<3x3x4xf32>
    %128 = arith.mulf %127, %127 : vector<3x3x4xf32>
    %129 = vector.extract_strided_slice %121 {offsets = [0, 0, 0], sizes = [1, 3, 4], strides = [1, 1, 1]} : vector<3x3x4xf32> to vector<1x3x4xf32>
    %130 = vector.shape_cast %129 : vector<1x3x4xf32> to vector<3x4xf32>
    %131 = vector.extract_strided_slice %128 {offsets = [0, 0, 0], sizes = [1, 3, 4], strides = [1, 1, 1]} : vector<3x3x4xf32> to vector<1x3x4xf32>
    %132 = vector.shape_cast %131 : vector<1x3x4xf32> to vector<3x4xf32>
    %133 = arith.mulf %130, %132 : vector<3x4xf32>
    %134 = vector.shape_cast %133 : vector<3x4xf32> to vector<1x3x4xf32>
    %cst_23 = arith.constant dense<0.000000e+00> : vector<1xf32>
    %135 = vector.multi_reduction <add>, %134, %cst_23 [1, 2] : vector<1x3x4xf32> to vector<1xf32>
    %136 = vector.shape_cast %135 : vector<1xf32> to vector<1x1x1xf32>
    %137 = vector.extract %136[0, 0, 0] : f32 from vector<1x1x1xf32>
    %138 = vector.broadcast %137 : f32 to vector<1x1xf32>
    %139 = vector.extract_strided_slice %121 {offsets = [0, 0, 0], sizes = [1, 3, 4], strides = [1, 1, 1]} : vector<3x3x4xf32> to vector<1x3x4xf32>
    %140 = vector.shape_cast %139 : vector<1x3x4xf32> to vector<3x4xf32>
    %141 = vector.extract_strided_slice %128 {offsets = [1, 0, 0], sizes = [1, 3, 4], strides = [1, 1, 1]} : vector<3x3x4xf32> to vector<1x3x4xf32>
    %142 = vector.shape_cast %141 : vector<1x3x4xf32> to vector<3x4xf32>
    %143 = arith.mulf %140, %142 : vector<3x4xf32>
    %144 = vector.shape_cast %143 : vector<3x4xf32> to vector<1x3x4xf32>
    %cst_24 = arith.constant dense<0.000000e+00> : vector<1xf32>
    %145 = vector.multi_reduction <add>, %144, %cst_24 [1, 2] : vector<1x3x4xf32> to vector<1xf32>
    %146 = vector.shape_cast %145 : vector<1xf32> to vector<1x1x1xf32>
    %147 = vector.extract %146[0, 0, 0] : f32 from vector<1x1x1xf32>
    %148 = vector.broadcast %147 : f32 to vector<1x1xf32>
    %149 = vector.extract_strided_slice %121 {offsets = [0, 0, 0], sizes = [1, 3, 4], strides = [1, 1, 1]} : vector<3x3x4xf32> to vector<1x3x4xf32>
    %150 = vector.shape_cast %149 : vector<1x3x4xf32> to vector<3x4xf32>
    %151 = vector.extract_strided_slice %128 {offsets = [2, 0, 0], sizes = [1, 3, 4], strides = [1, 1, 1]} : vector<3x3x4xf32> to vector<1x3x4xf32>
    %152 = vector.shape_cast %151 : vector<1x3x4xf32> to vector<3x4xf32>
    %153 = arith.mulf %150, %152 : vector<3x4xf32>
    %154 = vector.shape_cast %153 : vector<3x4xf32> to vector<1x3x4xf32>
    %cst_25 = arith.constant dense<0.000000e+00> : vector<1xf32>
    %155 = vector.multi_reduction <add>, %154, %cst_25 [1, 2] : vector<1x3x4xf32> to vector<1xf32>
    %156 = vector.shape_cast %155 : vector<1xf32> to vector<1x1x1xf32>
    %157 = vector.extract %156[0, 0, 0] : f32 from vector<1x1x1xf32>
    %158 = vector.broadcast %157 : f32 to vector<1x1xf32>
    %159 = tpu.concatenate %138, %148, %158 in 1 : vector<1x1xf32>, vector<1x1xf32>, vector<1x1xf32> -> vector<1x3xf32>
    %160 = vector.extract_strided_slice %121 {offsets = [1, 0, 0], sizes = [1, 3, 4], strides = [1, 1, 1]} : vector<3x3x4xf32> to vector<1x3x4xf32>
    %161 = vector.shape_cast %160 : vector<1x3x4xf32> to vector<3x4xf32>
    %162 = vector.extract_strided_slice %128 {offsets = [0, 0, 0], sizes = [1, 3, 4], strides = [1, 1, 1]} : vector<3x3x4xf32> to vector<1x3x4xf32>
    %163 = vector.shape_cast %162 : vector<1x3x4xf32> to vector<3x4xf32>
    %164 = arith.mulf %161, %163 : vector<3x4xf32>
    %165 = vector.shape_cast %164 : vector<3x4xf32> to vector<1x3x4xf32>
    %cst_26 = arith.constant dense<0.000000e+00> : vector<1xf32>
    %166 = vector.multi_reduction <add>, %165, %cst_26 [1, 2] : vector<1x3x4xf32> to vector<1xf32>
    %167 = vector.shape_cast %166 : vector<1xf32> to vector<1x1x1xf32>
    %168 = vector.extract %167[0, 0, 0] : f32 from vector<1x1x1xf32>
    %169 = vector.broadcast %168 : f32 to vector<1x1xf32>
    %170 = vector.extract_strided_slice %121 {offsets = [1, 0, 0], sizes = [1, 3, 4], strides = [1, 1, 1]} : vector<3x3x4xf32> to vector<1x3x4xf32>
    %171 = vector.shape_cast %170 : vector<1x3x4xf32> to vector<3x4xf32>
    %172 = vector.extract_strided_slice %128 {offsets = [1, 0, 0], sizes = [1, 3, 4], strides = [1, 1, 1]} : vector<3x3x4xf32> to vector<1x3x4xf32>
    %173 = vector.shape_cast %172 : vector<1x3x4xf32> to vector<3x4xf32>
    %174 = arith.mulf %171, %173 : vector<3x4xf32>
    %175 = vector.shape_cast %174 : vector<3x4xf32> to vector<1x3x4xf32>
    %cst_27 = arith.constant dense<0.000000e+00> : vector<1xf32>
    %176 = vector.multi_reduction <add>, %175, %cst_27 [1, 2] : vector<1x3x4xf32> to vector<1xf32>
    %177 = vector.shape_cast %176 : vector<1xf32> to vector<1x1x1xf32>
    %178 = vector.extract %177[0, 0, 0] : f32 from vector<1x1x1xf32>
    %179 = vector.broadcast %178 : f32 to vector<1x1xf32>
    %180 = vector.extract_strided_slice %121 {offsets = [1, 0, 0], sizes = [1, 3, 4], strides = [1, 1, 1]} : vector<3x3x4xf32> to vector<1x3x4xf32>
    %181 = vector.shape_cast %180 : vector<1x3x4xf32> to vector<3x4xf32>
    %182 = vector.extract_strided_slice %128 {offsets = [2, 0, 0], sizes = [1, 3, 4], strides = [1, 1, 1]} : vector<3x3x4xf32> to vector<1x3x4xf32>
    %183 = vector.shape_cast %182 : vector<1x3x4xf32> to vector<3x4xf32>
    %184 = arith.mulf %181, %183 : vector<3x4xf32>
    %185 = vector.shape_cast %184 : vector<3x4xf32> to vector<1x3x4xf32>
    %cst_28 = arith.constant dense<0.000000e+00> : vector<1xf32>
    %186 = vector.multi_reduction <add>, %185, %cst_28 [1, 2] : vector<1x3x4xf32> to vector<1xf32>
    %187 = vector.shape_cast %186 : vector<1xf32> to vector<1x1x1xf32>
    %188 = vector.extract %187[0, 0, 0] : f32 from vector<1x1x1xf32>
    %189 = vector.broadcast %188 : f32 to vector<1x1xf32>
    %190 = tpu.concatenate %169, %179, %189 in 1 : vector<1x1xf32>, vector<1x1xf32>, vector<1x1xf32> -> vector<1x3xf32>
    %191 = vector.extract_strided_slice %121 {offsets = [2, 0, 0], sizes = [1, 3, 4], strides = [1, 1, 1]} : vector<3x3x4xf32> to vector<1x3x4xf32>
    %192 = vector.shape_cast %191 : vector<1x3x4xf32> to vector<3x4xf32>
    %193 = vector.extract_strided_slice %128 {offsets = [0, 0, 0], sizes = [1, 3, 4], strides = [1, 1, 1]} : vector<3x3x4xf32> to vector<1x3x4xf32>
    %194 = vector.shape_cast %193 : vector<1x3x4xf32> to vector<3x4xf32>
    %195 = arith.mulf %192, %194 : vector<3x4xf32>
    %196 = vector.shape_cast %195 : vector<3x4xf32> to vector<1x3x4xf32>
    %cst_29 = arith.constant dense<0.000000e+00> : vector<1xf32>
    %197 = vector.multi_reduction <add>, %196, %cst_29 [1, 2] : vector<1x3x4xf32> to vector<1xf32>
    %198 = vector.shape_cast %197 : vector<1xf32> to vector<1x1x1xf32>
    %199 = vector.extract %198[0, 0, 0] : f32 from vector<1x1x1xf32>
    %200 = vector.broadcast %199 : f32 to vector<1x1xf32>
    %201 = vector.extract_strided_slice %121 {offsets = [2, 0, 0], sizes = [1, 3, 4], strides = [1, 1, 1]} : vector<3x3x4xf32> to vector<1x3x4xf32>
    %202 = vector.shape_cast %201 : vector<1x3x4xf32> to vector<3x4xf32>
    %203 = vector.extract_strided_slice %128 {offsets = [1, 0, 0], sizes = [1, 3, 4], strides = [1, 1, 1]} : vector<3x3x4xf32> to vector<1x3x4xf32>
    %204 = vector.shape_cast %203 : vector<1x3x4xf32> to vector<3x4xf32>
    %205 = arith.mulf %202, %204 : vector<3x4xf32>
    %206 = vector.shape_cast %205 : vector<3x4xf32> to vector<1x3x4xf32>
    %cst_30 = arith.constant dense<0.000000e+00> : vector<1xf32>
    %207 = vector.multi_reduction <add>, %206, %cst_30 [1, 2] : vector<1x3x4xf32> to vector<1xf32>
    %208 = vector.shape_cast %207 : vector<1xf32> to vector<1x1x1xf32>
    %209 = vector.extract %208[0, 0, 0] : f32 from vector<1x1x1xf32>
    %210 = vector.broadcast %209 : f32 to vector<1x1xf32>
    %211 = vector.extract_strided_slice %121 {offsets = [2, 0, 0], sizes = [1, 3, 4], strides = [1, 1, 1]} : vector<3x3x4xf32> to vector<1x3x4xf32>
    %212 = vector.shape_cast %211 : vector<1x3x4xf32> to vector<3x4xf32>
    %213 = vector.extract_strided_slice %128 {offsets = [2, 0, 0], sizes = [1, 3, 4], strides = [1, 1, 1]} : vector<3x3x4xf32> to vector<1x3x4xf32>
    %214 = vector.shape_cast %213 : vector<1x3x4xf32> to vector<3x4xf32>
    %215 = arith.mulf %212, %214 : vector<3x4xf32>
    %216 = vector.shape_cast %215 : vector<3x4xf32> to vector<1x3x4xf32>
    %cst_31 = arith.constant dense<0.000000e+00> : vector<1xf32>
    %217 = vector.multi_reduction <add>, %216, %cst_31 [1, 2] : vector<1x3x4xf32> to vector<1xf32>
    %218 = vector.shape_cast %217 : vector<1xf32> to vector<1x1x1xf32>
    %219 = vector.extract %218[0, 0, 0] : f32 from vector<1x1x1xf32>
    %220 = vector.broadcast %219 : f32 to vector<1x1xf32>
    %221 = tpu.concatenate %200, %210, %220 in 1 : vector<1x1xf32>, vector<1x1xf32>, vector<1x1xf32> -> vector<1x3xf32>
    %222 = tpu.concatenate %159, %190, %221 in 0 : vector<1x3xf32>, vector<1x3xf32>, vector<1x3xf32> -> vector<3x3xf32>
    %c0_32 = arith.constant 0 : index
    %c0_33 = arith.constant 0 : index
    %c0_34 = arith.constant 0 : index
    %c0_35 = arith.constant 0 : index
    %223 = vector.load %arg4[%c0_32, %c0_33, %c0_34, %c0_35] : memref<1x1x3x3xf32, #tpu.memory_space<vmem>>, vector<1x1x3x3xf32>
    %224 = vector.shape_cast %223 : vector<1x1x3x3xf32> to vector<3x3xf32>
    %225 = vector.shape_cast %222 : vector<3x3xf32> to vector<1x1x3x3xf32>
    tpu.vector_store %arg4[%c0_32, %c0_33, %c0_34, %c0_35], %225 {strides = array<i32>} : memref<1x1x3x3xf32, #tpu.memory_space<vmem>>, vector<1x1x3x3xf32>,
    return
  }
  func.func @transform_0(%arg0: i32, %arg1: i32) -> (i32, i32, i32, i32) {
    %c0_i32 = arith.constant 0 : i32
    %c0_i32_0 = arith.constant 0 : i32
    %c0_i32_1 = arith.constant 0 : i32
    return %arg0, %c0_i32, %arg1, %c0_i32_0 : i32, i32, i32, i32
  }
  func.func @transform_1(%arg0: i32, %arg1: i32) -> (i32, i32, i32, i32) {
    %c0_i32 = arith.constant 0 : i32
    %c0_i32_0 = arith.constant 0 : i32
    %c0_i32_1 = arith.constant 0 : i32
    return %arg0, %c0_i32, %arg1, %c0_i32_0 : i32, i32, i32, i32
  }
  func.func @transform_2(%arg0: i32, %arg1: i32) -> (i32, i32, i32, i32) {
    %c0_i32 = arith.constant 0 : i32
    %c0_i32_0 = arith.constant 0 : i32
    %c0_i32_1 = arith.constant 0 : i32
    return %arg0, %arg1, %c0_i32, %c0_i32_0 : i32, i32, i32, i32
  }
  func.func @transform_3(%arg0: i32, %arg1: i32) -> (i32, i32, i32, i32) {
    %c0_i32 = arith.constant 0 : i32
    %c0_i32_0 = arith.constant 0 : i32
    %c0_i32_1 = arith.constant 0 : i32
    return %arg0, %arg1, %c0_i32, %c0_i32_0 : i32, i32, i32, i32
  }
}

module attributes {stable_mosaic.version = 11 : i64} {
  func.func @_exclusion_level_kernel(%arg0: i32, %arg1: i32, %arg2: memref<1x3x8x8xf32, #tpu.memory_space<vmem>>, %arg3: memref<1x3x8x8xf32, #tpu.memory_space<vmem>>, %arg4: memref<1x1x3x3xf32, #tpu.memory_space<vmem>>, %arg5: memref<1x1x3x3xf32, #tpu.memory_space<vmem>>) attributes {dimension_semantics = [#tpu.dimension_semantics<parallel>, #tpu.dimension_semantics<parallel>], iteration_bounds = array<i64: 2, 1>, scalar_prefetch = 0 : i64, scratch_operands = 0 : i64, tpu.core_type = #tpu.core_type<tc>, window_params = [{transform_indices = @transform_0, window_bounds = array<i64: 1, 3, 8, 8>}, {transform_indices = @transform_1, window_bounds = array<i64: 1, 3, 8, 8>}, {transform_indices = @transform_2, window_bounds = array<i64: 1, 1, 3, 3>}, {transform_indices = @transform_3, window_bounds = array<i64: 1, 1, 3, 3>}]} {
    %c0 = arith.constant 0 : index
    %c0_0 = arith.constant 0 : index
    %c0_1 = arith.constant 0 : index
    %c0_2 = arith.constant 0 : index
    %0 = vector.load %arg2[%c0, %c0_0, %c0_1, %c0_2] : memref<1x3x8x8xf32, #tpu.memory_space<vmem>>, vector<1x3x8x8xf32>
    %1 = vector.shape_cast %0 : vector<1x3x8x8xf32> to vector<3x8x8xf32>
    %c0_3 = arith.constant 0 : index
    %c0_4 = arith.constant 0 : index
    %c0_5 = arith.constant 0 : index
    %c0_6 = arith.constant 0 : index
    %2 = vector.load %arg3[%c0_3, %c0_4, %c0_5, %c0_6] : memref<1x3x8x8xf32, #tpu.memory_space<vmem>>, vector<1x3x8x8xf32>
    %3 = vector.shape_cast %2 : vector<1x3x8x8xf32> to vector<3x8x8xf32>
    %4 = vector.extract_strided_slice %1 {offsets = [0, 0, 1], sizes = [3, 8, 7], strides = [1, 1, 1]} : vector<3x8x8xf32> to vector<3x8x7xf32>
    %5 = vector.extract_strided_slice %1 {offsets = [0, 0, 0], sizes = [3, 8, 7], strides = [1, 1, 1]} : vector<3x8x8xf32> to vector<3x8x7xf32>
    %6 = arith.subf %4, %5 : vector<3x8x7xf32>
    %cst = arith.constant 5.000000e-01 : f32
    %7 = vector.broadcast %cst : f32 to vector<3x8x7xf32>
    %8 = arith.mulf %7, %6 : vector<3x8x7xf32>
    %9 = math.tanh %8 : vector<3x8x7xf32>
    %10 = arith.mulf %9, %9 : vector<3x8x7xf32>
    %11 = vector.extract_strided_slice %3 {offsets = [0, 0, 1], sizes = [3, 8, 7], strides = [1, 1, 1]} : vector<3x8x8xf32> to vector<3x8x7xf32>
    %12 = vector.extract_strided_slice %3 {offsets = [0, 0, 0], sizes = [3, 8, 7], strides = [1, 1, 1]} : vector<3x8x8xf32> to vector<3x8x7xf32>
    %13 = arith.subf %11, %12 : vector<3x8x7xf32>
    %cst_7 = arith.constant 5.000000e-01 : f32
    %14 = vector.broadcast %cst_7 : f32 to vector<3x8x7xf32>
    %15 = arith.mulf %14, %13 : vector<3x8x7xf32>
    %16 = math.tanh %15 : vector<3x8x7xf32>
    %17 = arith.mulf %16, %16 : vector<3x8x7xf32>
    %18 = vector.extract_strided_slice %10 {offsets = [0, 0, 0], sizes = [1, 8, 7], strides = [1, 1, 1]} : vector<3x8x7xf32> to vector<1x8x7xf32>
    %19 = vector.shape_cast %18 : vector<1x8x7xf32> to vector<8x7xf32>
    %20 = vector.extract_strided_slice %17 {offsets = [0, 0, 0], sizes = [1, 8, 7], strides = [1, 1, 1]} : vector<3x8x7xf32> to vector<1x8x7xf32>
    %21 = vector.shape_cast %20 : vector<1x8x7xf32> to vector<8x7xf32>
    %22 = arith.mulf %19, %21 : vector<8x7xf32>
    %23 = vector.shape_cast %22 : vector<8x7xf32> to vector<1x8x7xf32>
    %cst_8 = arith.constant dense<0.000000e+00> : vector<1xf32>
    %24 = vector.multi_reduction <add>, %23, %cst_8 [1, 2] : vector<1x8x7xf32> to vector<1xf32>
    %25 = vector.shape_cast %24 : vector<1xf32> to vector<1x1x1xf32>
    %26 = vector.extract %25[0, 0, 0] : f32 from vector<1x1x1xf32>
    %27 = vector.broadcast %26 : f32 to vector<1x1xf32>
    %28 = vector.extract_strided_slice %10 {offsets = [0, 0, 0], sizes = [1, 8, 7], strides = [1, 1, 1]} : vector<3x8x7xf32> to vector<1x8x7xf32>
    %29 = vector.shape_cast %28 : vector<1x8x7xf32> to vector<8x7xf32>
    %30 = vector.extract_strided_slice %17 {offsets = [1, 0, 0], sizes = [1, 8, 7], strides = [1, 1, 1]} : vector<3x8x7xf32> to vector<1x8x7xf32>
    %31 = vector.shape_cast %30 : vector<1x8x7xf32> to vector<8x7xf32>
    %32 = arith.mulf %29, %31 : vector<8x7xf32>
    %33 = vector.shape_cast %32 : vector<8x7xf32> to vector<1x8x7xf32>
    %cst_9 = arith.constant dense<0.000000e+00> : vector<1xf32>
    %34 = vector.multi_reduction <add>, %33, %cst_9 [1, 2] : vector<1x8x7xf32> to vector<1xf32>
    %35 = vector.shape_cast %34 : vector<1xf32> to vector<1x1x1xf32>
    %36 = vector.extract %35[0, 0, 0] : f32 from vector<1x1x1xf32>
    %37 = vector.broadcast %36 : f32 to vector<1x1xf32>
    %38 = vector.extract_strided_slice %10 {offsets = [0, 0, 0], sizes = [1, 8, 7], strides = [1, 1, 1]} : vector<3x8x7xf32> to vector<1x8x7xf32>
    %39 = vector.shape_cast %38 : vector<1x8x7xf32> to vector<8x7xf32>
    %40 = vector.extract_strided_slice %17 {offsets = [2, 0, 0], sizes = [1, 8, 7], strides = [1, 1, 1]} : vector<3x8x7xf32> to vector<1x8x7xf32>
    %41 = vector.shape_cast %40 : vector<1x8x7xf32> to vector<8x7xf32>
    %42 = arith.mulf %39, %41 : vector<8x7xf32>
    %43 = vector.shape_cast %42 : vector<8x7xf32> to vector<1x8x7xf32>
    %cst_10 = arith.constant dense<0.000000e+00> : vector<1xf32>
    %44 = vector.multi_reduction <add>, %43, %cst_10 [1, 2] : vector<1x8x7xf32> to vector<1xf32>
    %45 = vector.shape_cast %44 : vector<1xf32> to vector<1x1x1xf32>
    %46 = vector.extract %45[0, 0, 0] : f32 from vector<1x1x1xf32>
    %47 = vector.broadcast %46 : f32 to vector<1x1xf32>
    %48 = tpu.concatenate %27, %37, %47 in 1 : vector<1x1xf32>, vector<1x1xf32>, vector<1x1xf32> -> vector<1x3xf32>
    %49 = vector.extract_strided_slice %10 {offsets = [1, 0, 0], sizes = [1, 8, 7], strides = [1, 1, 1]} : vector<3x8x7xf32> to vector<1x8x7xf32>
    %50 = vector.shape_cast %49 : vector<1x8x7xf32> to vector<8x7xf32>
    %51 = vector.extract_strided_slice %17 {offsets = [0, 0, 0], sizes = [1, 8, 7], strides = [1, 1, 1]} : vector<3x8x7xf32> to vector<1x8x7xf32>
    %52 = vector.shape_cast %51 : vector<1x8x7xf32> to vector<8x7xf32>
    %53 = arith.mulf %50, %52 : vector<8x7xf32>
    %54 = vector.shape_cast %53 : vector<8x7xf32> to vector<1x8x7xf32>
    %cst_11 = arith.constant dense<0.000000e+00> : vector<1xf32>
    %55 = vector.multi_reduction <add>, %54, %cst_11 [1, 2] : vector<1x8x7xf32> to vector<1xf32>
    %56 = vector.shape_cast %55 : vector<1xf32> to vector<1x1x1xf32>
    %57 = vector.extract %56[0, 0, 0] : f32 from vector<1x1x1xf32>
    %58 = vector.broadcast %57 : f32 to vector<1x1xf32>
    %59 = vector.extract_strided_slice %10 {offsets = [1, 0, 0], sizes = [1, 8, 7], strides = [1, 1, 1]} : vector<3x8x7xf32> to vector<1x8x7xf32>
    %60 = vector.shape_cast %59 : vector<1x8x7xf32> to vector<8x7xf32>
    %61 = vector.extract_strided_slice %17 {offsets = [1, 0, 0], sizes = [1, 8, 7], strides = [1, 1, 1]} : vector<3x8x7xf32> to vector<1x8x7xf32>
    %62 = vector.shape_cast %61 : vector<1x8x7xf32> to vector<8x7xf32>
    %63 = arith.mulf %60, %62 : vector<8x7xf32>
    %64 = vector.shape_cast %63 : vector<8x7xf32> to vector<1x8x7xf32>
    %cst_12 = arith.constant dense<0.000000e+00> : vector<1xf32>
    %65 = vector.multi_reduction <add>, %64, %cst_12 [1, 2] : vector<1x8x7xf32> to vector<1xf32>
    %66 = vector.shape_cast %65 : vector<1xf32> to vector<1x1x1xf32>
    %67 = vector.extract %66[0, 0, 0] : f32 from vector<1x1x1xf32>
    %68 = vector.broadcast %67 : f32 to vector<1x1xf32>
    %69 = vector.extract_strided_slice %10 {offsets = [1, 0, 0], sizes = [1, 8, 7], strides = [1, 1, 1]} : vector<3x8x7xf32> to vector<1x8x7xf32>
    %70 = vector.shape_cast %69 : vector<1x8x7xf32> to vector<8x7xf32>
    %71 = vector.extract_strided_slice %17 {offsets = [2, 0, 0], sizes = [1, 8, 7], strides = [1, 1, 1]} : vector<3x8x7xf32> to vector<1x8x7xf32>
    %72 = vector.shape_cast %71 : vector<1x8x7xf32> to vector<8x7xf32>
    %73 = arith.mulf %70, %72 : vector<8x7xf32>
    %74 = vector.shape_cast %73 : vector<8x7xf32> to vector<1x8x7xf32>
    %cst_13 = arith.constant dense<0.000000e+00> : vector<1xf32>
    %75 = vector.multi_reduction <add>, %74, %cst_13 [1, 2] : vector<1x8x7xf32> to vector<1xf32>
    %76 = vector.shape_cast %75 : vector<1xf32> to vector<1x1x1xf32>
    %77 = vector.extract %76[0, 0, 0] : f32 from vector<1x1x1xf32>
    %78 = vector.broadcast %77 : f32 to vector<1x1xf32>
    %79 = tpu.concatenate %58, %68, %78 in 1 : vector<1x1xf32>, vector<1x1xf32>, vector<1x1xf32> -> vector<1x3xf32>
    %80 = vector.extract_strided_slice %10 {offsets = [2, 0, 0], sizes = [1, 8, 7], strides = [1, 1, 1]} : vector<3x8x7xf32> to vector<1x8x7xf32>
    %81 = vector.shape_cast %80 : vector<1x8x7xf32> to vector<8x7xf32>
    %82 = vector.extract_strided_slice %17 {offsets = [0, 0, 0], sizes = [1, 8, 7], strides = [1, 1, 1]} : vector<3x8x7xf32> to vector<1x8x7xf32>
    %83 = vector.shape_cast %82 : vector<1x8x7xf32> to vector<8x7xf32>
    %84 = arith.mulf %81, %83 : vector<8x7xf32>
    %85 = vector.shape_cast %84 : vector<8x7xf32> to vector<1x8x7xf32>
    %cst_14 = arith.constant dense<0.000000e+00> : vector<1xf32>
    %86 = vector.multi_reduction <add>, %85, %cst_14 [1, 2] : vector<1x8x7xf32> to vector<1xf32>
    %87 = vector.shape_cast %86 : vector<1xf32> to vector<1x1x1xf32>
    %88 = vector.extract %87[0, 0, 0] : f32 from vector<1x1x1xf32>
    %89 = vector.broadcast %88 : f32 to vector<1x1xf32>
    %90 = vector.extract_strided_slice %10 {offsets = [2, 0, 0], sizes = [1, 8, 7], strides = [1, 1, 1]} : vector<3x8x7xf32> to vector<1x8x7xf32>
    %91 = vector.shape_cast %90 : vector<1x8x7xf32> to vector<8x7xf32>
    %92 = vector.extract_strided_slice %17 {offsets = [1, 0, 0], sizes = [1, 8, 7], strides = [1, 1, 1]} : vector<3x8x7xf32> to vector<1x8x7xf32>
    %93 = vector.shape_cast %92 : vector<1x8x7xf32> to vector<8x7xf32>
    %94 = arith.mulf %91, %93 : vector<8x7xf32>
    %95 = vector.shape_cast %94 : vector<8x7xf32> to vector<1x8x7xf32>
    %cst_15 = arith.constant dense<0.000000e+00> : vector<1xf32>
    %96 = vector.multi_reduction <add>, %95, %cst_15 [1, 2] : vector<1x8x7xf32> to vector<1xf32>
    %97 = vector.shape_cast %96 : vector<1xf32> to vector<1x1x1xf32>
    %98 = vector.extract %97[0, 0, 0] : f32 from vector<1x1x1xf32>
    %99 = vector.broadcast %98 : f32 to vector<1x1xf32>
    %100 = vector.extract_strided_slice %10 {offsets = [2, 0, 0], sizes = [1, 8, 7], strides = [1, 1, 1]} : vector<3x8x7xf32> to vector<1x8x7xf32>
    %101 = vector.shape_cast %100 : vector<1x8x7xf32> to vector<8x7xf32>
    %102 = vector.extract_strided_slice %17 {offsets = [2, 0, 0], sizes = [1, 8, 7], strides = [1, 1, 1]} : vector<3x8x7xf32> to vector<1x8x7xf32>
    %103 = vector.shape_cast %102 : vector<1x8x7xf32> to vector<8x7xf32>
    %104 = arith.mulf %101, %103 : vector<8x7xf32>
    %105 = vector.shape_cast %104 : vector<8x7xf32> to vector<1x8x7xf32>
    %cst_16 = arith.constant dense<0.000000e+00> : vector<1xf32>
    %106 = vector.multi_reduction <add>, %105, %cst_16 [1, 2] : vector<1x8x7xf32> to vector<1xf32>
    %107 = vector.shape_cast %106 : vector<1xf32> to vector<1x1x1xf32>
    %108 = vector.extract %107[0, 0, 0] : f32 from vector<1x1x1xf32>
    %109 = vector.broadcast %108 : f32 to vector<1x1xf32>
    %110 = tpu.concatenate %89, %99, %109 in 1 : vector<1x1xf32>, vector<1x1xf32>, vector<1x1xf32> -> vector<1x3xf32>
    %111 = tpu.concatenate %48, %79, %110 in 0 : vector<1x3xf32>, vector<1x3xf32>, vector<1x3xf32> -> vector<3x3xf32>
    %c0_17 = arith.constant 0 : index
    %c0_18 = arith.constant 0 : index
    %c0_19 = arith.constant 0 : index
    %c0_20 = arith.constant 0 : index
    %112 = vector.load %arg5[%c0_17, %c0_18, %c0_19, %c0_20] : memref<1x1x3x3xf32, #tpu.memory_space<vmem>>, vector<1x1x3x3xf32>
    %113 = vector.shape_cast %112 : vector<1x1x3x3xf32> to vector<3x3xf32>
    %114 = vector.shape_cast %111 : vector<3x3xf32> to vector<1x1x3x3xf32>
    tpu.vector_store %arg5[%c0_17, %c0_18, %c0_19, %c0_20], %114 {strides = array<i32>} : memref<1x1x3x3xf32, #tpu.memory_space<vmem>>, vector<1x1x3x3xf32>,
    %115 = vector.extract_strided_slice %1 {offsets = [0, 1, 0], sizes = [3, 7, 8], strides = [1, 1, 1]} : vector<3x8x8xf32> to vector<3x7x8xf32>
    %116 = vector.extract_strided_slice %1 {offsets = [0, 0, 0], sizes = [3, 7, 8], strides = [1, 1, 1]} : vector<3x8x8xf32> to vector<3x7x8xf32>
    %117 = arith.subf %115, %116 : vector<3x7x8xf32>
    %cst_21 = arith.constant 5.000000e-01 : f32
    %118 = vector.broadcast %cst_21 : f32 to vector<3x7x8xf32>
    %119 = arith.mulf %118, %117 : vector<3x7x8xf32>
    %120 = math.tanh %119 : vector<3x7x8xf32>
    %121 = arith.mulf %120, %120 : vector<3x7x8xf32>
    %122 = vector.extract_strided_slice %3 {offsets = [0, 1, 0], sizes = [3, 7, 8], strides = [1, 1, 1]} : vector<3x8x8xf32> to vector<3x7x8xf32>
    %123 = vector.extract_strided_slice %3 {offsets = [0, 0, 0], sizes = [3, 7, 8], strides = [1, 1, 1]} : vector<3x8x8xf32> to vector<3x7x8xf32>
    %124 = arith.subf %122, %123 : vector<3x7x8xf32>
    %cst_22 = arith.constant 5.000000e-01 : f32
    %125 = vector.broadcast %cst_22 : f32 to vector<3x7x8xf32>
    %126 = arith.mulf %125, %124 : vector<3x7x8xf32>
    %127 = math.tanh %126 : vector<3x7x8xf32>
    %128 = arith.mulf %127, %127 : vector<3x7x8xf32>
    %129 = vector.extract_strided_slice %121 {offsets = [0, 0, 0], sizes = [1, 7, 8], strides = [1, 1, 1]} : vector<3x7x8xf32> to vector<1x7x8xf32>
    %130 = vector.shape_cast %129 : vector<1x7x8xf32> to vector<7x8xf32>
    %131 = vector.extract_strided_slice %128 {offsets = [0, 0, 0], sizes = [1, 7, 8], strides = [1, 1, 1]} : vector<3x7x8xf32> to vector<1x7x8xf32>
    %132 = vector.shape_cast %131 : vector<1x7x8xf32> to vector<7x8xf32>
    %133 = arith.mulf %130, %132 : vector<7x8xf32>
    %134 = vector.shape_cast %133 : vector<7x8xf32> to vector<1x7x8xf32>
    %cst_23 = arith.constant dense<0.000000e+00> : vector<1xf32>
    %135 = vector.multi_reduction <add>, %134, %cst_23 [1, 2] : vector<1x7x8xf32> to vector<1xf32>
    %136 = vector.shape_cast %135 : vector<1xf32> to vector<1x1x1xf32>
    %137 = vector.extract %136[0, 0, 0] : f32 from vector<1x1x1xf32>
    %138 = vector.broadcast %137 : f32 to vector<1x1xf32>
    %139 = vector.extract_strided_slice %121 {offsets = [0, 0, 0], sizes = [1, 7, 8], strides = [1, 1, 1]} : vector<3x7x8xf32> to vector<1x7x8xf32>
    %140 = vector.shape_cast %139 : vector<1x7x8xf32> to vector<7x8xf32>
    %141 = vector.extract_strided_slice %128 {offsets = [1, 0, 0], sizes = [1, 7, 8], strides = [1, 1, 1]} : vector<3x7x8xf32> to vector<1x7x8xf32>
    %142 = vector.shape_cast %141 : vector<1x7x8xf32> to vector<7x8xf32>
    %143 = arith.mulf %140, %142 : vector<7x8xf32>
    %144 = vector.shape_cast %143 : vector<7x8xf32> to vector<1x7x8xf32>
    %cst_24 = arith.constant dense<0.000000e+00> : vector<1xf32>
    %145 = vector.multi_reduction <add>, %144, %cst_24 [1, 2] : vector<1x7x8xf32> to vector<1xf32>
    %146 = vector.shape_cast %145 : vector<1xf32> to vector<1x1x1xf32>
    %147 = vector.extract %146[0, 0, 0] : f32 from vector<1x1x1xf32>
    %148 = vector.broadcast %147 : f32 to vector<1x1xf32>
    %149 = vector.extract_strided_slice %121 {offsets = [0, 0, 0], sizes = [1, 7, 8], strides = [1, 1, 1]} : vector<3x7x8xf32> to vector<1x7x8xf32>
    %150 = vector.shape_cast %149 : vector<1x7x8xf32> to vector<7x8xf32>
    %151 = vector.extract_strided_slice %128 {offsets = [2, 0, 0], sizes = [1, 7, 8], strides = [1, 1, 1]} : vector<3x7x8xf32> to vector<1x7x8xf32>
    %152 = vector.shape_cast %151 : vector<1x7x8xf32> to vector<7x8xf32>
    %153 = arith.mulf %150, %152 : vector<7x8xf32>
    %154 = vector.shape_cast %153 : vector<7x8xf32> to vector<1x7x8xf32>
    %cst_25 = arith.constant dense<0.000000e+00> : vector<1xf32>
    %155 = vector.multi_reduction <add>, %154, %cst_25 [1, 2] : vector<1x7x8xf32> to vector<1xf32>
    %156 = vector.shape_cast %155 : vector<1xf32> to vector<1x1x1xf32>
    %157 = vector.extract %156[0, 0, 0] : f32 from vector<1x1x1xf32>
    %158 = vector.broadcast %157 : f32 to vector<1x1xf32>
    %159 = tpu.concatenate %138, %148, %158 in 1 : vector<1x1xf32>, vector<1x1xf32>, vector<1x1xf32> -> vector<1x3xf32>
    %160 = vector.extract_strided_slice %121 {offsets = [1, 0, 0], sizes = [1, 7, 8], strides = [1, 1, 1]} : vector<3x7x8xf32> to vector<1x7x8xf32>
    %161 = vector.shape_cast %160 : vector<1x7x8xf32> to vector<7x8xf32>
    %162 = vector.extract_strided_slice %128 {offsets = [0, 0, 0], sizes = [1, 7, 8], strides = [1, 1, 1]} : vector<3x7x8xf32> to vector<1x7x8xf32>
    %163 = vector.shape_cast %162 : vector<1x7x8xf32> to vector<7x8xf32>
    %164 = arith.mulf %161, %163 : vector<7x8xf32>
    %165 = vector.shape_cast %164 : vector<7x8xf32> to vector<1x7x8xf32>
    %cst_26 = arith.constant dense<0.000000e+00> : vector<1xf32>
    %166 = vector.multi_reduction <add>, %165, %cst_26 [1, 2] : vector<1x7x8xf32> to vector<1xf32>
    %167 = vector.shape_cast %166 : vector<1xf32> to vector<1x1x1xf32>
    %168 = vector.extract %167[0, 0, 0] : f32 from vector<1x1x1xf32>
    %169 = vector.broadcast %168 : f32 to vector<1x1xf32>
    %170 = vector.extract_strided_slice %121 {offsets = [1, 0, 0], sizes = [1, 7, 8], strides = [1, 1, 1]} : vector<3x7x8xf32> to vector<1x7x8xf32>
    %171 = vector.shape_cast %170 : vector<1x7x8xf32> to vector<7x8xf32>
    %172 = vector.extract_strided_slice %128 {offsets = [1, 0, 0], sizes = [1, 7, 8], strides = [1, 1, 1]} : vector<3x7x8xf32> to vector<1x7x8xf32>
    %173 = vector.shape_cast %172 : vector<1x7x8xf32> to vector<7x8xf32>
    %174 = arith.mulf %171, %173 : vector<7x8xf32>
    %175 = vector.shape_cast %174 : vector<7x8xf32> to vector<1x7x8xf32>
    %cst_27 = arith.constant dense<0.000000e+00> : vector<1xf32>
    %176 = vector.multi_reduction <add>, %175, %cst_27 [1, 2] : vector<1x7x8xf32> to vector<1xf32>
    %177 = vector.shape_cast %176 : vector<1xf32> to vector<1x1x1xf32>
    %178 = vector.extract %177[0, 0, 0] : f32 from vector<1x1x1xf32>
    %179 = vector.broadcast %178 : f32 to vector<1x1xf32>
    %180 = vector.extract_strided_slice %121 {offsets = [1, 0, 0], sizes = [1, 7, 8], strides = [1, 1, 1]} : vector<3x7x8xf32> to vector<1x7x8xf32>
    %181 = vector.shape_cast %180 : vector<1x7x8xf32> to vector<7x8xf32>
    %182 = vector.extract_strided_slice %128 {offsets = [2, 0, 0], sizes = [1, 7, 8], strides = [1, 1, 1]} : vector<3x7x8xf32> to vector<1x7x8xf32>
    %183 = vector.shape_cast %182 : vector<1x7x8xf32> to vector<7x8xf32>
    %184 = arith.mulf %181, %183 : vector<7x8xf32>
    %185 = vector.shape_cast %184 : vector<7x8xf32> to vector<1x7x8xf32>
    %cst_28 = arith.constant dense<0.000000e+00> : vector<1xf32>
    %186 = vector.multi_reduction <add>, %185, %cst_28 [1, 2] : vector<1x7x8xf32> to vector<1xf32>
    %187 = vector.shape_cast %186 : vector<1xf32> to vector<1x1x1xf32>
    %188 = vector.extract %187[0, 0, 0] : f32 from vector<1x1x1xf32>
    %189 = vector.broadcast %188 : f32 to vector<1x1xf32>
    %190 = tpu.concatenate %169, %179, %189 in 1 : vector<1x1xf32>, vector<1x1xf32>, vector<1x1xf32> -> vector<1x3xf32>
    %191 = vector.extract_strided_slice %121 {offsets = [2, 0, 0], sizes = [1, 7, 8], strides = [1, 1, 1]} : vector<3x7x8xf32> to vector<1x7x8xf32>
    %192 = vector.shape_cast %191 : vector<1x7x8xf32> to vector<7x8xf32>
    %193 = vector.extract_strided_slice %128 {offsets = [0, 0, 0], sizes = [1, 7, 8], strides = [1, 1, 1]} : vector<3x7x8xf32> to vector<1x7x8xf32>
    %194 = vector.shape_cast %193 : vector<1x7x8xf32> to vector<7x8xf32>
    %195 = arith.mulf %192, %194 : vector<7x8xf32>
    %196 = vector.shape_cast %195 : vector<7x8xf32> to vector<1x7x8xf32>
    %cst_29 = arith.constant dense<0.000000e+00> : vector<1xf32>
    %197 = vector.multi_reduction <add>, %196, %cst_29 [1, 2] : vector<1x7x8xf32> to vector<1xf32>
    %198 = vector.shape_cast %197 : vector<1xf32> to vector<1x1x1xf32>
    %199 = vector.extract %198[0, 0, 0] : f32 from vector<1x1x1xf32>
    %200 = vector.broadcast %199 : f32 to vector<1x1xf32>
    %201 = vector.extract_strided_slice %121 {offsets = [2, 0, 0], sizes = [1, 7, 8], strides = [1, 1, 1]} : vector<3x7x8xf32> to vector<1x7x8xf32>
    %202 = vector.shape_cast %201 : vector<1x7x8xf32> to vector<7x8xf32>
    %203 = vector.extract_strided_slice %128 {offsets = [1, 0, 0], sizes = [1, 7, 8], strides = [1, 1, 1]} : vector<3x7x8xf32> to vector<1x7x8xf32>
    %204 = vector.shape_cast %203 : vector<1x7x8xf32> to vector<7x8xf32>
    %205 = arith.mulf %202, %204 : vector<7x8xf32>
    %206 = vector.shape_cast %205 : vector<7x8xf32> to vector<1x7x8xf32>
    %cst_30 = arith.constant dense<0.000000e+00> : vector<1xf32>
    %207 = vector.multi_reduction <add>, %206, %cst_30 [1, 2] : vector<1x7x8xf32> to vector<1xf32>
    %208 = vector.shape_cast %207 : vector<1xf32> to vector<1x1x1xf32>
    %209 = vector.extract %208[0, 0, 0] : f32 from vector<1x1x1xf32>
    %210 = vector.broadcast %209 : f32 to vector<1x1xf32>
    %211 = vector.extract_strided_slice %121 {offsets = [2, 0, 0], sizes = [1, 7, 8], strides = [1, 1, 1]} : vector<3x7x8xf32> to vector<1x7x8xf32>
    %212 = vector.shape_cast %211 : vector<1x7x8xf32> to vector<7x8xf32>
    %213 = vector.extract_strided_slice %128 {offsets = [2, 0, 0], sizes = [1, 7, 8], strides = [1, 1, 1]} : vector<3x7x8xf32> to vector<1x7x8xf32>
    %214 = vector.shape_cast %213 : vector<1x7x8xf32> to vector<7x8xf32>
    %215 = arith.mulf %212, %214 : vector<7x8xf32>
    %216 = vector.shape_cast %215 : vector<7x8xf32> to vector<1x7x8xf32>
    %cst_31 = arith.constant dense<0.000000e+00> : vector<1xf32>
    %217 = vector.multi_reduction <add>, %216, %cst_31 [1, 2] : vector<1x7x8xf32> to vector<1xf32>
    %218 = vector.shape_cast %217 : vector<1xf32> to vector<1x1x1xf32>
    %219 = vector.extract %218[0, 0, 0] : f32 from vector<1x1x1xf32>
    %220 = vector.broadcast %219 : f32 to vector<1x1xf32>
    %221 = tpu.concatenate %200, %210, %220 in 1 : vector<1x1xf32>, vector<1x1xf32>, vector<1x1xf32> -> vector<1x3xf32>
    %222 = tpu.concatenate %159, %190, %221 in 0 : vector<1x3xf32>, vector<1x3xf32>, vector<1x3xf32> -> vector<3x3xf32>
    %c0_32 = arith.constant 0 : index
    %c0_33 = arith.constant 0 : index
    %c0_34 = arith.constant 0 : index
    %c0_35 = arith.constant 0 : index
    %223 = vector.load %arg4[%c0_32, %c0_33, %c0_34, %c0_35] : memref<1x1x3x3xf32, #tpu.memory_space<vmem>>, vector<1x1x3x3xf32>
    %224 = vector.shape_cast %223 : vector<1x1x3x3xf32> to vector<3x3xf32>
    %225 = vector.shape_cast %222 : vector<3x3xf32> to vector<1x1x3x3xf32>
    tpu.vector_store %arg4[%c0_32, %c0_33, %c0_34, %c0_35], %225 {strides = array<i32>} : memref<1x1x3x3xf32, #tpu.memory_space<vmem>>, vector<1x1x3x3xf32>,
    return
  }
  func.func @transform_0(%arg0: i32, %arg1: i32) -> (i32, i32, i32, i32) {
    %c0_i32 = arith.constant 0 : i32
    %c0_i32_0 = arith.constant 0 : i32
    %c0_i32_1 = arith.constant 0 : i32
    return %arg0, %c0_i32, %arg1, %c0_i32_0 : i32, i32, i32, i32
  }
  func.func @transform_1(%arg0: i32, %arg1: i32) -> (i32, i32, i32, i32) {
    %c0_i32 = arith.constant 0 : i32
    %c0_i32_0 = arith.constant 0 : i32
    %c0_i32_1 = arith.constant 0 : i32
    return %arg0, %c0_i32, %arg1, %c0_i32_0 : i32, i32, i32, i32
  }
  func.func @transform_2(%arg0: i32, %arg1: i32) -> (i32, i32, i32, i32) {
    %c0_i32 = arith.constant 0 : i32
    %c0_i32_0 = arith.constant 0 : i32
    %c0_i32_1 = arith.constant 0 : i32
    return %arg0, %arg1, %c0_i32, %c0_i32_0 : i32, i32, i32, i32
  }
  func.func @transform_3(%arg0: i32, %arg1: i32) -> (i32, i32, i32, i32) {
    %c0_i32 = arith.constant 0 : i32
    %c0_i32_0 = arith.constant 0 : i32
    %c0_i32_1 = arith.constant 0 : i32
    return %arg0, %arg1, %c0_i32, %c0_i32_0 : i32, i32, i32, i32
  }
}

module attributes {stable_mosaic.version = 11 : i64} {
  func.func @_exclusion_level_kernel(%arg0: i32, %arg1: i32, %arg2: memref<1x3x16x16xf32, #tpu.memory_space<vmem>>, %arg3: memref<1x3x16x16xf32, #tpu.memory_space<vmem>>, %arg4: memref<1x1x3x3xf32, #tpu.memory_space<vmem>>, %arg5: memref<1x1x3x3xf32, #tpu.memory_space<vmem>>) attributes {dimension_semantics = [#tpu.dimension_semantics<parallel>, #tpu.dimension_semantics<parallel>], iteration_bounds = array<i64: 2, 1>, scalar_prefetch = 0 : i64, scratch_operands = 0 : i64, tpu.core_type = #tpu.core_type<tc>, window_params = [{transform_indices = @transform_0, window_bounds = array<i64: 1, 3, 16, 16>}, {transform_indices = @transform_1, window_bounds = array<i64: 1, 3, 16, 16>}, {transform_indices = @transform_2, window_bounds = array<i64: 1, 1, 3, 3>}, {transform_indices = @transform_3, window_bounds = array<i64: 1, 1, 3, 3>}]} {
    %c0 = arith.constant 0 : index
    %c0_0 = arith.constant 0 : index
    %c0_1 = arith.constant 0 : index
    %c0_2 = arith.constant 0 : index
    %0 = vector.load %arg2[%c0, %c0_0, %c0_1, %c0_2] : memref<1x3x16x16xf32, #tpu.memory_space<vmem>>, vector<1x3x16x16xf32>
    %1 = vector.shape_cast %0 : vector<1x3x16x16xf32> to vector<3x16x16xf32>
    %c0_3 = arith.constant 0 : index
    %c0_4 = arith.constant 0 : index
    %c0_5 = arith.constant 0 : index
    %c0_6 = arith.constant 0 : index
    %2 = vector.load %arg3[%c0_3, %c0_4, %c0_5, %c0_6] : memref<1x3x16x16xf32, #tpu.memory_space<vmem>>, vector<1x3x16x16xf32>
    %3 = vector.shape_cast %2 : vector<1x3x16x16xf32> to vector<3x16x16xf32>
    %4 = vector.extract_strided_slice %1 {offsets = [0, 0, 1], sizes = [3, 16, 15], strides = [1, 1, 1]} : vector<3x16x16xf32> to vector<3x16x15xf32>
    %5 = vector.extract_strided_slice %1 {offsets = [0, 0, 0], sizes = [3, 16, 15], strides = [1, 1, 1]} : vector<3x16x16xf32> to vector<3x16x15xf32>
    %6 = arith.subf %4, %5 : vector<3x16x15xf32>
    %cst = arith.constant 5.000000e-01 : f32
    %7 = vector.broadcast %cst : f32 to vector<3x16x15xf32>
    %8 = arith.mulf %7, %6 : vector<3x16x15xf32>
    %9 = math.tanh %8 : vector<3x16x15xf32>
    %10 = arith.mulf %9, %9 : vector<3x16x15xf32>
    %11 = vector.extract_strided_slice %3 {offsets = [0, 0, 1], sizes = [3, 16, 15], strides = [1, 1, 1]} : vector<3x16x16xf32> to vector<3x16x15xf32>
    %12 = vector.extract_strided_slice %3 {offsets = [0, 0, 0], sizes = [3, 16, 15], strides = [1, 1, 1]} : vector<3x16x16xf32> to vector<3x16x15xf32>
    %13 = arith.subf %11, %12 : vector<3x16x15xf32>
    %cst_7 = arith.constant 5.000000e-01 : f32
    %14 = vector.broadcast %cst_7 : f32 to vector<3x16x15xf32>
    %15 = arith.mulf %14, %13 : vector<3x16x15xf32>
    %16 = math.tanh %15 : vector<3x16x15xf32>
    %17 = arith.mulf %16, %16 : vector<3x16x15xf32>
    %18 = vector.extract_strided_slice %10 {offsets = [0, 0, 0], sizes = [1, 16, 15], strides = [1, 1, 1]} : vector<3x16x15xf32> to vector<1x16x15xf32>
    %19 = vector.shape_cast %18 : vector<1x16x15xf32> to vector<16x15xf32>
    %20 = vector.extract_strided_slice %17 {offsets = [0, 0, 0], sizes = [1, 16, 15], strides = [1, 1, 1]} : vector<3x16x15xf32> to vector<1x16x15xf32>
    %21 = vector.shape_cast %20 : vector<1x16x15xf32> to vector<16x15xf32>
    %22 = arith.mulf %19, %21 : vector<16x15xf32>
    %23 = vector.shape_cast %22 : vector<16x15xf32> to vector<1x16x15xf32>
    %cst_8 = arith.constant dense<0.000000e+00> : vector<1xf32>
    %24 = vector.multi_reduction <add>, %23, %cst_8 [1, 2] : vector<1x16x15xf32> to vector<1xf32>
    %25 = vector.shape_cast %24 : vector<1xf32> to vector<1x1x1xf32>
    %26 = vector.extract %25[0, 0, 0] : f32 from vector<1x1x1xf32>
    %27 = vector.broadcast %26 : f32 to vector<1x1xf32>
    %28 = vector.extract_strided_slice %10 {offsets = [0, 0, 0], sizes = [1, 16, 15], strides = [1, 1, 1]} : vector<3x16x15xf32> to vector<1x16x15xf32>
    %29 = vector.shape_cast %28 : vector<1x16x15xf32> to vector<16x15xf32>
    %30 = vector.extract_strided_slice %17 {offsets = [1, 0, 0], sizes = [1, 16, 15], strides = [1, 1, 1]} : vector<3x16x15xf32> to vector<1x16x15xf32>
    %31 = vector.shape_cast %30 : vector<1x16x15xf32> to vector<16x15xf32>
    %32 = arith.mulf %29, %31 : vector<16x15xf32>
    %33 = vector.shape_cast %32 : vector<16x15xf32> to vector<1x16x15xf32>
    %cst_9 = arith.constant dense<0.000000e+00> : vector<1xf32>
    %34 = vector.multi_reduction <add>, %33, %cst_9 [1, 2] : vector<1x16x15xf32> to vector<1xf32>
    %35 = vector.shape_cast %34 : vector<1xf32> to vector<1x1x1xf32>
    %36 = vector.extract %35[0, 0, 0] : f32 from vector<1x1x1xf32>
    %37 = vector.broadcast %36 : f32 to vector<1x1xf32>
    %38 = vector.extract_strided_slice %10 {offsets = [0, 0, 0], sizes = [1, 16, 15], strides = [1, 1, 1]} : vector<3x16x15xf32> to vector<1x16x15xf32>
    %39 = vector.shape_cast %38 : vector<1x16x15xf32> to vector<16x15xf32>
    %40 = vector.extract_strided_slice %17 {offsets = [2, 0, 0], sizes = [1, 16, 15], strides = [1, 1, 1]} : vector<3x16x15xf32> to vector<1x16x15xf32>
    %41 = vector.shape_cast %40 : vector<1x16x15xf32> to vector<16x15xf32>
    %42 = arith.mulf %39, %41 : vector<16x15xf32>
    %43 = vector.shape_cast %42 : vector<16x15xf32> to vector<1x16x15xf32>
    %cst_10 = arith.constant dense<0.000000e+00> : vector<1xf32>
    %44 = vector.multi_reduction <add>, %43, %cst_10 [1, 2] : vector<1x16x15xf32> to vector<1xf32>
    %45 = vector.shape_cast %44 : vector<1xf32> to vector<1x1x1xf32>
    %46 = vector.extract %45[0, 0, 0] : f32 from vector<1x1x1xf32>
    %47 = vector.broadcast %46 : f32 to vector<1x1xf32>
    %48 = tpu.concatenate %27, %37, %47 in 1 : vector<1x1xf32>, vector<1x1xf32>, vector<1x1xf32> -> vector<1x3xf32>
    %49 = vector.extract_strided_slice %10 {offsets = [1, 0, 0], sizes = [1, 16, 15], strides = [1, 1, 1]} : vector<3x16x15xf32> to vector<1x16x15xf32>
    %50 = vector.shape_cast %49 : vector<1x16x15xf32> to vector<16x15xf32>
    %51 = vector.extract_strided_slice %17 {offsets = [0, 0, 0], sizes = [1, 16, 15], strides = [1, 1, 1]} : vector<3x16x15xf32> to vector<1x16x15xf32>
    %52 = vector.shape_cast %51 : vector<1x16x15xf32> to vector<16x15xf32>
    %53 = arith.mulf %50, %52 : vector<16x15xf32>
    %54 = vector.shape_cast %53 : vector<16x15xf32> to vector<1x16x15xf32>
    %cst_11 = arith.constant dense<0.000000e+00> : vector<1xf32>
    %55 = vector.multi_reduction <add>, %54, %cst_11 [1, 2] : vector<1x16x15xf32> to vector<1xf32>
    %56 = vector.shape_cast %55 : vector<1xf32> to vector<1x1x1xf32>
    %57 = vector.extract %56[0, 0, 0] : f32 from vector<1x1x1xf32>
    %58 = vector.broadcast %57 : f32 to vector<1x1xf32>
    %59 = vector.extract_strided_slice %10 {offsets = [1, 0, 0], sizes = [1, 16, 15], strides = [1, 1, 1]} : vector<3x16x15xf32> to vector<1x16x15xf32>
    %60 = vector.shape_cast %59 : vector<1x16x15xf32> to vector<16x15xf32>
    %61 = vector.extract_strided_slice %17 {offsets = [1, 0, 0], sizes = [1, 16, 15], strides = [1, 1, 1]} : vector<3x16x15xf32> to vector<1x16x15xf32>
    %62 = vector.shape_cast %61 : vector<1x16x15xf32> to vector<16x15xf32>
    %63 = arith.mulf %60, %62 : vector<16x15xf32>
    %64 = vector.shape_cast %63 : vector<16x15xf32> to vector<1x16x15xf32>
    %cst_12 = arith.constant dense<0.000000e+00> : vector<1xf32>
    %65 = vector.multi_reduction <add>, %64, %cst_12 [1, 2] : vector<1x16x15xf32> to vector<1xf32>
    %66 = vector.shape_cast %65 : vector<1xf32> to vector<1x1x1xf32>
    %67 = vector.extract %66[0, 0, 0] : f32 from vector<1x1x1xf32>
    %68 = vector.broadcast %67 : f32 to vector<1x1xf32>
    %69 = vector.extract_strided_slice %10 {offsets = [1, 0, 0], sizes = [1, 16, 15], strides = [1, 1, 1]} : vector<3x16x15xf32> to vector<1x16x15xf32>
    %70 = vector.shape_cast %69 : vector<1x16x15xf32> to vector<16x15xf32>
    %71 = vector.extract_strided_slice %17 {offsets = [2, 0, 0], sizes = [1, 16, 15], strides = [1, 1, 1]} : vector<3x16x15xf32> to vector<1x16x15xf32>
    %72 = vector.shape_cast %71 : vector<1x16x15xf32> to vector<16x15xf32>
    %73 = arith.mulf %70, %72 : vector<16x15xf32>
    %74 = vector.shape_cast %73 : vector<16x15xf32> to vector<1x16x15xf32>
    %cst_13 = arith.constant dense<0.000000e+00> : vector<1xf32>
    %75 = vector.multi_reduction <add>, %74, %cst_13 [1, 2] : vector<1x16x15xf32> to vector<1xf32>
    %76 = vector.shape_cast %75 : vector<1xf32> to vector<1x1x1xf32>
    %77 = vector.extract %76[0, 0, 0] : f32 from vector<1x1x1xf32>
    %78 = vector.broadcast %77 : f32 to vector<1x1xf32>
    %79 = tpu.concatenate %58, %68, %78 in 1 : vector<1x1xf32>, vector<1x1xf32>, vector<1x1xf32> -> vector<1x3xf32>
    %80 = vector.extract_strided_slice %10 {offsets = [2, 0, 0], sizes = [1, 16, 15], strides = [1, 1, 1]} : vector<3x16x15xf32> to vector<1x16x15xf32>
    %81 = vector.shape_cast %80 : vector<1x16x15xf32> to vector<16x15xf32>
    %82 = vector.extract_strided_slice %17 {offsets = [0, 0, 0], sizes = [1, 16, 15], strides = [1, 1, 1]} : vector<3x16x15xf32> to vector<1x16x15xf32>
    %83 = vector.shape_cast %82 : vector<1x16x15xf32> to vector<16x15xf32>
    %84 = arith.mulf %81, %83 : vector<16x15xf32>
    %85 = vector.shape_cast %84 : vector<16x15xf32> to vector<1x16x15xf32>
    %cst_14 = arith.constant dense<0.000000e+00> : vector<1xf32>
    %86 = vector.multi_reduction <add>, %85, %cst_14 [1, 2] : vector<1x16x15xf32> to vector<1xf32>
    %87 = vector.shape_cast %86 : vector<1xf32> to vector<1x1x1xf32>
    %88 = vector.extract %87[0, 0, 0] : f32 from vector<1x1x1xf32>
    %89 = vector.broadcast %88 : f32 to vector<1x1xf32>
    %90 = vector.extract_strided_slice %10 {offsets = [2, 0, 0], sizes = [1, 16, 15], strides = [1, 1, 1]} : vector<3x16x15xf32> to vector<1x16x15xf32>
    %91 = vector.shape_cast %90 : vector<1x16x15xf32> to vector<16x15xf32>
    %92 = vector.extract_strided_slice %17 {offsets = [1, 0, 0], sizes = [1, 16, 15], strides = [1, 1, 1]} : vector<3x16x15xf32> to vector<1x16x15xf32>
    %93 = vector.shape_cast %92 : vector<1x16x15xf32> to vector<16x15xf32>
    %94 = arith.mulf %91, %93 : vector<16x15xf32>
    %95 = vector.shape_cast %94 : vector<16x15xf32> to vector<1x16x15xf32>
    %cst_15 = arith.constant dense<0.000000e+00> : vector<1xf32>
    %96 = vector.multi_reduction <add>, %95, %cst_15 [1, 2] : vector<1x16x15xf32> to vector<1xf32>
    %97 = vector.shape_cast %96 : vector<1xf32> to vector<1x1x1xf32>
    %98 = vector.extract %97[0, 0, 0] : f32 from vector<1x1x1xf32>
    %99 = vector.broadcast %98 : f32 to vector<1x1xf32>
    %100 = vector.extract_strided_slice %10 {offsets = [2, 0, 0], sizes = [1, 16, 15], strides = [1, 1, 1]} : vector<3x16x15xf32> to vector<1x16x15xf32>
    %101 = vector.shape_cast %100 : vector<1x16x15xf32> to vector<16x15xf32>
    %102 = vector.extract_strided_slice %17 {offsets = [2, 0, 0], sizes = [1, 16, 15], strides = [1, 1, 1]} : vector<3x16x15xf32> to vector<1x16x15xf32>
    %103 = vector.shape_cast %102 : vector<1x16x15xf32> to vector<16x15xf32>
    %104 = arith.mulf %101, %103 : vector<16x15xf32>
    %105 = vector.shape_cast %104 : vector<16x15xf32> to vector<1x16x15xf32>
    %cst_16 = arith.constant dense<0.000000e+00> : vector<1xf32>
    %106 = vector.multi_reduction <add>, %105, %cst_16 [1, 2] : vector<1x16x15xf32> to vector<1xf32>
    %107 = vector.shape_cast %106 : vector<1xf32> to vector<1x1x1xf32>
    %108 = vector.extract %107[0, 0, 0] : f32 from vector<1x1x1xf32>
    %109 = vector.broadcast %108 : f32 to vector<1x1xf32>
    %110 = tpu.concatenate %89, %99, %109 in 1 : vector<1x1xf32>, vector<1x1xf32>, vector<1x1xf32> -> vector<1x3xf32>
    %111 = tpu.concatenate %48, %79, %110 in 0 : vector<1x3xf32>, vector<1x3xf32>, vector<1x3xf32> -> vector<3x3xf32>
    %c0_17 = arith.constant 0 : index
    %c0_18 = arith.constant 0 : index
    %c0_19 = arith.constant 0 : index
    %c0_20 = arith.constant 0 : index
    %112 = vector.load %arg5[%c0_17, %c0_18, %c0_19, %c0_20] : memref<1x1x3x3xf32, #tpu.memory_space<vmem>>, vector<1x1x3x3xf32>
    %113 = vector.shape_cast %112 : vector<1x1x3x3xf32> to vector<3x3xf32>
    %114 = vector.shape_cast %111 : vector<3x3xf32> to vector<1x1x3x3xf32>
    tpu.vector_store %arg5[%c0_17, %c0_18, %c0_19, %c0_20], %114 {strides = array<i32>} : memref<1x1x3x3xf32, #tpu.memory_space<vmem>>, vector<1x1x3x3xf32>,
    %115 = vector.extract_strided_slice %1 {offsets = [0, 1, 0], sizes = [3, 15, 16], strides = [1, 1, 1]} : vector<3x16x16xf32> to vector<3x15x16xf32>
    %116 = vector.extract_strided_slice %1 {offsets = [0, 0, 0], sizes = [3, 15, 16], strides = [1, 1, 1]} : vector<3x16x16xf32> to vector<3x15x16xf32>
    %117 = arith.subf %115, %116 : vector<3x15x16xf32>
    %cst_21 = arith.constant 5.000000e-01 : f32
    %118 = vector.broadcast %cst_21 : f32 to vector<3x15x16xf32>
    %119 = arith.mulf %118, %117 : vector<3x15x16xf32>
    %120 = math.tanh %119 : vector<3x15x16xf32>
    %121 = arith.mulf %120, %120 : vector<3x15x16xf32>
    %122 = vector.extract_strided_slice %3 {offsets = [0, 1, 0], sizes = [3, 15, 16], strides = [1, 1, 1]} : vector<3x16x16xf32> to vector<3x15x16xf32>
    %123 = vector.extract_strided_slice %3 {offsets = [0, 0, 0], sizes = [3, 15, 16], strides = [1, 1, 1]} : vector<3x16x16xf32> to vector<3x15x16xf32>
    %124 = arith.subf %122, %123 : vector<3x15x16xf32>
    %cst_22 = arith.constant 5.000000e-01 : f32
    %125 = vector.broadcast %cst_22 : f32 to vector<3x15x16xf32>
    %126 = arith.mulf %125, %124 : vector<3x15x16xf32>
    %127 = math.tanh %126 : vector<3x15x16xf32>
    %128 = arith.mulf %127, %127 : vector<3x15x16xf32>
    %129 = vector.extract_strided_slice %121 {offsets = [0, 0, 0], sizes = [1, 15, 16], strides = [1, 1, 1]} : vector<3x15x16xf32> to vector<1x15x16xf32>
    %130 = vector.shape_cast %129 : vector<1x15x16xf32> to vector<15x16xf32>
    %131 = vector.extract_strided_slice %128 {offsets = [0, 0, 0], sizes = [1, 15, 16], strides = [1, 1, 1]} : vector<3x15x16xf32> to vector<1x15x16xf32>
    %132 = vector.shape_cast %131 : vector<1x15x16xf32> to vector<15x16xf32>
    %133 = arith.mulf %130, %132 : vector<15x16xf32>
    %134 = vector.shape_cast %133 : vector<15x16xf32> to vector<1x15x16xf32>
    %cst_23 = arith.constant dense<0.000000e+00> : vector<1xf32>
    %135 = vector.multi_reduction <add>, %134, %cst_23 [1, 2] : vector<1x15x16xf32> to vector<1xf32>
    %136 = vector.shape_cast %135 : vector<1xf32> to vector<1x1x1xf32>
    %137 = vector.extract %136[0, 0, 0] : f32 from vector<1x1x1xf32>
    %138 = vector.broadcast %137 : f32 to vector<1x1xf32>
    %139 = vector.extract_strided_slice %121 {offsets = [0, 0, 0], sizes = [1, 15, 16], strides = [1, 1, 1]} : vector<3x15x16xf32> to vector<1x15x16xf32>
    %140 = vector.shape_cast %139 : vector<1x15x16xf32> to vector<15x16xf32>
    %141 = vector.extract_strided_slice %128 {offsets = [1, 0, 0], sizes = [1, 15, 16], strides = [1, 1, 1]} : vector<3x15x16xf32> to vector<1x15x16xf32>
    %142 = vector.shape_cast %141 : vector<1x15x16xf32> to vector<15x16xf32>
    %143 = arith.mulf %140, %142 : vector<15x16xf32>
    %144 = vector.shape_cast %143 : vector<15x16xf32> to vector<1x15x16xf32>
    %cst_24 = arith.constant dense<0.000000e+00> : vector<1xf32>
    %145 = vector.multi_reduction <add>, %144, %cst_24 [1, 2] : vector<1x15x16xf32> to vector<1xf32>
    %146 = vector.shape_cast %145 : vector<1xf32> to vector<1x1x1xf32>
    %147 = vector.extract %146[0, 0, 0] : f32 from vector<1x1x1xf32>
    %148 = vector.broadcast %147 : f32 to vector<1x1xf32>
    %149 = vector.extract_strided_slice %121 {offsets = [0, 0, 0], sizes = [1, 15, 16], strides = [1, 1, 1]} : vector<3x15x16xf32> to vector<1x15x16xf32>
    %150 = vector.shape_cast %149 : vector<1x15x16xf32> to vector<15x16xf32>
    %151 = vector.extract_strided_slice %128 {offsets = [2, 0, 0], sizes = [1, 15, 16], strides = [1, 1, 1]} : vector<3x15x16xf32> to vector<1x15x16xf32>
    %152 = vector.shape_cast %151 : vector<1x15x16xf32> to vector<15x16xf32>
    %153 = arith.mulf %150, %152 : vector<15x16xf32>
    %154 = vector.shape_cast %153 : vector<15x16xf32> to vector<1x15x16xf32>
    %cst_25 = arith.constant dense<0.000000e+00> : vector<1xf32>
    %155 = vector.multi_reduction <add>, %154, %cst_25 [1, 2] : vector<1x15x16xf32> to vector<1xf32>
    %156 = vector.shape_cast %155 : vector<1xf32> to vector<1x1x1xf32>
    %157 = vector.extract %156[0, 0, 0] : f32 from vector<1x1x1xf32>
    %158 = vector.broadcast %157 : f32 to vector<1x1xf32>
    %159 = tpu.concatenate %138, %148, %158 in 1 : vector<1x1xf32>, vector<1x1xf32>, vector<1x1xf32> -> vector<1x3xf32>
    %160 = vector.extract_strided_slice %121 {offsets = [1, 0, 0], sizes = [1, 15, 16], strides = [1, 1, 1]} : vector<3x15x16xf32> to vector<1x15x16xf32>
    %161 = vector.shape_cast %160 : vector<1x15x16xf32> to vector<15x16xf32>
    %162 = vector.extract_strided_slice %128 {offsets = [0, 0, 0], sizes = [1, 15, 16], strides = [1, 1, 1]} : vector<3x15x16xf32> to vector<1x15x16xf32>
    %163 = vector.shape_cast %162 : vector<1x15x16xf32> to vector<15x16xf32>
    %164 = arith.mulf %161, %163 : vector<15x16xf32>
    %165 = vector.shape_cast %164 : vector<15x16xf32> to vector<1x15x16xf32>
    %cst_26 = arith.constant dense<0.000000e+00> : vector<1xf32>
    %166 = vector.multi_reduction <add>, %165, %cst_26 [1, 2] : vector<1x15x16xf32> to vector<1xf32>
    %167 = vector.shape_cast %166 : vector<1xf32> to vector<1x1x1xf32>
    %168 = vector.extract %167[0, 0, 0] : f32 from vector<1x1x1xf32>
    %169 = vector.broadcast %168 : f32 to vector<1x1xf32>
    %170 = vector.extract_strided_slice %121 {offsets = [1, 0, 0], sizes = [1, 15, 16], strides = [1, 1, 1]} : vector<3x15x16xf32> to vector<1x15x16xf32>
    %171 = vector.shape_cast %170 : vector<1x15x16xf32> to vector<15x16xf32>
    %172 = vector.extract_strided_slice %128 {offsets = [1, 0, 0], sizes = [1, 15, 16], strides = [1, 1, 1]} : vector<3x15x16xf32> to vector<1x15x16xf32>
    %173 = vector.shape_cast %172 : vector<1x15x16xf32> to vector<15x16xf32>
    %174 = arith.mulf %171, %173 : vector<15x16xf32>
    %175 = vector.shape_cast %174 : vector<15x16xf32> to vector<1x15x16xf32>
    %cst_27 = arith.constant dense<0.000000e+00> : vector<1xf32>
    %176 = vector.multi_reduction <add>, %175, %cst_27 [1, 2] : vector<1x15x16xf32> to vector<1xf32>
    %177 = vector.shape_cast %176 : vector<1xf32> to vector<1x1x1xf32>
    %178 = vector.extract %177[0, 0, 0] : f32 from vector<1x1x1xf32>
    %179 = vector.broadcast %178 : f32 to vector<1x1xf32>
    %180 = vector.extract_strided_slice %121 {offsets = [1, 0, 0], sizes = [1, 15, 16], strides = [1, 1, 1]} : vector<3x15x16xf32> to vector<1x15x16xf32>
    %181 = vector.shape_cast %180 : vector<1x15x16xf32> to vector<15x16xf32>
    %182 = vector.extract_strided_slice %128 {offsets = [2, 0, 0], sizes = [1, 15, 16], strides = [1, 1, 1]} : vector<3x15x16xf32> to vector<1x15x16xf32>
    %183 = vector.shape_cast %182 : vector<1x15x16xf32> to vector<15x16xf32>
    %184 = arith.mulf %181, %183 : vector<15x16xf32>
    %185 = vector.shape_cast %184 : vector<15x16xf32> to vector<1x15x16xf32>
    %cst_28 = arith.constant dense<0.000000e+00> : vector<1xf32>
    %186 = vector.multi_reduction <add>, %185, %cst_28 [1, 2] : vector<1x15x16xf32> to vector<1xf32>
    %187 = vector.shape_cast %186 : vector<1xf32> to vector<1x1x1xf32>
    %188 = vector.extract %187[0, 0, 0] : f32 from vector<1x1x1xf32>
    %189 = vector.broadcast %188 : f32 to vector<1x1xf32>
    %190 = tpu.concatenate %169, %179, %189 in 1 : vector<1x1xf32>, vector<1x1xf32>, vector<1x1xf32> -> vector<1x3xf32>
    %191 = vector.extract_strided_slice %121 {offsets = [2, 0, 0], sizes = [1, 15, 16], strides = [1, 1, 1]} : vector<3x15x16xf32> to vector<1x15x16xf32>
    %192 = vector.shape_cast %191 : vector<1x15x16xf32> to vector<15x16xf32>
    %193 = vector.extract_strided_slice %128 {offsets = [0, 0, 0], sizes = [1, 15, 16], strides = [1, 1, 1]} : vector<3x15x16xf32> to vector<1x15x16xf32>
    %194 = vector.shape_cast %193 : vector<1x15x16xf32> to vector<15x16xf32>
    %195 = arith.mulf %192, %194 : vector<15x16xf32>
    %196 = vector.shape_cast %195 : vector<15x16xf32> to vector<1x15x16xf32>
    %cst_29 = arith.constant dense<0.000000e+00> : vector<1xf32>
    %197 = vector.multi_reduction <add>, %196, %cst_29 [1, 2] : vector<1x15x16xf32> to vector<1xf32>
    %198 = vector.shape_cast %197 : vector<1xf32> to vector<1x1x1xf32>
    %199 = vector.extract %198[0, 0, 0] : f32 from vector<1x1x1xf32>
    %200 = vector.broadcast %199 : f32 to vector<1x1xf32>
    %201 = vector.extract_strided_slice %121 {offsets = [2, 0, 0], sizes = [1, 15, 16], strides = [1, 1, 1]} : vector<3x15x16xf32> to vector<1x15x16xf32>
    %202 = vector.shape_cast %201 : vector<1x15x16xf32> to vector<15x16xf32>
    %203 = vector.extract_strided_slice %128 {offsets = [1, 0, 0], sizes = [1, 15, 16], strides = [1, 1, 1]} : vector<3x15x16xf32> to vector<1x15x16xf32>
    %204 = vector.shape_cast %203 : vector<1x15x16xf32> to vector<15x16xf32>
    %205 = arith.mulf %202, %204 : vector<15x16xf32>
    %206 = vector.shape_cast %205 : vector<15x16xf32> to vector<1x15x16xf32>
    %cst_30 = arith.constant dense<0.000000e+00> : vector<1xf32>
    %207 = vector.multi_reduction <add>, %206, %cst_30 [1, 2] : vector<1x15x16xf32> to vector<1xf32>
    %208 = vector.shape_cast %207 : vector<1xf32> to vector<1x1x1xf32>
    %209 = vector.extract %208[0, 0, 0] : f32 from vector<1x1x1xf32>
    %210 = vector.broadcast %209 : f32 to vector<1x1xf32>
    %211 = vector.extract_strided_slice %121 {offsets = [2, 0, 0], sizes = [1, 15, 16], strides = [1, 1, 1]} : vector<3x15x16xf32> to vector<1x15x16xf32>
    %212 = vector.shape_cast %211 : vector<1x15x16xf32> to vector<15x16xf32>
    %213 = vector.extract_strided_slice %128 {offsets = [2, 0, 0], sizes = [1, 15, 16], strides = [1, 1, 1]} : vector<3x15x16xf32> to vector<1x15x16xf32>
    %214 = vector.shape_cast %213 : vector<1x15x16xf32> to vector<15x16xf32>
    %215 = arith.mulf %212, %214 : vector<15x16xf32>
    %216 = vector.shape_cast %215 : vector<15x16xf32> to vector<1x15x16xf32>
    %cst_31 = arith.constant dense<0.000000e+00> : vector<1xf32>
    %217 = vector.multi_reduction <add>, %216, %cst_31 [1, 2] : vector<1x15x16xf32> to vector<1xf32>
    %218 = vector.shape_cast %217 : vector<1xf32> to vector<1x1x1xf32>
    %219 = vector.extract %218[0, 0, 0] : f32 from vector<1x1x1xf32>
    %220 = vector.broadcast %219 : f32 to vector<1x1xf32>
    %221 = tpu.concatenate %200, %210, %220 in 1 : vector<1x1xf32>, vector<1x1xf32>, vector<1x1xf32> -> vector<1x3xf32>
    %222 = tpu.concatenate %159, %190, %221 in 0 : vector<1x3xf32>, vector<1x3xf32>, vector<1x3xf32> -> vector<3x3xf32>
    %c0_32 = arith.constant 0 : index
    %c0_33 = arith.constant 0 : index
    %c0_34 = arith.constant 0 : index
    %c0_35 = arith.constant 0 : index
    %223 = vector.load %arg4[%c0_32, %c0_33, %c0_34, %c0_35] : memref<1x1x3x3xf32, #tpu.memory_space<vmem>>, vector<1x1x3x3xf32>
    %224 = vector.shape_cast %223 : vector<1x1x3x3xf32> to vector<3x3xf32>
    %225 = vector.shape_cast %222 : vector<3x3xf32> to vector<1x1x3x3xf32>
    tpu.vector_store %arg4[%c0_32, %c0_33, %c0_34, %c0_35], %225 {strides = array<i32>} : memref<1x1x3x3xf32, #tpu.memory_space<vmem>>, vector<1x1x3x3xf32>,
    return
  }
  func.func @transform_0(%arg0: i32, %arg1: i32) -> (i32, i32, i32, i32) {
    %c0_i32 = arith.constant 0 : i32
    %c0_i32_0 = arith.constant 0 : i32
    %c0_i32_1 = arith.constant 0 : i32
    return %arg0, %c0_i32, %arg1, %c0_i32_0 : i32, i32, i32, i32
  }
  func.func @transform_1(%arg0: i32, %arg1: i32) -> (i32, i32, i32, i32) {
    %c0_i32 = arith.constant 0 : i32
    %c0_i32_0 = arith.constant 0 : i32
    %c0_i32_1 = arith.constant 0 : i32
    return %arg0, %c0_i32, %arg1, %c0_i32_0 : i32, i32, i32, i32
  }
  func.func @transform_2(%arg0: i32, %arg1: i32) -> (i32, i32, i32, i32) {
    %c0_i32 = arith.constant 0 : i32
    %c0_i32_0 = arith.constant 0 : i32
    %c0_i32_1 = arith.constant 0 : i32
    return %arg0, %arg1, %c0_i32, %c0_i32_0 : i32, i32, i32, i32
  }
  func.func @transform_3(%arg0: i32, %arg1: i32) -> (i32, i32, i32, i32) {
    %c0_i32 = arith.constant 0 : i32
    %c0_i32_0 = arith.constant 0 : i32
    %c0_i32_1 = arith.constant 0 : i32
    return %arg0, %arg1, %c0_i32, %c0_i32_0 : i32, i32, i32, i32
  }
}

</mosaic_0001>

<llo_original>
// kernel: exclusion_loss.5
$region0: #{exclusion_loss.5}
  #allocation0 [shape = 'u32[]', space=smem, size = 0x4, offset = 0x4, fixed_abs, tag = 'smem constant byte address 0x4 - core index']
  #allocation1 [shape = 'u32[144,128]{1,0:T(1,128)}', space=vmem, size = 0x12000, scoped, tag = 'internal scratch']
  %s0 = inlined_call_operand.vmem [shape: f32[2,3,4,4], index: 0, kind: input, shape index: {}]
  %s1 = inlined_call_operand.vmem [shape: f32[2,3,4,4], index: 1, kind: input, shape index: {}]
  %s2 = inlined_call_operand.vmem [shape: f32[2,1,3,3], index: 2, kind: output, shape index: {0}]
  %s3 = inlined_call_operand.vmem [shape: f32[2,1,3,3], index: 3, kind: output, shape index: {1}]
  %4 = xla_tuple %s2, %s3
  %s5 = sld [smem:[#allocation0]]
  $region49: #{exclusion_loss.5} parent=0
    _
  %s7 = ssub.s32 1, %s5
  %s8 = scalar_select 0, %s7, %s5
  loop: start=0, step=1, limit=4
  $region2: #{exclusion_loss.5} parent=0 // loop_pre_header
    _
  $region3: #{exclusion_loss.5} parent=0 // loop_header
    %s10 = sphi 0, %s14
    %p11 = scmp.ge.s32.totalorder %s10, 4
    %s17 = sphi 0, %s29
    %s18 = sphi 0, %s25
    %s19 = sphi 0, %s17
    %s20 = sphi 0, %s18
    %s21 = sphi 0, %s19
    %s22 = sphi 0, %s20
    %s34 = sphi 0, %s36
    %s37 = sphi 0, %s34
    %s38 = sphi 0, %s37
    %s54 = sphi 0, %s38
    %s62 = sphi 0, %s64
    %s65 = sphi 0, %s62
    %s66 = sphi 0, %s65
    %s82 = sphi 0, %s66
    %s90 = sphi 0, %s92
    %s93 = sphi 0, %s90
    %s94 = sphi 0, %s93
    %s110 = sphi 0, %s94
    %s118 = sphi 0, %s120
    %s121 = sphi 0, %s118
    %s122 = sphi 0, %s121
    %s138 = sphi 0, %s122
  $region4: #{exclusion_loss.5} parent=0 // loop_header_branch
    %13 = sbr.rel (%p11) target = $region8
  $region5: #{exclusion_loss.5} parent=0 // loop_body
    %s15 = ssub.s32 %s10, 1
    %s16 = ssub.s32 %s10, 2
    %s23 = sadd.s32 1, %s18
    %p24 = scmp.ge.s32.totalorder %s23, 1
    %s25 = scalar_select %p24, 0, %s23
    %s26 = sadd.s32 1, %s17
    %s27 = scalar_select %p24, %s26, %s17
    %p28 = scmp.ge.s32.totalorder %s27, 2
    %s29 = scalar_select %p28, 0, %s27
    %s30 = ssub.s32 %s17, %s29
    %s31 = ssub.s32 %s18, %s25
    %s32 = sor.u32 %s30, %s31
    %p33 = scmp.eq.s32.totalorder %s32, 0
    %s35 = sadd.s32 %s34, 1
    %s36 = scalar_select %p33, %s34, %s35
    %p39 = pneg %p33
    %p40 = scmp.eq.s32.totalorder %s10, 1
    %p41 = por %p39, %p40
    %p42 = scmp.ne.s32.totalorder %s34, %s37
    %p43 = scmp.eq.s32.totalorder %s10, 0
    %p44 = por %p42, %p43
    %p45 = scmp.ne.s32.totalorder %s34, %s37
    %p46 = scmp.eq.s32.totalorder %s15, 1
    %p47 = por %p45, %p46
    %p48 = scmp.ne.s32.totalorder %s37, %s38
    %p49 = scmp.eq.s32.totalorder %s15, 0
    %p50 = por %p48, %p49
    %p51 = scmp.ne.s32.totalorder %s37, %s38
    %p52 = scmp.eq.s32.totalorder %s16, 1
    %p53 = por %p51, %p52
    %p55 = scmp.ne.s32.totalorder %s38, %s54
    %p56 = scmp.eq.s32.totalorder %s16, 0
    %p57 = por %p55, %p56
    %s58 = ssub.s32 %s17, %s29
    %s59 = ssub.s32 %s18, %s25
    %s60 = sor.u32 %s58, %s59
    %p61 = scmp.eq.s32.totalorder %s60, 0
    %s63 = sadd.s32 %s62, 1
    %s64 = scalar_select %p61, %s62, %s63
    %p67 = pneg %p61
    %p68 = scmp.eq.s32.totalorder %s10, 1
    %p69 = por %p67, %p68
    %p70 = scmp.ne.s32.totalorder %s62, %s65
    %p71 = scmp.eq.s32.totalorder %s10, 0
    %p72 = por %p70, %p71
    %p73 = scmp.ne.s32.totalorder %s62, %s65
    %p74 = scmp.eq.s32.totalorder %s15, 1
    %p75 = por %p73, %p74
    %p76 = scmp.ne.s32.totalorder %s65, %s66
    %p77 = scmp.eq.s32.totalorder %s15, 0
    %p78 = por %p76, %p77
    %p79 = scmp.ne.s32.totalorder %s65, %s66
    %p80 = scmp.eq.s32.totalorder %s16, 1
    %p81 = por %p79, %p80
    %p83 = scmp.ne.s32.totalorder %s66, %s82
    %p84 = scmp.eq.s32.totalorder %s16, 0
    %p85 = por %p83, %p84
    %s86 = ssub.s32 %s17, %s29
    %s87 = ssub.s32 %s18, %s25
    %s88 = sor.u32 %s86, %s87
    %p89 = scmp.eq.s32.totalorder %s88, 0
    %s91 = sadd.s32 %s90, 1
    %s92 = scalar_select %p89, %s90, %s91
    %p95 = pneg %p89
    %p96 = scmp.eq.s32.totalorder %s10, 1
    %p97 = por %p95, %p96
    %p98 = scmp.ne.s32.totalorder %s90, %s93
    %p99 = scmp.eq.s32.totalorder %s10, 0
    %p100 = por %p98, %p99
    %p101 = scmp.ne.s32.totalorder %s90, %s93
    %p102 = scmp.eq.s32.totalorder %s15, 1
    %p103 = por %p101, %p102
    %p104 = scmp.ne.s32.totalorder %s93, %s94
    %p105 = scmp.eq.s32.totalorder %s15, 0
    %p106 = por %p104, %p105
    %p107 = scmp.ne.s32.totalorder %s93, %s94
    %p108 = scmp.eq.s32.totalorder %s16, 1
    %p109 = por %p107, %p108
    %p111 = scmp.ne.s32.totalorder %s94, %s110
    %p112 = scmp.eq.s32.totalorder %s16, 0
    %p113 = por %p111, %p112
    %s114 = ssub.s32 %s17, %s29
    %s115 = ssub.s32 %s18, %s25
    %s116 = sor.u32 %s114, %s115
    %p117 = scmp.eq.s32.totalorder %s116, 0
    %s119 = sadd.s32 %s118, 1
    %s120 = scalar_select %p117, %s118, %s119
    %p123 = pneg %p117
    %p124 = scmp.eq.s32.totalorder %s10, 1
    %p125 = por %p123, %p124
    %p126 = scmp.ne.s32.totalorder %s118, %s121
    %p127 = scmp.eq.s32.totalorder %s10, 0
    %p128 = por %p126, %p127
    %p129 = scmp.ne.s32.totalorder %s118, %s121
    %p130 = scmp.eq.s32.totalorder %s15, 1
    %p131 = por %p129, %p130
    %p132 = scmp.ne.s32.totalorder %s121, %s122
    %p133 = scmp.eq.s32.totalorder %s15, 0
    %p134 = por %p132, %p133
    %p135 = scmp.ne.s32.totalorder %s121, %s122
    %p136 = scmp.eq.s32.totalorder %s16, 1
    %p137 = por %p135, %p136
    %p139 = scmp.ne.s32.totalorder %s122, %s138
    %p140 = scmp.eq.s32.totalorder %s16, 0
    %p141 = por %p139, %p140
    %p142 = scmp.le.s32.totalorder 1, %s10
    %p143 = scmp.lt.s32.totalorder %s10, 3
    %p144 = pnand %p142, %p143
    %p145 = pneg %p144
    // Predicated region
    $region9: #{exclusion_loss.5} parent=5 // pred_check
      _
    $region10: #{exclusion_loss.5} parent=5 // pred_check_branch
      %147 = sbr.rel (%p144) target = $region12
    $region11: #{exclusion_loss.5} parent=5 // pred_region
      %s148 = ssub.s32 %s10, 1
    $region12: #{exclusion_loss.5} parent=5 // pred_fallthru
      _
    %p149 = scmp.lt.s32.totalorder %s10, 2
    // Predicated region
    $region13: #{exclusion_loss.5} parent=5 // pred_check
      %p150 = pneg %p149
    $region14: #{exclusion_loss.5} parent=5 // pred_check_branch
      %152 = sbr.rel (%p150) target = $region16
    $region15: #{exclusion_loss.5} parent=5 // pred_region
      // Predicated region
      $region17: #{exclusion_loss.5} parent=15 // pred_check
        %p153 = pneg %p44
      $region18: #{exclusion_loss.5} parent=15 // pred_check_branch
        %155 = sbr.rel (%p153) target = $region20
      $region19: #{exclusion_loss.5} parent=15 // pred_region
        %p156 = scmp.lt.s32.totalorder %s17, 1
        %s157 = scalar_select %p156, %s17, 1
        %p158 = scmp.lt.s32.totalorder %s18, 0
        %s159 = scalar_select %p158, %s18, 0
        %s160 = smul.addr %s157, 3
        %s161 = sadd.s32 %s159, %s160
        %s162 = smul.addr %s161, 4
        %s163 = scalar_lea.vmem %s0, %s162
      $region20: #{exclusion_loss.5} parent=15 // pred_fallthru
        _
      // Predicated region
      $region21: #{exclusion_loss.5} parent=15 // pred_check
        %p164 = pneg %p72
      $region22: #{exclusion_loss.5} parent=15 // pred_check_branch
        %166 = sbr.rel (%p164) target = $region24
      $region23: #{exclusion_loss.5} parent=15 // pred_region
        %p167 = scmp.lt.s32.totalorder %s17, 1
        %s168 = scalar_select %p167, %s17, 1
        %p169 = scmp.lt.s32.totalorder %s18, 0
        %s170 = scalar_select %p169, %s18, 0
        %s171 = smul.addr %s168, 3
        %s172 = sadd.s32 %s170, %s171
        %s173 = smul.addr %s172, 4
        %s174 = scalar_lea.vmem %s1, %s173
      $region24: #{exclusion_loss.5} parent=15 // pred_fallthru
        _
    $region16: #{exclusion_loss.5} parent=5 // pred_fallthru
      _
    %p175 = scmp.le.s32.totalorder 1, %s10
    %p176 = scmp.lt.s32.totalorder %s10, 3
    %p177 = pnand %p175, %p176
    %p178 = pneg %p177
    // Predicated region
    $region25: #{exclusion_loss.5} parent=5 // pred_check
      _
    $region26: #{exclusion_loss.5} parent=5 // pred_check_branch
      %180 = sbr.rel (%p177) target = $region28
    $region27: #{exclusion_loss.5} parent=5 // pred_region
      %s181 = ssub.s32 %s10, 1
      %p182 = scmp.lt.s32.totalorder %s19, 1
      %s183 = scalar_select %p182, %s19, 1
      %p184 = scmp.lt.s32.totalorder %s20, 0
      %s185 = scalar_select %p184, %s20, 0
      %s186 = smul.addr %s183, 3
      %s187 = sadd.s32 %s185, %s186
      %s188 = smul.addr %s187, 4
      %s189 = scalar_lea.vmem %s0, %s188
      %p190 = pneg %p50
      %p191 = pneg %p47
      %p192 = scmp.lt.s32.totalorder %s19, 1
      %s193 = scalar_select %p192, %s19, 1
      %p194 = scmp.lt.s32.totalorder %s20, 0
      %s195 = scalar_select %p194, %s20, 0
      %s196 = smul.addr %s193, 3
      %s197 = sadd.s32 %s195, %s196
      %s198 = smul.addr %s197, 4
      %s199 = scalar_lea.vmem %s1, %s198
      %p200 = pneg %p78
      %p201 = pneg %p75
      %p202 = pneg %p106
      %p203 = pneg %p103
      %p204 = scmp.lt.s32.totalorder %s19, 1
      %s205 = scalar_select %p204, %s19, 1
      %p206 = scmp.lt.s32.totalorder %s20, 0
      %s207 = scalar_select %p206, %s20, 0
      %s208 = sadd.s32 %s207, %s205
      %s209 = smul.addr %s208, 4
      %s210 = scalar_lea.vmem %s2, %s209
      %p211 = pneg %p134
      %p212 = pneg %p131
      %p213 = scmp.lt.s32.totalorder %s19, 1
      %s214 = scalar_select %p213, %s19, 1
      %p215 = scmp.lt.s32.totalorder %s20, 0
      %s216 = scalar_select %p215, %s20, 0
      %s217 = sadd.s32 %s216, %s214
      %s218 = smul.addr %s217, 4
      %s219 = scalar_lea.vmem %s3, %s218
      %p220 = scmp.lt.s32.totalorder %s19, 1
      %s221 = scalar_select %p220, %s19, 1
      %p222 = scmp.lt.s32.totalorder %s20, 0
      %s223 = scalar_select %p222, %s20, 0
      %s224 = smul.addr %s221, 3
      %s225 = sadd.s32 %s223, %s224
      %s226 = smul.addr %s225, 4
      %s227 = scalar_lea.vmem %s0, %s226
      %p228 = scmp.lt.s32.totalorder %s19, 1
      %s229 = scalar_select %p228, %s19, 1
      %p230 = scmp.lt.s32.totalorder %s20, 0
      %s231 = scalar_select %p230, %s20, 0
      %s232 = smul.addr %s229, 3
      %s233 = sadd.s32 %s231, %s232
      %s234 = smul.addr %s233, 4
      %s235 = scalar_lea.vmem %s1, %s234
      %p236 = scmp.lt.s32.totalorder %s19, 1
      %s237 = scalar_select %p236, %s19, 1
      %p238 = scmp.lt.s32.totalorder %s20, 0
      %s239 = scalar_select %p238, %s20, 0
      %s240 = sadd.s32 %s239, %s237
      %s241 = smul.addr %s240, 4
      %s242 = scalar_lea.vmem %s2, %s241
      %p243 = scmp.lt.s32.totalorder %s19, 1
      %s244 = scalar_select %p243, %s19, 1
      %p245 = scmp.lt.s32.totalorder %s20, 0
      %s246 = scalar_select %p245, %s20, 0
      %s247 = sadd.s32 %s246, %s244
      %s248 = smul.addr %s247, 4
      %s249 = scalar_lea.vmem %s3, %s248
      %v250 = vld [vmem:[%s227] sm:$0xf]
      %v251 = vld [vmem:[%s227 + $0x4] sm:$0xf]
      %v252 = vld [vmem:[%s227 + $0x8] sm:$0xf]
      %v253 = vld [vmem:[%s235] sm:$0xf]
      %v254 = vld [vmem:[%s235 + $0x4] sm:$0xf]
      %v255 = vld [vmem:[%s235 + $0x8] sm:$0xf]
      %259 = vrot.lane.b32.xlu0 %v250, 1
      %v260 = vpop.permute.xlu0 %259
      %261 = vrot.lane.b32.xlu0 %v251, 1
      %v262 = vpop.permute.xlu0 %261
      %263 = vrot.lane.b32.xlu0 %v252, 1
      %v264 = vpop.permute.xlu0 %263
      %v268 = vsub.f32 %v250, %v260
      %v269 = vsub.f32 %v251, %v262
      %v270 = vsub.f32 %v252, %v264
      %v271 = vmul.f32 %v268, 0.5
      %v272 = vmul.f32 %v269, 0.5
      %v273 = vmul.f32 %v270, 0.5
      %v274 = vtanh.pop %v271
      %v275 = vtanh.pop %v272
      %v276 = vtanh.pop %v273
      %v277 = vmul.f32 %v274, %v274
      %v278 = vmul.f32 %v275, %v275
      %v279 = vmul.f32 %v276, %v276
      %283 = vrot.lane.b32.xlu0 %v253, 1
      %v284 = vpop.permute.xlu0 %283
      %285 = vrot.lane.b32.xlu0 %v254, 1
      %v286 = vpop.permute.xlu0 %285
      %287 = vrot.lane.b32.xlu0 %v255, 1
      %v288 = vpop.permute.xlu0 %287
      %v292 = vsub.f32 %v253, %v284
      %v293 = vsub.f32 %v254, %v286
      %v294 = vsub.f32 %v255, %v288
      %v295 = vmul.f32 %v292, 0.5
      %v296 = vmul.f32 %v293, 0.5
      %v297 = vmul.f32 %v294, 0.5
      %v298 = vtanh.pop %v295
      %v299 = vtanh.pop %v296
      %v300 = vtanh.pop %v297
      %v301 = vmul.f32 %v298, %v298
      %v302 = vmul.f32 %v299, %v299
      %v303 = vmul.f32 %v300, %v300
      %v304 = vmul.f32 %v277, %v301
      %306 = vrot.lane.b32.xlu0 %v304, 127
      %v307 = vpop.permute.xlu0 %306
      %vm309 = vcmask 19456
      %v310 = vsel %vm309, %v307, 0.0
      %311 = vadd.xlane.f32.xlu0 %v310
      %v312 = vpop.xlane.xlu0 %311
      %v313 = vrot.slane %v312, 4
      %v314 = vadd.f32 %v312, %v313
      %v315 = vrot.slane %v314, 2
      %v316 = vadd.f32 %v314, %v315
      %v317 = vrot.slane %v316, 1
      %v318 = vadd.f32 %v316, %v317
      %s319 = vtos %v318
      %v320 = vstv %s319
      %v321 = vmul.f32 %v277, %v302
      %323 = vrot.lane.b32.xlu0 %v321, 127
      %v324 = vpop.permute.xlu0 %323
      %v326 = vsel %vm309, %v324, 0.0
      %327 = vadd.xlane.f32.xlu0 %v326
      %v328 = vpop.xlane.xlu0 %327
      %v329 = vrot.slane %v328, 4
      %v330 = vadd.f32 %v328, %v329
      %v331 = vrot.slane %v330, 2
      %v332 = vadd.f32 %v330, %v331
      %v333 = vrot.slane %v332, 1
      %v334 = vadd.f32 %v332, %v333
      %s335 = vtos %v334
      %v336 = vstv %s335
      %v337 = vmul.f32 %v277, %v303
      %339 = vrot.lane.b32.xlu0 %v337, 127
      %v340 = vpop.permute.xlu0 %339
      %v342 = vsel %vm309, %v340, 0.0
      %343 = vadd.xlane.f32.xlu0 %v342
      %v344 = vpop.xlane.xlu0 %343
      %v345 = vrot.slane %v344, 4
      %v346 = vadd.f32 %v344, %v345
      %v347 = vrot.slane %v346, 2
      %v348 = vadd.f32 %v346, %v347
      %v349 = vrot.slane %v348, 1
      %v350 = vadd.f32 %v348, %v349
      %s351 = vtos %v350
      %v352 = vstv %s351
      %vm353 = vcmask 7168
      %v354 = vsel %vm353, %v320, %v336
      %vm355 = vcmask 15360
      %v356 = vsel %vm355, %v354, %v352
      %v357 = vmul.f32 %v278, %v301
      %359 = vrot.lane.b32.xlu0 %v357, 127
      %v360 = vpop.permute.xlu0 %359
      %v362 = vsel %vm309, %v360, 0.0
      %363 = vadd.xlane.f32.xlu0 %v362
      %v364 = vpop.xlane.xlu0 %363
      %v365 = vrot.slane %v364, 4
      %v366 = vadd.f32 %v364, %v365
      %v367 = vrot.slane %v366, 2
      %v368 = vadd.f32 %v366, %v367
      %v369 = vrot.slane %v368, 1
      %v370 = vadd.f32 %v368, %v369
      %s371 = vtos %v370
      %v372 = vstv %s371
      %v373 = vmul.f32 %v278, %v302
      %375 = vrot.lane.b32.xlu0 %v373, 127
      %v376 = vpop.permute.xlu0 %375
      %v378 = vsel %vm309, %v376, 0.0
      %379 = vadd.xlane.f32.xlu0 %v378
      %v380 = vpop.xlane.xlu0 %379
      %v381 = vrot.slane %v380, 4
      %v382 = vadd.f32 %v380, %v381
      %v383 = vrot.slane %v382, 2
      %v384 = vadd.f32 %v382, %v383
      %v385 = vrot.slane %v384, 1
      %v386 = vadd.f32 %v384, %v385
      %s387 = vtos %v386
      %v388 = vstv %s387
      %v389 = vmul.f32 %v278, %v303
      %391 = vrot.lane.b32.xlu0 %v389, 127
      %v392 = vpop.permute.xlu0 %391
      %v394 = vsel %vm309, %v392, 0.0
      %395 = vadd.xlane.f32.xlu0 %v394
      %v396 = vpop.xlane.xlu0 %395
      %v397 = vrot.slane %v396, 4
      %v398 = vadd.f32 %v396, %v397
      %v399 = vrot.slane %v398, 2
      %v400 = vadd.f32 %v398, %v399
      %v401 = vrot.slane %v400, 1
      %v402 = vadd.f32 %v400, %v401
      %s403 = vtos %v402
      %v404 = vstv %s403
      %v405 = vsel %vm353, %v372, %v388
      %v406 = vsel %vm355, %v405, %v404
      %v407 = vmul.f32 %v279, %v301
      %409 = vrot.lane.b32.xlu0 %v407, 127
      %v410 = vpop.permute.xlu0 %409
      %v412 = vsel %vm309, %v410, 0.0
      %413 = vadd.xlane.f32.xlu0 %v412
      %v414 = vpop.xlane.xlu0 %413
      %v415 = vrot.slane %v414, 4
      %v416 = vadd.f32 %v414, %v415
      %v417 = vrot.slane %v416, 2
      %v418 = vadd.f32 %v416, %v417
      %v419 = vrot.slane %v418, 1
      %v420 = vadd.f32 %v418, %v419
      %s421 = vtos %v420
      %v422 = vstv %s421
      %v423 = vmul.f32 %v279, %v302
      %425 = vrot.lane.b32.xlu0 %v423, 127
      %v426 = vpop.permute.xlu0 %425
      %v428 = vsel %vm309, %v426, 0.0
      %429 = vadd.xlane.f32.xlu0 %v428
      %v430 = vpop.xlane.xlu0 %429
      %v431 = vrot.slane %v430, 4
      %v432 = vadd.f32 %v430, %v431
      %v433 = vrot.slane %v432, 2
      %v434 = vadd.f32 %v432, %v433
      %v435 = vrot.slane %v434, 1
      %v436 = vadd.f32 %v434, %v435
      %s437 = vtos %v436
      %v438 = vstv %s437
      %v439 = vmul.f32 %v279, %v303
      %441 = vrot.lane.b32.xlu0 %v439, 127
      %v442 = vpop.permute.xlu0 %441
      %v444 = vsel %vm309, %v442, 0.0
      %445 = vadd.xlane.f32.xlu0 %v444
      %v446 = vpop.xlane.xlu0 %445
      %v447 = vrot.slane %v446, 4
      %v448 = vadd.f32 %v446, %v447
      %v449 = vrot.slane %v448, 2
      %v450 = vadd.f32 %v448, %v449
      %v451 = vrot.slane %v450, 1
      %v452 = vadd.f32 %v450, %v451
      %s453 = vtos %v452
      %v454 = vstv %s453
      %v455 = vsel %vm353, %v422, %v438
      %v456 = vsel %vm355, %v455, %v454
      %v458 = vrot.slane %v406, 7
      %v461 = vrot.slane %v456, 6
      %vm463 = vcmask 1040384
      %v464 = vsel %vm463, %v356, %v458
      %vm465 = vcmask 1041408
      %v466 = vsel %vm465, %v464, %v461
      %vm467 = vcmask 18432
      %468 = vst.msk [vmem:[%s249] sm:$0x7] %vm467, %v466
      %v469 = vrot.slane %v250, 7
      %v470 = vrot.slane %v251, 7
      %v471 = vrot.slane %v252, 7
      %v475 = vsub.f32 %v250, %v469
      %v476 = vsub.f32 %v251, %v470
      %v477 = vsub.f32 %v252, %v471
      %v478 = vmul.f32 %v475, 0.5
      %v479 = vmul.f32 %v476, 0.5
      %v480 = vmul.f32 %v477, 0.5
      %v481 = vtanh.pop %v478
      %v482 = vtanh.pop %v479
      %v483 = vtanh.pop %v480
      %v484 = vmul.f32 %v481, %v481
      %v485 = vmul.f32 %v482, %v482
      %v486 = vmul.f32 %v483, %v483
      %v487 = vrot.slane %v253, 7
      %v488 = vrot.slane %v254, 7
      %v489 = vrot.slane %v255, 7
      %v493 = vsub.f32 %v253, %v487
      %v494 = vsub.f32 %v254, %v488
      %v495 = vsub.f32 %v255, %v489
      %v496 = vmul.f32 %v493, 0.5
      %v497 = vmul.f32 %v494, 0.5
      %v498 = vmul.f32 %v495, 0.5
      %v499 = vtanh.pop %v496
      %v500 = vtanh.pop %v497
      %v501 = vtanh.pop %v498
      %v502 = vmul.f32 %v499, %v499
      %v503 = vmul.f32 %v500, %v500
      %v504 = vmul.f32 %v501, %v501
      %v505 = vmul.f32 %v484, %v502
      %v507 = vrot.slane %v505, 1
      %vm509 = vcmask 26624
      %v510 = vsel %vm509, %v507, 0.0
      %511 = vadd.xlane.f32.xlu0 %v510
      %v512 = vpop.xlane.xlu0 %511
      %v513 = vrot.slane %v512, 4
      %v514 = vadd.f32 %v512, %v513
      %v515 = vrot.slane %v514, 2
      %v516 = vadd.f32 %v514, %v515
      %v517 = vrot.slane %v516, 1
      %v518 = vadd.f32 %v516, %v517
      %s519 = vtos %v518
      %v520 = vstv %s519
      %v521 = vmul.f32 %v484, %v503
      %v523 = vrot.slane %v521, 1
      %v525 = vsel %vm509, %v523, 0.0
      %526 = vadd.xlane.f32.xlu0 %v525
      %v527 = vpop.xlane.xlu0 %526
      %v528 = vrot.slane %v527, 4
      %v529 = vadd.f32 %v527, %v528
      %v530 = vrot.slane %v529, 2
      %v531 = vadd.f32 %v529, %v530
      %v532 = vrot.slane %v531, 1
      %v533 = vadd.f32 %v531, %v532
      %s534 = vtos %v533
      %v535 = vstv %s534
      %v536 = vmul.f32 %v484, %v504
      %v538 = vrot.slane %v536, 1
      %v540 = vsel %vm509, %v538, 0.0
      %541 = vadd.xlane.f32.xlu0 %v540
      %v542 = vpop.xlane.xlu0 %541
      %v543 = vrot.slane %v542, 4
      %v544 = vadd.f32 %v542, %v543
      %v545 = vrot.slane %v544, 2
      %v546 = vadd.f32 %v544, %v545
      %v547 = vrot.slane %v546, 1
      %v548 = vadd.f32 %v546, %v547
      %s549 = vtos %v548
      %v550 = vstv %s549
      %v551 = vsel %vm353, %v520, %v535
      %v552 = vsel %vm355, %v551, %v550
      %v553 = vmul.f32 %v485, %v502
      %v555 = vrot.slane %v553, 1
      %v557 = vsel %vm509, %v555, 0.0
      %558 = vadd.xlane.f32.xlu0 %v557
      %v559 = vpop.xlane.xlu0 %558
      %v560 = vrot.slane %v559, 4
      %v561 = vadd.f32 %v559, %v560
      %v562 = vrot.slane %v561, 2
      %v563 = vadd.f32 %v561, %v562
      %v564 = vrot.slane %v563, 1
      %v565 = vadd.f32 %v563, %v564
      %s566 = vtos %v565
      %v567 = vstv %s566
      %v568 = vmul.f32 %v485, %v503
      %v570 = vrot.slane %v568, 1
      %v572 = vsel %vm509, %v570, 0.0
      %573 = vadd.xlane.f32.xlu0 %v572
      %v574 = vpop.xlane.xlu0 %573
      %v575 = vrot.slane %v574, 4
      %v576 = vadd.f32 %v574, %v575
      %v577 = vrot.slane %v576, 2
      %v578 = vadd.f32 %v576, %v577
      %v579 = vrot.slane %v578, 1
      %v580 = vadd.f32 %v578, %v579
      %s581 = vtos %v580
      %v582 = vstv %s581
      %v583 = vmul.f32 %v485, %v504
      %v585 = vrot.slane %v583, 1
      %v587 = vsel %vm509, %v585, 0.0
      %588 = vadd.xlane.f32.xlu0 %v587
      %v589 = vpop.xlane.xlu0 %588
      %v590 = vrot.slane %v589, 4
      %v591 = vadd.f32 %v589, %v590
      %v592 = vrot.slane %v591, 2
      %v593 = vadd.f32 %v591, %v592
      %v594 = vrot.slane %v593, 1
      %v595 = vadd.f32 %v593, %v594
      %s596 = vtos %v595
      %v597 = vstv %s596
      %v598 = vsel %vm353, %v567, %v582
      %v599 = vsel %vm355, %v598, %v597
      %v600 = vmul.f32 %v486, %v502
      %v602 = vrot.slane %v600, 1
      %v604 = vsel %vm509, %v602, 0.0
      %605 = vadd.xlane.f32.xlu0 %v604
      %v606 = vpop.xlane.xlu0 %605
      %v607 = vrot.slane %v606, 4
      %v608 = vadd.f32 %v606, %v607
      %v609 = vrot.slane %v608, 2
      %v610 = vadd.f32 %v608, %v609
      %v611 = vrot.slane %v610, 1
      %v612 = vadd.f32 %v610, %v611
      %s613 = vtos %v612
      %v614 = vstv %s613
      %v615 = vmul.f32 %v486, %v503
      %v617 = vrot.slane %v615, 1
      %v619 = vsel %vm509, %v617, 0.0
      %620 = vadd.xlane.f32.xlu0 %v619
      %v621 = vpop.xlane.xlu0 %620
      %v622 = vrot.slane %v621, 4
      %v623 = vadd.f32 %v621, %v622
      %v624 = vrot.slane %v623, 2
      %v625 = vadd.f32 %v623, %v624
      %v626 = vrot.slane %v625, 1
      %v627 = vadd.f32 %v625, %v626
      %s628 = vtos %v627
      %v629 = vstv %s628
      %v630 = vmul.f32 %v486, %v504
      %v632 = vrot.slane %v630, 1
      %v634 = vsel %vm509, %v632, 0.0
      %635 = vadd.xlane.f32.xlu0 %v634
      %v636 = vpop.xlane.xlu0 %635
      %v637 = vrot.slane %v636, 4
      %v638 = vadd.f32 %v636, %v637
      %v639 = vrot.slane %v638, 2
      %v640 = vadd.f32 %v638, %v639
      %v641 = vrot.slane %v640, 1
      %v642 = vadd.f32 %v640, %v641
      %s643 = vtos %v642
      %v644 = vstv %s643
      %v645 = vsel %vm353, %v614, %v629
      %v646 = vsel %vm355, %v645, %v644
      %v648 = vrot.slane %v599, 7
      %v651 = vrot.slane %v646, 6
      %v653 = vsel %vm463, %v552, %v648
      %v654 = vsel %vm465, %v653, %v651
      %655 = vst.msk [vmem:[%s242] sm:$0x7] %vm467, %v654
      %p656 = scmp.lt.s32.totalorder %s19, 1
      %s657 = scalar_select %p656, %s19, 1
      %p658 = scmp.lt.s32.totalorder %s20, 0
      %s659 = scalar_select %p658, %s20, 0
      %s660 = sadd.s32 %s659, %s657
      %s661 = smul.addr %s660, 4
      %s662 = scalar_lea.vmem %s2, %s661
      %p663 = scmp.lt.s32.totalorder %s19, 1
      %s664 = scalar_select %p663, %s19, 1
      %p665 = scmp.lt.s32.totalorder %s20, 0
      %s666 = scalar_select %p665, %s20, 0
      %s667 = sadd.s32 %s666, %s664
      %s668 = smul.addr %s667, 4
      %s669 = scalar_lea.vmem %s3, %s668
      // Predicated region
      $region29: #{exclusion_loss.5} parent=27 // pred_check
        %p670 = pneg %p103
      $region30: #{exclusion_loss.5} parent=27 // pred_check_branch
        %672 = sbr.rel (%p670) target = $region32
      $region31: #{exclusion_loss.5} parent=27 // pred_region
        _
      $region32: #{exclusion_loss.5} parent=27 // pred_fallthru
        _
      // Predicated region
      $region33: #{exclusion_loss.5} parent=27 // pred_check
        %p673 = pneg %p131
      $region34: #{exclusion_loss.5} parent=27 // pred_check_branch
        %675 = sbr.rel (%p673) target = $region36
      $region35: #{exclusion_loss.5} parent=27 // pred_region
        _
      $region36: #{exclusion_loss.5} parent=27 // pred_fallthru
        _
    $region28: #{exclusion_loss.5} parent=5 // pred_fallthru
      _
    %p676 = scmp.le.s32.totalorder 2, %s10
    // Predicated region
    $region37: #{exclusion_loss.5} parent=5 // pred_check
      %p677 = pneg %p676
    $region38: #{exclusion_loss.5} parent=5 // pred_check_branch
      %679 = sbr.rel (%p677) target = $region40
    $region39: #{exclusion_loss.5} parent=5 // pred_region
      %s680 = ssub.s32 %s10, 2
      // Predicated region
      $region41: #{exclusion_loss.5} parent=39 // pred_check
        %p681 = pneg %p109
      $region42: #{exclusion_loss.5} parent=39 // pred_check_branch
        %683 = sbr.rel (%p681) target = $region44
      $region43: #{exclusion_loss.5} parent=39 // pred_region
        %p684 = scmp.lt.s32.totalorder %s21, 1
        %s685 = scalar_select %p684, %s21, 1
        %p686 = scmp.lt.s32.totalorder %s22, 0
        %s687 = scalar_select %p686, %s22, 0
        %s688 = sadd.s32 %s687, %s685
        %s689 = smul.addr %s688, 4
        %s690 = scalar_lea.vmem %s2, %s689
      $region44: #{exclusion_loss.5} parent=39 // pred_fallthru
        _
      // Predicated region
      $region45: #{exclusion_loss.5} parent=39 // pred_check
        %p691 = pneg %p137
      $region46: #{exclusion_loss.5} parent=39 // pred_check_branch
        %693 = sbr.rel (%p691) target = $region48
      $region47: #{exclusion_loss.5} parent=39 // pred_region
        %p694 = scmp.lt.s32.totalorder %s21, 1
        %s695 = scalar_select %p694, %s21, 1
        %p696 = scmp.lt.s32.totalorder %s22, 0
        %s697 = scalar_select %p696, %s22, 0
        %s698 = sadd.s32 %s697, %s695
        %s699 = smul.addr %s698, 4
        %s700 = scalar_lea.vmem %s3, %s699
      $region48: #{exclusion_loss.5} parent=39 // pred_fallthru
        _
    $region40: #{exclusion_loss.5} parent=5 // pred_fallthru
      _
  $region6: #{exclusion_loss.5} parent=0 // loop_footer
    %s14 = sadd.s32 1, %s10
  $region7: #{exclusion_loss.5} parent=0 // loop_footer_branch
    %9 = sbr.rel target = $region3
  $region8: #{exclusion_loss.5} parent=0 // loop_exit
    _

// kernel: exclusion_loss.4
$region0: #{exclusion_loss.4}
  #allocation0 [shape = 'u32[]', space=smem, size = 0x4, offset = 0x4, fixed_abs, tag = 'smem constant byte address 0x4 - core index']
  #allocation1 [shape = 'u32[144,128]{1,0:T(1,128)}', space=vmem, size = 0x12000, scoped, tag = 'internal scratch']
  %s0 = inlined_call_operand.vmem [shape: f32[2,3,8,8], index: 0, kind: input, shape index: {}]
  %s1 = inlined_call_operand.vmem [shape: f32[2,3,8,8], index: 1, kind: input, shape index: {}]
  %s2 = inlined_call_operand.vmem [shape: f32[2,1,3,3], index: 2, kind: output, shape index: {0}]
  %s3 = inlined_call_operand.vmem [shape: f32[2,1,3,3], index: 3, kind: output, shape index: {1}]
  %4 = xla_tuple %s2, %s3
  %s5 = sld [smem:[#allocation0]]
  $region49: #{exclusion_loss.4} parent=0
    _
  %s7 = ssub.s32 1, %s5
  %s8 = scalar_select 0, %s7, %s5
  loop: start=0, step=1, limit=4
  $region2: #{exclusion_loss.4} parent=0 // loop_pre_header
    _
  $region3: #{exclusion_loss.4} parent=0 // loop_header
    %s10 = sphi 0, %s14
    %p11 = scmp.ge.s32.totalorder %s10, 4
    %s17 = sphi 0, %s29
    %s18 = sphi 0, %s25
    %s19 = sphi 0, %s17
    %s20 = sphi 0, %s18
    %s21 = sphi 0, %s19
    %s22 = sphi 0, %s20
    %s34 = sphi 0, %s36
    %s37 = sphi 0, %s34
    %s38 = sphi 0, %s37
    %s54 = sphi 0, %s38
    %s62 = sphi 0, %s64
    %s65 = sphi 0, %s62
    %s66 = sphi 0, %s65
    %s82 = sphi 0, %s66
    %s90 = sphi 0, %s92
    %s93 = sphi 0, %s90
    %s94 = sphi 0, %s93
    %s110 = sphi 0, %s94
    %s118 = sphi 0, %s120
    %s121 = sphi 0, %s118
    %s122 = sphi 0, %s121
    %s138 = sphi 0, %s122
  $region4: #{exclusion_loss.4} parent=0 // loop_header_branch
    %13 = sbr.rel (%p11) target = $region8
  $region5: #{exclusion_loss.4} parent=0 // loop_body
    %s15 = ssub.s32 %s10, 1
    %s16 = ssub.s32 %s10, 2
    %s23 = sadd.s32 1, %s18
    %p24 = scmp.ge.s32.totalorder %s23, 1
    %s25 = scalar_select %p24, 0, %s23
    %s26 = sadd.s32 1, %s17
    %s27 = scalar_select %p24, %s26, %s17
    %p28 = scmp.ge.s32.totalorder %s27, 2
    %s29 = scalar_select %p28, 0, %s27
    %s30 = ssub.s32 %s17, %s29
    %s31 = ssub.s32 %s18, %s25
    %s32 = sor.u32 %s30, %s31
    %p33 = scmp.eq.s32.totalorder %s32, 0
    %s35 = sadd.s32 %s34, 1
    %s36 = scalar_select %p33, %s34, %s35
    %p39 = pneg %p33
    %p40 = scmp.eq.s32.totalorder %s10, 1
    %p41 = por %p39, %p40
    %p42 = scmp.ne.s32.totalorder %s34, %s37
    %p43 = scmp.eq.s32.totalorder %s10, 0
    %p44 = por %p42, %p43
    %p45 = scmp.ne.s32.totalorder %s34, %s37
    %p46 = scmp.eq.s32.totalorder %s15, 1
    %p47 = por %p45, %p46
    %p48 = scmp.ne.s32.totalorder %s37, %s38
    %p49 = scmp.eq.s32.totalorder %s15, 0
    %p50 = por %p48, %p49
    %p51 = scmp.ne.s32.totalorder %s37, %s38
    %p52 = scmp.eq.s32.totalorder %s16, 1
    %p53 = por %p51, %p52
    %p55 = scmp.ne.s32.totalorder %s38, %s54
    %p56 = scmp.eq.s32.totalorder %s16, 0
    %p57 = por %p55, %p56
    %s58 = ssub.s32 %s17, %s29
    %s59 = ssub.s32 %s18, %s25
    %s60 = sor.u32 %s58, %s59
    %p61 = scmp.eq.s32.totalorder %s60, 0
    %s63 = sadd.s32 %s62, 1
    %s64 = scalar_select %p61, %s62, %s63
    %p67 = pneg %p61
    %p68 = scmp.eq.s32.totalorder %s10, 1
    %p69 = por %p67, %p68
    %p70 = scmp.ne.s32.totalorder %s62, %s65
    %p71 = scmp.eq.s32.totalorder %s10, 0
    %p72 = por %p70, %p71
    %p73 = scmp.ne.s32.totalorder %s62, %s65
    %p74 = scmp.eq.s32.totalorder %s15, 1
    %p75 = por %p73, %p74
    %p76 = scmp.ne.s32.totalorder %s65, %s66
    %p77 = scmp.eq.s32.totalorder %s15, 0
    %p78 = por %p76, %p77
    %p79 = scmp.ne.s32.totalorder %s65, %s66
    %p80 = scmp.eq.s32.totalorder %s16, 1
    %p81 = por %p79, %p80
    %p83 = scmp.ne.s32.totalorder %s66, %s82
    %p84 = scmp.eq.s32.totalorder %s16, 0
    %p85 = por %p83, %p84
    %s86 = ssub.s32 %s17, %s29
    %s87 = ssub.s32 %s18, %s25
    %s88 = sor.u32 %s86, %s87
    %p89 = scmp.eq.s32.totalorder %s88, 0
    %s91 = sadd.s32 %s90, 1
    %s92 = scalar_select %p89, %s90, %s91
    %p95 = pneg %p89
    %p96 = scmp.eq.s32.totalorder %s10, 1
    %p97 = por %p95, %p96
    %p98 = scmp.ne.s32.totalorder %s90, %s93
    %p99 = scmp.eq.s32.totalorder %s10, 0
    %p100 = por %p98, %p99
    %p101 = scmp.ne.s32.totalorder %s90, %s93
    %p102 = scmp.eq.s32.totalorder %s15, 1
    %p103 = por %p101, %p102
    %p104 = scmp.ne.s32.totalorder %s93, %s94
    %p105 = scmp.eq.s32.totalorder %s15, 0
    %p106 = por %p104, %p105
    %p107 = scmp.ne.s32.totalorder %s93, %s94
    %p108 = scmp.eq.s32.totalorder %s16, 1
    %p109 = por %p107, %p108
    %p111 = scmp.ne.s32.totalorder %s94, %s110
    %p112 = scmp.eq.s32.totalorder %s16, 0
    %p113 = por %p111, %p112
    %s114 = ssub.s32 %s17, %s29
    %s115 = ssub.s32 %s18, %s25
    %s116 = sor.u32 %s114, %s115
    %p117 = scmp.eq.s32.totalorder %s116, 0
    %s119 = sadd.s32 %s118, 1
    %s120 = scalar_select %p117, %s118, %s119
    %p123 = pneg %p117
    %p124 = scmp.eq.s32.totalorder %s10, 1
    %p125 = por %p123, %p124
    %p126 = scmp.ne.s32.totalorder %s118, %s121
    %p127 = scmp.eq.s32.totalorder %s10, 0
    %p128 = por %p126, %p127
    %p129 = scmp.ne.s32.totalorder %s118, %s121
    %p130 = scmp.eq.s32.totalorder %s15, 1
    %p131 = por %p129, %p130
    %p132 = scmp.ne.s32.totalorder %s121, %s122
    %p133 = scmp.eq.s32.totalorder %s15, 0
    %p134 = por %p132, %p133
    %p135 = scmp.ne.s32.totalorder %s121, %s122
    %p136 = scmp.eq.s32.totalorder %s16, 1
    %p137 = por %p135, %p136
    %p139 = scmp.ne.s32.totalorder %s122, %s138
    %p140 = scmp.eq.s32.totalorder %s16, 0
    %p141 = por %p139, %p140
    %p142 = scmp.le.s32.totalorder 1, %s10
    %p143 = scmp.lt.s32.totalorder %s10, 3
    %p144 = pnand %p142, %p143
    %p145 = pneg %p144
    // Predicated region
    $region9: #{exclusion_loss.4} parent=5 // pred_check
      _
    $region10: #{exclusion_loss.4} parent=5 // pred_check_branch
      %147 = sbr.rel (%p144) target = $region12
    $region11: #{exclusion_loss.4} parent=5 // pred_region
      %s148 = ssub.s32 %s10, 1
    $region12: #{exclusion_loss.4} parent=5 // pred_fallthru
      _
    %p149 = scmp.lt.s32.totalorder %s10, 2
    // Predicated region
    $region13: #{exclusion_loss.4} parent=5 // pred_check
      %p150 = pneg %p149
    $region14: #{exclusion_loss.4} parent=5 // pred_check_branch
      %152 = sbr.rel (%p150) target = $region16
    $region15: #{exclusion_loss.4} parent=5 // pred_region
      // Predicated region
      $region17: #{exclusion_loss.4} parent=15 // pred_check
        %p153 = pneg %p44
      $region18: #{exclusion_loss.4} parent=15 // pred_check_branch
        %155 = sbr.rel (%p153) target = $region20
      $region19: #{exclusion_loss.4} parent=15 // pred_region
        %p156 = scmp.lt.s32.totalorder %s17, 1
        %s157 = scalar_select %p156, %s17, 1
        %p158 = scmp.lt.s32.totalorder %s18, 0
        %s159 = scalar_select %p158, %s18, 0
        %s160 = smul.addr %s157, 3
        %s161 = sadd.s32 %s159, %s160
        %s162 = smul.addr %s161, 8
        %s163 = scalar_lea.vmem %s0, %s162
      $region20: #{exclusion_loss.4} parent=15 // pred_fallthru
        _
      // Predicated region
      $region21: #{exclusion_loss.4} parent=15 // pred_check
        %p164 = pneg %p72
      $region22: #{exclusion_loss.4} parent=15 // pred_check_branch
        %166 = sbr.rel (%p164) target = $region24
      $region23: #{exclusion_loss.4} parent=15 // pred_region
        %p167 = scmp.lt.s32.totalorder %s17, 1
        %s168 = scalar_select %p167, %s17, 1
        %p169 = scmp.lt.s32.totalorder %s18, 0
        %s170 = scalar_select %p169, %s18, 0
        %s171 = smul.addr %s168, 3
        %s172 = sadd.s32 %s170, %s171
        %s173 = smul.addr %s172, 8
        %s174 = scalar_lea.vmem %s1, %s173
      $region24: #{exclusion_loss.4} parent=15 // pred_fallthru
        _
    $region16: #{exclusion_loss.4} parent=5 // pred_fallthru
      _
    %p175 = scmp.le.s32.totalorder 1, %s10
    %p176 = scmp.lt.s32.totalorder %s10, 3
    %p177 = pnand %p175, %p176
    %p178 = pneg %p177
    // Predicated region
    $region25: #{exclusion_loss.4} parent=5 // pred_check
      _
    $region26: #{exclusion_loss.4} parent=5 // pred_check_branch
      %180 = sbr.rel (%p177) target = $region28
    $region27: #{exclusion_loss.4} parent=5 // pred_region
      %s181 = ssub.s32 %s10, 1
      %p182 = scmp.lt.s32.totalorder %s19, 1
      %s183 = scalar_select %p182, %s19, 1
      %p184 = scmp.lt.s32.totalorder %s20, 0
      %s185 = scalar_select %p184, %s20, 0
      %s186 = smul.addr %s183, 3
      %s187 = sadd.s32 %s185, %s186
      %s188 = smul.addr %s187, 8
      %s189 = scalar_lea.vmem %s0, %s188
      %p190 = pneg %p50
      %p191 = pneg %p47
      %p192 = scmp.lt.s32.totalorder %s19, 1
      %s193 = scalar_select %p192, %s19, 1
      %p194 = scmp.lt.s32.totalorder %s20, 0
      %s195 = scalar_select %p194, %s20, 0
      %s196 = smul.addr %s193, 3
      %s197 = sadd.s32 %s195, %s196
      %s198 = smul.addr %s197, 8
      %s199 = scalar_lea.vmem %s1, %s198
      %p200 = pneg %p78
      %p201 = pneg %p75
      %p202 = pneg %p106
      %p203 = pneg %p103
      %p204 = scmp.lt.s32.totalorder %s19, 1
      %s205 = scalar_select %p204, %s19, 1
      %p206 = scmp.lt.s32.totalorder %s20, 0
      %s207 = scalar_select %p206, %s20, 0
      %s208 = sadd.s32 %s207, %s205
      %s209 = smul.addr %s208, 4
      %s210 = scalar_lea.vmem %s2, %s209
      %p211 = pneg %p134
      %p212 = pneg %p131
      %p213 = scmp.lt.s32.totalorder %s19, 1
      %s214 = scalar_select %p213, %s19, 1
      %p215 = scmp.lt.s32.totalorder %s20, 0
      %s216 = scalar_select %p215, %s20, 0
      %s217 = sadd.s32 %s216, %s214
      %s218 = smul.addr %s217, 4
      %s219 = scalar_lea.vmem %s3, %s218
      %p220 = scmp.lt.s32.totalorder %s19, 1
      %s221 = scalar_select %p220, %s19, 1
      %p222 = scmp.lt.s32.totalorder %s20, 0
      %s223 = scalar_select %p222, %s20, 0
      %s224 = smul.addr %s221, 3
      %s225 = sadd.s32 %s223, %s224
      %s226 = smul.addr %s225, 8
      %s227 = scalar_lea.vmem %s0, %s226
      %p228 = scmp.lt.s32.totalorder %s19, 1
      %s229 = scalar_select %p228, %s19, 1
      %p230 = scmp.lt.s32.totalorder %s20, 0
      %s231 = scalar_select %p230, %s20, 0
      %s232 = smul.addr %s229, 3
      %s233 = sadd.s32 %s231, %s232
      %s234 = smul.addr %s233, 8
      %s235 = scalar_lea.vmem %s1, %s234
      %p236 = scmp.lt.s32.totalorder %s19, 1
      %s237 = scalar_select %p236, %s19, 1
      %p238 = scmp.lt.s32.totalorder %s20, 0
      %s239 = scalar_select %p238, %s20, 0
      %s240 = sadd.s32 %s239, %s237
      %s241 = smul.addr %s240, 4
      %s242 = scalar_lea.vmem %s2, %s241
      %p243 = scmp.lt.s32.totalorder %s19, 1
      %s244 = scalar_select %p243, %s19, 1
      %p245 = scmp.lt.s32.totalorder %s20, 0
      %s246 = scalar_select %p245, %s20, 0
      %s247 = sadd.s32 %s246, %s244
      %s248 = smul.addr %s247, 4
      %s249 = scalar_lea.vmem %s3, %s248
      %v250 = vld [vmem:[%s227] sm:$0xff]
      %v251 = vld [vmem:[%s227 + $0x8] sm:$0xff]
      %v252 = vld [vmem:[%s227 + $0x10] sm:$0xff]
      %v253 = vld [vmem:[%s235] sm:$0xff]
      %v254 = vld [vmem:[%s235 + $0x8] sm:$0xff]
      %v255 = vld [vmem:[%s235 + $0x10] sm:$0xff]
      %259 = vrot.lane.b32.xlu0 %v250, 1
      %v260 = vpop.permute.xlu0 %259
      %261 = vrot.lane.b32.xlu0 %v251, 1
      %v262 = vpop.permute.xlu0 %261
      %263 = vrot.lane.b32.xlu0 %v252, 1
      %v264 = vpop.permute.xlu0 %263
      %v268 = vsub.f32 %v250, %v260
      %v269 = vsub.f32 %v251, %v262
      %v270 = vsub.f32 %v252, %v264
      %v271 = vmul.f32 %v268, 0.5
      %v272 = vmul.f32 %v269, 0.5
      %v273 = vmul.f32 %v270, 0.5
      %v274 = vtanh.pop %v271
      %v275 = vtanh.pop %v272
      %v276 = vtanh.pop %v273
      %v277 = vmul.f32 %v274, %v274
      %v278 = vmul.f32 %v275, %v275
      %v279 = vmul.f32 %v276, %v276
      %283 = vrot.lane.b32.xlu0 %v253, 1
      %v284 = vpop.permute.xlu0 %283
      %285 = vrot.lane.b32.xlu0 %v254, 1
      %v286 = vpop.permute.xlu0 %285
      %287 = vrot.lane.b32.xlu0 %v255, 1
      %v288 = vpop.permute.xlu0 %287
      %v292 = vsub.f32 %v253, %v284
      %v293 = vsub.f32 %v254, %v286
      %v294 = vsub.f32 %v255, %v288
      %v295 = vmul.f32 %v292, 0.5
      %v296 = vmul.f32 %v293, 0.5
      %v297 = vmul.f32 %v294, 0.5
      %v298 = vtanh.pop %v295
      %v299 = vtanh.pop %v296
      %v300 = vtanh.pop %v297
      %v301 = vmul.f32 %v298, %v298
      %v302 = vmul.f32 %v299, %v299
      %v303 = vmul.f32 %v300, %v300
      %v304 = vmul.f32 %v277, %v301
      %306 = vrot.lane.b32.xlu0 %v304, 127
      %v307 = vpop.permute.xlu0 %306
      %vm309 = vcmask 56320
      %v310 = vsel %vm309, %v307, 0.0
      %311 = vadd.xlane.f32.xlu0 %v310
      %v312 = vpop.xlane.xlu0 %311
      %v313 = vrot.slane %v312, 4
      %v314 = vadd.f32 %v312, %v313
      %v315 = vrot.slane %v314, 2
      %v316 = vadd.f32 %v314, %v315
      %v317 = vrot.slane %v316, 1
      %v318 = vadd.f32 %v316, %v317
      %s319 = vtos %v318
      %v320 = vstv %s319
      %v321 = vmul.f32 %v277, %v302
      %323 = vrot.lane.b32.xlu0 %v321, 127
      %v324 = vpop.permute.xlu0 %323
      %v326 = vsel %vm309, %v324, 0.0
      %327 = vadd.xlane.f32.xlu0 %v326
      %v328 = vpop.xlane.xlu0 %327
      %v329 = vrot.slane %v328, 4
      %v330 = vadd.f32 %v328, %v329
      %v331 = vrot.slane %v330, 2
      %v332 = vadd.f32 %v330, %v331
      %v333 = vrot.slane %v332, 1
      %v334 = vadd.f32 %v332, %v333
      %s335 = vtos %v334
      %v336 = vstv %s335
      %v337 = vmul.f32 %v277, %v303
      %339 = vrot.lane.b32.xlu0 %v337, 127
      %v340 = vpop.permute.xlu0 %339
      %v342 = vsel %vm309, %v340, 0.0
      %343 = vadd.xlane.f32.xlu0 %v342
      %v344 = vpop.xlane.xlu0 %343
      %v345 = vrot.slane %v344, 4
      %v346 = vadd.f32 %v344, %v345
      %v347 = vrot.slane %v346, 2
      %v348 = vadd.f32 %v346, %v347
      %v349 = vrot.slane %v348, 1
      %v350 = vadd.f32 %v348, %v349
      %s351 = vtos %v350
      %v352 = vstv %s351
      %vm353 = vcmask 7168
      %v354 = vsel %vm353, %v320, %v336
      %vm355 = vcmask 15360
      %v356 = vsel %vm355, %v354, %v352
      %v357 = vmul.f32 %v278, %v301
      %359 = vrot.lane.b32.xlu0 %v357, 127
      %v360 = vpop.permute.xlu0 %359
      %v362 = vsel %vm309, %v360, 0.0
      %363 = vadd.xlane.f32.xlu0 %v362
      %v364 = vpop.xlane.xlu0 %363
      %v365 = vrot.slane %v364, 4
      %v366 = vadd.f32 %v364, %v365
      %v367 = vrot.slane %v366, 2
      %v368 = vadd.f32 %v366, %v367
      %v369 = vrot.slane %v368, 1
      %v370 = vadd.f32 %v368, %v369
      %s371 = vtos %v370
      %v372 = vstv %s371
      %v373 = vmul.f32 %v278, %v302
      %375 = vrot.lane.b32.xlu0 %v373, 127
      %v376 = vpop.permute.xlu0 %375
      %v378 = vsel %vm309, %v376, 0.0
      %379 = vadd.xlane.f32.xlu0 %v378
      %v380 = vpop.xlane.xlu0 %379
      %v381 = vrot.slane %v380, 4
      %v382 = vadd.f32 %v380, %v381
      %v383 = vrot.slane %v382, 2
      %v384 = vadd.f32 %v382, %v383
      %v385 = vrot.slane %v384, 1
      %v386 = vadd.f32 %v384, %v385
      %s387 = vtos %v386
      %v388 = vstv %s387
      %v389 = vmul.f32 %v278, %v303
      %391 = vrot.lane.b32.xlu0 %v389, 127
      %v392 = vpop.permute.xlu0 %391
      %v394 = vsel %vm309, %v392, 0.0
      %395 = vadd.xlane.f32.xlu0 %v394
      %v396 = vpop.xlane.xlu0 %395
      %v397 = vrot.slane %v396, 4
      %v398 = vadd.f32 %v396, %v397
      %v399 = vrot.slane %v398, 2
      %v400 = vadd.f32 %v398, %v399
      %v401 = vrot.slane %v400, 1
      %v402 = vadd.f32 %v400, %v401
      %s403 = vtos %v402
      %v404 = vstv %s403
      %v405 = vsel %vm353, %v372, %v388
      %v406 = vsel %vm355, %v405, %v404
      %v407 = vmul.f32 %v279, %v301
      %409 = vrot.lane.b32.xlu0 %v407, 127
      %v410 = vpop.permute.xlu0 %409
      %v412 = vsel %vm309, %v410, 0.0
      %413 = vadd.xlane.f32.xlu0 %v412
      %v414 = vpop.xlane.xlu0 %413
      %v415 = vrot.slane %v414, 4
      %v416 = vadd.f32 %v414, %v415
      %v417 = vrot.slane %v416, 2
      %v418 = vadd.f32 %v416, %v417
      %v419 = vrot.slane %v418, 1
      %v420 = vadd.f32 %v418, %v419
      %s421 = vtos %v420
      %v422 = vstv %s421
      %v423 = vmul.f32 %v279, %v302
      %425 = vrot.lane.b32.xlu0 %v423, 127
      %v426 = vpop.permute.xlu0 %425
      %v428 = vsel %vm309, %v426, 0.0
      %429 = vadd.xlane.f32.xlu0 %v428
      %v430 = vpop.xlane.xlu0 %429
      %v431 = vrot.slane %v430, 4
      %v432 = vadd.f32 %v430, %v431
      %v433 = vrot.slane %v432, 2
      %v434 = vadd.f32 %v432, %v433
      %v435 = vrot.slane %v434, 1
      %v436 = vadd.f32 %v434, %v435
      %s437 = vtos %v436
      %v438 = vstv %s437
      %v439 = vmul.f32 %v279, %v303
      %441 = vrot.lane.b32.xlu0 %v439, 127
      %v442 = vpop.permute.xlu0 %441
      %v444 = vsel %vm309, %v442, 0.0
      %445 = vadd.xlane.f32.xlu0 %v444
      %v446 = vpop.xlane.xlu0 %445
      %v447 = vrot.slane %v446, 4
      %v448 = vadd.f32 %v446, %v447
      %v449 = vrot.slane %v448, 2
      %v450 = vadd.f32 %v448, %v449
      %v451 = vrot.slane %v450, 1
      %v452 = vadd.f32 %v450, %v451
      %s453 = vtos %v452
      %v454 = vstv %s453
      %v455 = vsel %vm353, %v422, %v438
      %v456 = vsel %vm355, %v455, %v454
      %v458 = vrot.slane %v406, 7
      %v461 = vrot.slane %v456, 6
      %vm463 = vcmask 1040384
      %v464 = vsel %vm463, %v356, %v458
      %vm465 = vcmask 1041408
      %v466 = vsel %vm465, %v464, %v461
      %vm467 = vcmask 18432
      %468 = vst.msk [vmem:[%s249] sm:$0x7] %vm467, %v466
      %v469 = vrot.slane %v250, 7
      %v470 = vrot.slane %v251, 7
      %v471 = vrot.slane %v252, 7
      %v475 = vsub.f32 %v250, %v469
      %v476 = vsub.f32 %v251, %v470
      %v477 = vsub.f32 %v252, %v471
      %v478 = vmul.f32 %v475, 0.5
      %v479 = vmul.f32 %v476, 0.5
      %v480 = vmul.f32 %v477, 0.5
      %v481 = vtanh.pop %v478
      %v482 = vtanh.pop %v479
      %v483 = vtanh.pop %v480
      %v484 = vmul.f32 %v481, %v481
      %v485 = vmul.f32 %v482, %v482
      %v486 = vmul.f32 %v483, %v483
      %v487 = vrot.slane %v253, 7
      %v488 = vrot.slane %v254, 7
      %v489 = vrot.slane %v255, 7
      %v493 = vsub.f32 %v253, %v487
      %v494 = vsub.f32 %v254, %v488
      %v495 = vsub.f32 %v255, %v489
      %v496 = vmul.f32 %v493, 0.5
      %v497 = vmul.f32 %v494, 0.5
      %v498 = vmul.f32 %v495, 0.5
      %v499 = vtanh.pop %v496
      %v500 = vtanh.pop %v497
      %v501 = vtanh.pop %v498
      %v502 = vmul.f32 %v499, %v499
      %v503 = vmul.f32 %v500, %v500
      %v504 = vmul.f32 %v501, %v501
      %v505 = vmul.f32 %v484, %v502
      %v507 = vrot.slane %v505, 1
      %vm509 = vcmask 63488
      %v510 = vsel %vm509, %v507, 0.0
      %511 = vadd.xlane.f32.xlu0 %v510
      %v512 = vpop.xlane.xlu0 %511
      %v513 = vrot.slane %v512, 4
      %v514 = vadd.f32 %v512, %v513
      %v515 = vrot.slane %v514, 2
      %v516 = vadd.f32 %v514, %v515
      %v517 = vrot.slane %v516, 1
      %v518 = vadd.f32 %v516, %v517
      %s519 = vtos %v518
      %v520 = vstv %s519
      %v521 = vmul.f32 %v484, %v503
      %v523 = vrot.slane %v521, 1
      %v525 = vsel %vm509, %v523, 0.0
      %526 = vadd.xlane.f32.xlu0 %v525
      %v527 = vpop.xlane.xlu0 %526
      %v528 = vrot.slane %v527, 4
      %v529 = vadd.f32 %v527, %v528
      %v530 = vrot.slane %v529, 2
      %v531 = vadd.f32 %v529, %v530
      %v532 = vrot.slane %v531, 1
      %v533 = vadd.f32 %v531, %v532
      %s534 = vtos %v533
      %v535 = vstv %s534
      %v536 = vmul.f32 %v484, %v504
      %v538 = vrot.slane %v536, 1
      %v540 = vsel %vm509, %v538, 0.0
      %541 = vadd.xlane.f32.xlu0 %v540
      %v542 = vpop.xlane.xlu0 %541
      %v543 = vrot.slane %v542, 4
      %v544 = vadd.f32 %v542, %v543
      %v545 = vrot.slane %v544, 2
      %v546 = vadd.f32 %v544, %v545
      %v547 = vrot.slane %v546, 1
      %v548 = vadd.f32 %v546, %v547
      %s549 = vtos %v548
      %v550 = vstv %s549
      %v551 = vsel %vm353, %v520, %v535
      %v552 = vsel %vm355, %v551, %v550
      %v553 = vmul.f32 %v485, %v502
      %v555 = vrot.slane %v553, 1
      %v557 = vsel %vm509, %v555, 0.0
      %558 = vadd.xlane.f32.xlu0 %v557
      %v559 = vpop.xlane.xlu0 %558
      %v560 = vrot.slane %v559, 4
      %v561 = vadd.f32 %v559, %v560
      %v562 = vrot.slane %v561, 2
      %v563 = vadd.f32 %v561, %v562
      %v564 = vrot.slane %v563, 1
      %v565 = vadd.f32 %v563, %v564
      %s566 = vtos %v565
      %v567 = vstv %s566
      %v568 = vmul.f32 %v485, %v503
      %v570 = vrot.slane %v568, 1
      %v572 = vsel %vm509, %v570, 0.0
      %573 = vadd.xlane.f32.xlu0 %v572
      %v574 = vpop.xlane.xlu0 %573
      %v575 = vrot.slane %v574, 4
      %v576 = vadd.f32 %v574, %v575
      %v577 = vrot.slane %v576, 2
      %v578 = vadd.f32 %v576, %v577
      %v579 = vrot.slane %v578, 1
      %v580 = vadd.f32 %v578, %v579
      %s581 = vtos %v580
      %v582 = vstv %s581
      %v583 = vmul.f32 %v485, %v504
      %v585 = vrot.slane %v583, 1
      %v587 = vsel %vm509, %v585, 0.0
      %588 = vadd.xlane.f32.xlu0 %v587
      %v589 = vpop.xlane.xlu0 %588
      %v590 = vrot.slane %v589, 4
      %v591 = vadd.f32 %v589, %v590
      %v592 = vrot.slane %v591, 2
      %v593 = vadd.f32 %v591, %v592
      %v594 = vrot.slane %v593, 1
      %v595 = vadd.f32 %v593, %v594
      %s596 = vtos %v595
      %v597 = vstv %s596
      %v598 = vsel %vm353, %v567, %v582
      %v599 = vsel %vm355, %v598, %v597
      %v600 = vmul.f32 %v486, %v502
      %v602 = vrot.slane %v600, 1
      %v604 = vsel %vm509, %v602, 0.0
      %605 = vadd.xlane.f32.xlu0 %v604
      %v606 = vpop.xlane.xlu0 %605
      %v607 = vrot.slane %v606, 4
      %v608 = vadd.f32 %v606, %v607
      %v609 = vrot.slane %v608, 2
      %v610 = vadd.f32 %v608, %v609
      %v611 = vrot.slane %v610, 1
      %v612 = vadd.f32 %v610, %v611
      %s613 = vtos %v612
      %v614 = vstv %s613
      %v615 = vmul.f32 %v486, %v503
      %v617 = vrot.slane %v615, 1
      %v619 = vsel %vm509, %v617, 0.0
      %620 = vadd.xlane.f32.xlu0 %v619
      %v621 = vpop.xlane.xlu0 %620
      %v622 = vrot.slane %v621, 4
      %v623 = vadd.f32 %v621, %v622
      %v624 = vrot.slane %v623, 2
      %v625 = vadd.f32 %v623, %v624
      %v626 = vrot.slane %v625, 1
      %v627 = vadd.f32 %v625, %v626
      %s628 = vtos %v627
      %v629 = vstv %s628
      %v630 = vmul.f32 %v486, %v504
      %v632 = vrot.slane %v630, 1
      %v634 = vsel %vm509, %v632, 0.0
      %635 = vadd.xlane.f32.xlu0 %v634
      %v636 = vpop.xlane.xlu0 %635
      %v637 = vrot.slane %v636, 4
      %v638 = vadd.f32 %v636, %v637
      %v639 = vrot.slane %v638, 2
      %v640 = vadd.f32 %v638, %v639
      %v641 = vrot.slane %v640, 1
      %v642 = vadd.f32 %v640, %v641
      %s643 = vtos %v642
      %v644 = vstv %s643
      %v645 = vsel %vm353, %v614, %v629
      %v646 = vsel %vm355, %v645, %v644
      %v648 = vrot.slane %v599, 7
      %v651 = vrot.slane %v646, 6
      %v653 = vsel %vm463, %v552, %v648
      %v654 = vsel %vm465, %v653, %v651
      %655 = vst.msk [vmem:[%s242] sm:$0x7] %vm467, %v654
      %p656 = scmp.lt.s32.totalorder %s19, 1
      %s657 = scalar_select %p656, %s19, 1
      %p658 = scmp.lt.s32.totalorder %s20, 0
      %s659 = scalar_select %p658, %s20, 0
      %s660 = sadd.s32 %s659, %s657
      %s661 = smul.addr %s660, 4
      %s662 = scalar_lea.vmem %s2, %s661
      %p663 = scmp.lt.s32.totalorder %s19, 1
      %s664 = scalar_select %p663, %s19, 1
      %p665 = scmp.lt.s32.totalorder %s20, 0
      %s666 = scalar_select %p665, %s20, 0
      %s667 = sadd.s32 %s666, %s664
      %s668 = smul.addr %s667, 4
      %s669 = scalar_lea.vmem %s3, %s668
      // Predicated region
      $region29: #{exclusion_loss.4} parent=27 // pred_check
        %p670 = pneg %p103
      $region30: #{exclusion_loss.4} parent=27 // pred_check_branch
        %672 = sbr.rel (%p670) target = $region32
      $region31: #{exclusion_loss.4} parent=27 // pred_region
        _
      $region32: #{exclusion_loss.4} parent=27 // pred_fallthru
        _
      // Predicated region
      $region33: #{exclusion_loss.4} parent=27 // pred_check
        %p673 = pneg %p131
      $region34: #{exclusion_loss.4} parent=27 // pred_check_branch
        %675 = sbr.rel (%p673) target = $region36
      $region35: #{exclusion_loss.4} parent=27 // pred_region
        _
      $region36: #{exclusion_loss.4} parent=27 // pred_fallthru
        _
    $region28: #{exclusion_loss.4} parent=5 // pred_fallthru
      _
    %p676 = scmp.le.s32.totalorder 2, %s10
    // Predicated region
    $region37: #{exclusion_loss.4} parent=5 // pred_check
      %p677 = pneg %p676
    $region38: #{exclusion_loss.4} parent=5 // pred_check_branch
      %679 = sbr.rel (%p677) target = $region40
    $region39: #{exclusion_loss.4} parent=5 // pred_region
      %s680 = ssub.s32 %s10, 2
      // Predicated region
      $region41: #{exclusion_loss.4} parent=39 // pred_check
        %p681 = pneg %p109
      $region42: #{exclusion_loss.4} parent=39 // pred_check_branch
        %683 = sbr.rel (%p681) target = $region44
      $region43: #{exclusion_loss.4} parent=39 // pred_region
        %p684 = scmp.lt.s32.totalorder %s21, 1
        %s685 = scalar_select %p684, %s21, 1
        %p686 = scmp.lt.s32.totalorder %s22, 0
        %s687 = scalar_select %p686, %s22, 0
        %s688 = sadd.s32 %s687, %s685
        %s689 = smul.addr %s688, 4
        %s690 = scalar_lea.vmem %s2, %s689
      $region44: #{exclusion_loss.4} parent=39 // pred_fallthru
        _
      // Predicated region
      $region45: #{exclusion_loss.4} parent=39 // pred_check
        %p691 = pneg %p137
      $region46: #{exclusion_loss.4} parent=39 // pred_check_branch
        %693 = sbr.rel (%p691) target = $region48
      $region47: #{exclusion_loss.4} parent=39 // pred_region
        %p694 = scmp.lt.s32.totalorder %s21, 1
        %s695 = scalar_select %p694, %s21, 1
        %p696 = scmp.lt.s32.totalorder %s22, 0
        %s697 = scalar_select %p696, %s22, 0
        %s698 = sadd.s32 %s697, %s695
        %s699 = smul.addr %s698, 4
        %s700 = scalar_lea.vmem %s3, %s699
      $region48: #{exclusion_loss.4} parent=39 // pred_fallthru
        _
    $region40: #{exclusion_loss.4} parent=5 // pred_fallthru
      _
  $region6: #{exclusion_loss.4} parent=0 // loop_footer
    %s14 = sadd.s32 1, %s10
  $region7: #{exclusion_loss.4} parent=0 // loop_footer_branch
    %9 = sbr.rel target = $region3
  $region8: #{exclusion_loss.4} parent=0 // loop_exit
    _

// kernel: exclusion_loss.3
$region0: #{exclusion_loss.3}
  #allocation0 [shape = 'u32[]', space=smem, size = 0x4, offset = 0x4, fixed_abs, tag = 'smem constant byte address 0x4 - core index']
  #allocation1 [shape = 'u32[144,128]{1,0:T(1,128)}', space=vmem, size = 0x12000, scoped, tag = 'internal scratch']
  %s0 = inlined_call_operand.vmem [shape: f32[2,3,16,16], index: 0, kind: input, shape index: {}]
  %s1 = inlined_call_operand.vmem [shape: f32[2,3,16,16], index: 1, kind: input, shape index: {}]
  %s2 = inlined_call_operand.vmem [shape: f32[2,1,3,3], index: 2, kind: output, shape index: {0}]
  %s3 = inlined_call_operand.vmem [shape: f32[2,1,3,3], index: 3, kind: output, shape index: {1}]
  %4 = xla_tuple %s2, %s3
  %s5 = sld [smem:[#allocation0]]
  $region49: #{exclusion_loss.3} parent=0
    _
  %s7 = ssub.s32 1, %s5
  %s8 = scalar_select 0, %s7, %s5
  loop: start=0, step=1, limit=4
  $region2: #{exclusion_loss.3} parent=0 // loop_pre_header
    _
  $region3: #{exclusion_loss.3} parent=0 // loop_header
    %s10 = sphi 0, %s14
    %p11 = scmp.ge.s32.totalorder %s10, 4
    %s17 = sphi 0, %s29
    %s18 = sphi 0, %s25
    %s19 = sphi 0, %s17
    %s20 = sphi 0, %s18
    %s21 = sphi 0, %s19
    %s22 = sphi 0, %s20
    %s34 = sphi 0, %s36
    %s37 = sphi 0, %s34
    %s38 = sphi 0, %s37
    %s54 = sphi 0, %s38
    %s62 = sphi 0, %s64
    %s65 = sphi 0, %s62
    %s66 = sphi 0, %s65
    %s82 = sphi 0, %s66
    %s90 = sphi 0, %s92
    %s93 = sphi 0, %s90
    %s94 = sphi 0, %s93
    %s110 = sphi 0, %s94
    %s118 = sphi 0, %s120
    %s121 = sphi 0, %s118
    %s122 = sphi 0, %s121
    %s138 = sphi 0, %s122
  $region4: #{exclusion_loss.3} parent=0 // loop_header_branch
    %13 = sbr.rel (%p11) target = $region8
  $region5: #{exclusion_loss.3} parent=0 // loop_body
    %s15 = ssub.s32 %s10, 1
    %s16 = ssub.s32 %s10, 2
    %s23 = sadd.s32 1, %s18
    %p24 = scmp.ge.s32.totalorder %s23, 1
    %s25 = scalar_select %p24, 0, %s23
    %s26 = sadd.s32 1, %s17
    %s27 = scalar_select %p24, %s26, %s17
    %p28 = scmp.ge.s32.totalorder %s27, 2
    %s29 = scalar_select %p28, 0, %s27
    %s30 = ssub.s32 %s17, %s29
    %s31 = ssub.s32 %s18, %s25
    %s32 = sor.u32 %s30, %s31
    %p33 = scmp.eq.s32.totalorder %s32, 0
    %s35 = sadd.s32 %s34, 1
    %s36 = scalar_select %p33, %s34, %s35
    %p39 = pneg %p33
    %p40 = scmp.eq.s32.totalorder %s10, 1
    %p41 = por %p39, %p40
    %p42 = scmp.ne.s32.totalorder %s34, %s37
    %p43 = scmp.eq.s32.totalorder %s10, 0
    %p44 = por %p42, %p43
    %p45 = scmp.ne.s32.totalorder %s34, %s37
    %p46 = scmp.eq.s32.totalorder %s15, 1
    %p47 = por %p45, %p46
    %p48 = scmp.ne.s32.totalorder %s37, %s38
    %p49 = scmp.eq.s32.totalorder %s15, 0
    %p50 = por %p48, %p49
    %p51 = scmp.ne.s32.totalorder %s37, %s38
    %p52 = scmp.eq.s32.totalorder %s16, 1
    %p53 = por %p51, %p52
    %p55 = scmp.ne.s32.totalorder %s38, %s54
    %p56 = scmp.eq.s32.totalorder %s16, 0
    %p57 = por %p55, %p56
    %s58 = ssub.s32 %s17, %s29
    %s59 = ssub.s32 %s18, %s25
    %s60 = sor.u32 %s58, %s59
    %p61 = scmp.eq.s32.totalorder %s60, 0
    %s63 = sadd.s32 %s62, 1
    %s64 = scalar_select %p61, %s62, %s63
    %p67 = pneg %p61
    %p68 = scmp.eq.s32.totalorder %s10, 1
    %p69 = por %p67, %p68
    %p70 = scmp.ne.s32.totalorder %s62, %s65
    %p71 = scmp.eq.s32.totalorder %s10, 0
    %p72 = por %p70, %p71
    %p73 = scmp.ne.s32.totalorder %s62, %s65
    %p74 = scmp.eq.s32.totalorder %s15, 1
    %p75 = por %p73, %p74
    %p76 = scmp.ne.s32.totalorder %s65, %s66
    %p77 = scmp.eq.s32.totalorder %s15, 0
    %p78 = por %p76, %p77
    %p79 = scmp.ne.s32.totalorder %s65, %s66
    %p80 = scmp.eq.s32.totalorder %s16, 1
    %p81 = por %p79, %p80
    %p83 = scmp.ne.s32.totalorder %s66, %s82
    %p84 = scmp.eq.s32.totalorder %s16, 0
    %p85 = por %p83, %p84
    %s86 = ssub.s32 %s17, %s29
    %s87 = ssub.s32 %s18, %s25
    %s88 = sor.u32 %s86, %s87
    %p89 = scmp.eq.s32.totalorder %s88, 0
    %s91 = sadd.s32 %s90, 1
    %s92 = scalar_select %p89, %s90, %s91
    %p95 = pneg %p89
    %p96 = scmp.eq.s32.totalorder %s10, 1
    %p97 = por %p95, %p96
    %p98 = scmp.ne.s32.totalorder %s90, %s93
    %p99 = scmp.eq.s32.totalorder %s10, 0
    %p100 = por %p98, %p99
    %p101 = scmp.ne.s32.totalorder %s90, %s93
    %p102 = scmp.eq.s32.totalorder %s15, 1
    %p103 = por %p101, %p102
    %p104 = scmp.ne.s32.totalorder %s93, %s94
    %p105 = scmp.eq.s32.totalorder %s15, 0
    %p106 = por %p104, %p105
    %p107 = scmp.ne.s32.totalorder %s93, %s94
    %p108 = scmp.eq.s32.totalorder %s16, 1
    %p109 = por %p107, %p108
    %p111 = scmp.ne.s32.totalorder %s94, %s110
    %p112 = scmp.eq.s32.totalorder %s16, 0
    %p113 = por %p111, %p112
    %s114 = ssub.s32 %s17, %s29
    %s115 = ssub.s32 %s18, %s25
    %s116 = sor.u32 %s114, %s115
    %p117 = scmp.eq.s32.totalorder %s116, 0
    %s119 = sadd.s32 %s118, 1
    %s120 = scalar_select %p117, %s118, %s119
    %p123 = pneg %p117
    %p124 = scmp.eq.s32.totalorder %s10, 1
    %p125 = por %p123, %p124
    %p126 = scmp.ne.s32.totalorder %s118, %s121
    %p127 = scmp.eq.s32.totalorder %s10, 0
    %p128 = por %p126, %p127
    %p129 = scmp.ne.s32.totalorder %s118, %s121
    %p130 = scmp.eq.s32.totalorder %s15, 1
    %p131 = por %p129, %p130
    %p132 = scmp.ne.s32.totalorder %s121, %s122
    %p133 = scmp.eq.s32.totalorder %s15, 0
    %p134 = por %p132, %p133
    %p135 = scmp.ne.s32.totalorder %s121, %s122
    %p136 = scmp.eq.s32.totalorder %s16, 1
    %p137 = por %p135, %p136
    %p139 = scmp.ne.s32.totalorder %s122, %s138
    %p140 = scmp.eq.s32.totalorder %s16, 0
    %p141 = por %p139, %p140
    %p142 = scmp.le.s32.totalorder 1, %s10
    %p143 = scmp.lt.s32.totalorder %s10, 3
    %p144 = pnand %p142, %p143
    %p145 = pneg %p144
    // Predicated region
    $region9: #{exclusion_loss.3} parent=5 // pred_check
      _
    $region10: #{exclusion_loss.3} parent=5 // pred_check_branch
      %147 = sbr.rel (%p144) target = $region12
    $region11: #{exclusion_loss.3} parent=5 // pred_region
      %s148 = ssub.s32 %s10, 1
    $region12: #{exclusion_loss.3} parent=5 // pred_fallthru
      _
    %p149 = scmp.lt.s32.totalorder %s10, 2
    // Predicated region
    $region13: #{exclusion_loss.3} parent=5 // pred_check
      %p150 = pneg %p149
    $region14: #{exclusion_loss.3} parent=5 // pred_check_branch
      %152 = sbr.rel (%p150) target = $region16
    $region15: #{exclusion_loss.3} parent=5 // pred_region
      // Predicated region
      $region17: #{exclusion_loss.3} parent=15 // pred_check
        %p153 = pneg %p44
      $region18: #{exclusion_loss.3} parent=15 // pred_check_branch
        %155 = sbr.rel (%p153) target = $region20
      $region19: #{exclusion_loss.3} parent=15 // pred_region
        %s156 = smul.u32 2, %s18
        %p157 = scmp.lt.s32.totalorder %s17, 1
        %s158 = scalar_select %p157, %s17, 1
        %p159 = scmp.lt.s32.totalorder %s156, 1
        %s160 = scalar_select %p159, %s156, 1
        %s161 = smul.addr %s158, 6
        %s162 = sadd.s32 %s160, %s161
        %s163 = smul.addr %s162, 8
        %s164 = scalar_lea.vmem %s0, %s163
        %s165 = smul.u32 2, %s18
      $region20: #{exclusion_loss.3} parent=15 // pred_fallthru
        _
      // Predicated region
      $region21: #{exclusion_loss.3} parent=15 // pred_check
        %p166 = pneg %p72
      $region22: #{exclusion_loss.3} parent=15 // pred_check_branch
        %168 = sbr.rel (%p166) target = $region24
      $region23: #{exclusion_loss.3} parent=15 // pred_region
        %s169 = smul.u32 2, %s18
        %p170 = scmp.lt.s32.totalorder %s17, 1
        %s171 = scalar_select %p170, %s17, 1
        %p172 = scmp.lt.s32.totalorder %s169, 1
        %s173 = scalar_select %p172, %s169, 1
        %s174 = smul.addr %s171, 6
        %s175 = sadd.s32 %s173, %s174
        %s176 = smul.addr %s175, 8
        %s177 = scalar_lea.vmem %s1, %s176
        %s178 = smul.u32 2, %s18
      $region24: #{exclusion_loss.3} parent=15 // pred_fallthru
        _
    $region16: #{exclusion_loss.3} parent=5 // pred_fallthru
      _
    %p179 = scmp.le.s32.totalorder 1, %s10
    %p180 = scmp.lt.s32.totalorder %s10, 3
    %p181 = pnand %p179, %p180
    %p182 = pneg %p181
    // Predicated region
    $region25: #{exclusion_loss.3} parent=5 // pred_check
      _
    $region26: #{exclusion_loss.3} parent=5 // pred_check_branch
      %184 = sbr.rel (%p181) target = $region28
    $region27: #{exclusion_loss.3} parent=5 // pred_region
      %s185 = ssub.s32 %s10, 1
      %s186 = smul.u32 2, %s20
      %p187 = scmp.lt.s32.totalorder %s19, 1
      %s188 = scalar_select %p187, %s19, 1
      %p189 = scmp.lt.s32.totalorder %s186, 1
      %s190 = scalar_select %p189, %s186, 1
      %s191 = smul.addr %s188, 6
      %s192 = sadd.s32 %s190, %s191
      %s193 = smul.addr %s192, 8
      %s194 = scalar_lea.vmem %s0, %s193
      %p195 = pneg %p50
      %p196 = pneg %p47
      %s197 = smul.u32 2, %s20
      %p198 = scmp.lt.s32.totalorder %s19, 1
      %s199 = scalar_select %p198, %s19, 1
      %p200 = scmp.lt.s32.totalorder %s197, 1
      %s201 = scalar_select %p200, %s197, 1
      %s202 = smul.addr %s199, 6
      %s203 = sadd.s32 %s201, %s202
      %s204 = smul.addr %s203, 8
      %s205 = scalar_lea.vmem %s1, %s204
      %p206 = pneg %p78
      %p207 = pneg %p75
      %p208 = pneg %p106
      %p209 = pneg %p103
      %p210 = scmp.lt.s32.totalorder %s19, 1
      %s211 = scalar_select %p210, %s19, 1
      %p212 = scmp.lt.s32.totalorder %s20, 0
      %s213 = scalar_select %p212, %s20, 0
      %s214 = sadd.s32 %s213, %s211
      %s215 = smul.addr %s214, 4
      %s216 = scalar_lea.vmem %s2, %s215
      %p217 = pneg %p134
      %p218 = pneg %p131
      %p219 = scmp.lt.s32.totalorder %s19, 1
      %s220 = scalar_select %p219, %s19, 1
      %p221 = scmp.lt.s32.totalorder %s20, 0
      %s222 = scalar_select %p221, %s20, 0
      %s223 = sadd.s32 %s222, %s220
      %s224 = smul.addr %s223, 4
      %s225 = scalar_lea.vmem %s3, %s224
      %s226 = smul.u32 2, %s20
      %p227 = scmp.lt.s32.totalorder %s19, 1
      %s228 = scalar_select %p227, %s19, 1
      %p229 = scmp.lt.s32.totalorder %s226, 1
      %s230 = scalar_select %p229, %s226, 1
      %s231 = smul.addr %s228, 6
      %s232 = sadd.s32 %s230, %s231
      %s233 = smul.addr %s232, 8
      %s234 = scalar_lea.vmem %s0, %s233
      %s235 = smul.u32 2, %s20
      %s236 = smul.u32 2, %s20
      %p237 = scmp.lt.s32.totalorder %s19, 1
      %s238 = scalar_select %p237, %s19, 1
      %p239 = scmp.lt.s32.totalorder %s236, 1
      %s240 = scalar_select %p239, %s236, 1
      %s241 = smul.addr %s238, 6
      %s242 = sadd.s32 %s240, %s241
      %s243 = smul.addr %s242, 8
      %s244 = scalar_lea.vmem %s1, %s243
      %s245 = smul.u32 2, %s20
      %p246 = scmp.lt.s32.totalorder %s19, 1
      %s247 = scalar_select %p246, %s19, 1
      %p248 = scmp.lt.s32.totalorder %s20, 0
      %s249 = scalar_select %p248, %s20, 0
      %s250 = sadd.s32 %s249, %s247
      %s251 = smul.addr %s250, 4
      %s252 = scalar_lea.vmem %s2, %s251
      %p253 = scmp.lt.s32.totalorder %s19, 1
      %s254 = scalar_select %p253, %s19, 1
      %p255 = scmp.lt.s32.totalorder %s20, 0
      %s256 = scalar_select %p255, %s20, 0
      %s257 = sadd.s32 %s256, %s254
      %s258 = smul.addr %s257, 4
      %s259 = scalar_lea.vmem %s3, %s258
      %v260 = vld [vmem:[%s234] sm:$0xff]
      %v261 = vld [vmem:[%s234 + $0x8] sm:$0xff]
      %v262 = vld [vmem:[%s234 + $0x10] sm:$0xff]
      %v263 = vld [vmem:[%s234 + $0x18] sm:$0xff]
      %v264 = vld [vmem:[%s234 + $0x20] sm:$0xff]
      %v265 = vld [vmem:[%s234 + $0x28] sm:$0xff]
      %v266 = vld [vmem:[%s244] sm:$0xff]
      %v267 = vld [vmem:[%s244 + $0x8] sm:$0xff]
      %v268 = vld [vmem:[%s244 + $0x10] sm:$0xff]
      %v269 = vld [vmem:[%s244 + $0x18] sm:$0xff]
      %v270 = vld [vmem:[%s244 + $0x20] sm:$0xff]
      %v271 = vld [vmem:[%s244 + $0x28] sm:$0xff]
      %278 = vrot.lane.b32.xlu0 %v260, 1
      %v279 = vpop.permute.xlu0 %278
      %280 = vrot.lane.b32.xlu0 %v261, 1
      %v281 = vpop.permute.xlu0 %280
      %282 = vrot.lane.b32.xlu0 %v262, 1
      %v283 = vpop.permute.xlu0 %282
      %284 = vrot.lane.b32.xlu0 %v263, 1
      %v285 = vpop.permute.xlu0 %284
      %286 = vrot.lane.b32.xlu0 %v264, 1
      %v287 = vpop.permute.xlu0 %286
      %288 = vrot.lane.b32.xlu0 %v265, 1
      %v289 = vpop.permute.xlu0 %288
      %v296 = vsub.f32 %v260, %v279
      %v297 = vsub.f32 %v261, %v281
      %v298 = vsub.f32 %v262, %v283
      %v299 = vsub.f32 %v263, %v285
      %v300 = vsub.f32 %v264, %v287
      %v301 = vsub.f32 %v265, %v289
      %v302 = vmul.f32 %v296, 0.5
      %v303 = vmul.f32 %v297, 0.5
      %v304 = vmul.f32 %v298, 0.5
      %v305 = vmul.f32 %v299, 0.5
      %v306 = vmul.f32 %v300, 0.5
      %v307 = vmul.f32 %v301, 0.5
      %v308 = vtanh.pop %v302
      %v309 = vtanh.pop %v303
      %v310 = vtanh.pop %v304
      %v311 = vtanh.pop %v305
      %v312 = vtanh.pop %v306
      %v313 = vtanh.pop %v307
      %v314 = vmul.f32 %v308, %v308
      %v315 = vmul.f32 %v309, %v309
      %v316 = vmul.f32 %v310, %v310
      %v317 = vmul.f32 %v311, %v311
      %v318 = vmul.f32 %v312, %v312
      %v319 = vmul.f32 %v313, %v313
      %326 = vrot.lane.b32.xlu0 %v266, 1
      %v327 = vpop.permute.xlu0 %326
      %328 = vrot.lane.b32.xlu0 %v267, 1
      %v329 = vpop.permute.xlu0 %328
      %330 = vrot.lane.b32.xlu0 %v268, 1
      %v331 = vpop.permute.xlu0 %330
      %332 = vrot.lane.b32.xlu0 %v269, 1
      %v333 = vpop.permute.xlu0 %332
      %334 = vrot.lane.b32.xlu0 %v270, 1
      %v335 = vpop.permute.xlu0 %334
      %336 = vrot.lane.b32.xlu0 %v271, 1
      %v337 = vpop.permute.xlu0 %336
      %v344 = vsub.f32 %v266, %v327
      %v345 = vsub.f32 %v267, %v329
      %v346 = vsub.f32 %v268, %v331
      %v347 = vsub.f32 %v269, %v333
      %v348 = vsub.f32 %v270, %v335
      %v349 = vsub.f32 %v271, %v337
      %v350 = vmul.f32 %v344, 0.5
      %v351 = vmul.f32 %v345, 0.5
      %v352 = vmul.f32 %v346, 0.5
      %v353 = vmul.f32 %v347, 0.5
      %v354 = vmul.f32 %v348, 0.5
      %v355 = vmul.f32 %v349, 0.5
      %v356 = vtanh.pop %v350
      %v357 = vtanh.pop %v351
      %v358 = vtanh.pop %v352
      %v359 = vtanh.pop %v353
      %v360 = vtanh.pop %v354
      %v361 = vtanh.pop %v355
      %v362 = vmul.f32 %v356, %v356
      %v363 = vmul.f32 %v357, %v357
      %v364 = vmul.f32 %v358, %v358
      %v365 = vmul.f32 %v359, %v359
      %v366 = vmul.f32 %v360, %v360
      %v367 = vmul.f32 %v361, %v361
      %v368 = vmul.f32 %v314, %v362
      %v369 = vmul.f32 %v315, %v363
      %372 = vrot.lane.b32.xlu0 %v368, 127
      %v373 = vpop.permute.xlu0 %372
      %374 = vrot.lane.b32.xlu0 %v369, 127
      %v375 = vpop.permute.xlu0 %374
      %vm378 = vcmask 121856
      %v379 = vsel %vm378, %v373, 0.0
      %v380 = vsel %vm378, %v375, 0.0
      %v381 = vadd.f32 %v379, %v380
      %382 = vadd.xlane.f32.xlu0 %v381
      %v383 = vpop.xlane.xlu0 %382
      %v384 = vrot.slane %v383, 4
      %v385 = vadd.f32 %v383, %v384
      %v386 = vrot.slane %v385, 2
      %v387 = vadd.f32 %v385, %v386
      %v388 = vrot.slane %v387, 1
      %v389 = vadd.f32 %v387, %v388
      %s390 = vtos %v389
      %v391 = vstv %s390
      %v392 = vmul.f32 %v314, %v364
      %v393 = vmul.f32 %v315, %v365
      %396 = vrot.lane.b32.xlu0 %v392, 127
      %v397 = vpop.permute.xlu0 %396
      %398 = vrot.lane.b32.xlu0 %v393, 127
      %v399 = vpop.permute.xlu0 %398
      %v402 = vsel %vm378, %v397, 0.0
      %v403 = vsel %vm378, %v399, 0.0
      %v404 = vadd.f32 %v402, %v403
      %405 = vadd.xlane.f32.xlu0 %v404
      %v406 = vpop.xlane.xlu0 %405
      %v407 = vrot.slane %v406, 4
      %v408 = vadd.f32 %v406, %v407
      %v409 = vrot.slane %v408, 2
      %v410 = vadd.f32 %v408, %v409
      %v411 = vrot.slane %v410, 1
      %v412 = vadd.f32 %v410, %v411
      %s413 = vtos %v412
      %v414 = vstv %s413
      %v415 = vmul.f32 %v314, %v366
      %v416 = vmul.f32 %v315, %v367
      %419 = vrot.lane.b32.xlu0 %v415, 127
      %v420 = vpop.permute.xlu0 %419
      %421 = vrot.lane.b32.xlu0 %v416, 127
      %v422 = vpop.permute.xlu0 %421
      %v425 = vsel %vm378, %v420, 0.0
      %v426 = vsel %vm378, %v422, 0.0
      %v427 = vadd.f32 %v425, %v426
      %428 = vadd.xlane.f32.xlu0 %v427
      %v429 = vpop.xlane.xlu0 %428
      %v430 = vrot.slane %v429, 4
      %v431 = vadd.f32 %v429, %v430
      %v432 = vrot.slane %v431, 2
      %v433 = vadd.f32 %v431, %v432
      %v434 = vrot.slane %v433, 1
      %v435 = vadd.f32 %v433, %v434
      %s436 = vtos %v435
      %v437 = vstv %s436
      %vm438 = vcmask 7168
      %v439 = vsel %vm438, %v391, %v414
      %vm440 = vcmask 15360
      %v441 = vsel %vm440, %v439, %v437
      %v442 = vmul.f32 %v316, %v362
      %v443 = vmul.f32 %v317, %v363
      %446 = vrot.lane.b32.xlu0 %v442, 127
      %v447 = vpop.permute.xlu0 %446
      %448 = vrot.lane.b32.xlu0 %v443, 127
      %v449 = vpop.permute.xlu0 %448
      %v452 = vsel %vm378, %v447, 0.0
      %v453 = vsel %vm378, %v449, 0.0
      %v454 = vadd.f32 %v452, %v453
      %455 = vadd.xlane.f32.xlu0 %v454
      %v456 = vpop.xlane.xlu0 %455
      %v457 = vrot.slane %v456, 4
      %v458 = vadd.f32 %v456, %v457
      %v459 = vrot.slane %v458, 2
      %v460 = vadd.f32 %v458, %v459
      %v461 = vrot.slane %v460, 1
      %v462 = vadd.f32 %v460, %v461
      %s463 = vtos %v462
      %v464 = vstv %s463
      %v465 = vmul.f32 %v316, %v364
      %v466 = vmul.f32 %v317, %v365
      %469 = vrot.lane.b32.xlu0 %v465, 127
      %v470 = vpop.permute.xlu0 %469
      %471 = vrot.lane.b32.xlu0 %v466, 127
      %v472 = vpop.permute.xlu0 %471
      %v475 = vsel %vm378, %v470, 0.0
      %v476 = vsel %vm378, %v472, 0.0
      %v477 = vadd.f32 %v475, %v476
      %478 = vadd.xlane.f32.xlu0 %v477
      %v479 = vpop.xlane.xlu0 %478
      %v480 = vrot.slane %v479, 4
      %v481 = vadd.f32 %v479, %v480
      %v482 = vrot.slane %v481, 2
      %v483 = vadd.f32 %v481, %v482
      %v484 = vrot.slane %v483, 1
      %v485 = vadd.f32 %v483, %v484
      %s486 = vtos %v485
      %v487 = vstv %s486
      %v488 = vmul.f32 %v316, %v366
      %v489 = vmul.f32 %v317, %v367
      %492 = vrot.lane.b32.xlu0 %v488, 127
      %v493 = vpop.permute.xlu0 %492
      %494 = vrot.lane.b32.xlu0 %v489, 127
      %v495 = vpop.permute.xlu0 %494
      %v498 = vsel %vm378, %v493, 0.0
      %v499 = vsel %vm378, %v495, 0.0
      %v500 = vadd.f32 %v498, %v499
      %501 = vadd.xlane.f32.xlu0 %v500
      %v502 = vpop.xlane.xlu0 %501
      %v503 = vrot.slane %v502, 4
      %v504 = vadd.f32 %v502, %v503
      %v505 = vrot.slane %v504, 2
      %v506 = vadd.f32 %v504, %v505
      %v507 = vrot.slane %v506, 1
      %v508 = vadd.f32 %v506, %v507
      %s509 = vtos %v508
      %v510 = vstv %s509
      %v511 = vsel %vm438, %v464, %v487
      %v512 = vsel %vm440, %v511, %v510
      %v513 = vmul.f32 %v318, %v362
      %v514 = vmul.f32 %v319, %v363
      %517 = vrot.lane.b32.xlu0 %v513, 127
      %v518 = vpop.permute.xlu0 %517
      %519 = vrot.lane.b32.xlu0 %v514, 127
      %v520 = vpop.permute.xlu0 %519
      %v523 = vsel %vm378, %v518, 0.0
      %v524 = vsel %vm378, %v520, 0.0
      %v525 = vadd.f32 %v523, %v524
      %526 = vadd.xlane.f32.xlu0 %v525
      %v527 = vpop.xlane.xlu0 %526
      %v528 = vrot.slane %v527, 4
      %v529 = vadd.f32 %v527, %v528
      %v530 = vrot.slane %v529, 2
      %v531 = vadd.f32 %v529, %v530
      %v532 = vrot.slane %v531, 1
      %v533 = vadd.f32 %v531, %v532
      %s534 = vtos %v533
      %v535 = vstv %s534
      %v536 = vmul.f32 %v318, %v364
      %v537 = vmul.f32 %v319, %v365
      %540 = vrot.lane.b32.xlu0 %v536, 127
      %v541 = vpop.permute.xlu0 %540
      %542 = vrot.lane.b32.xlu0 %v537, 127
      %v543 = vpop.permute.xlu0 %542
      %v546 = vsel %vm378, %v541, 0.0
      %v547 = vsel %vm378, %v543, 0.0
      %v548 = vadd.f32 %v546, %v547
      %549 = vadd.xlane.f32.xlu0 %v548
      %v550 = vpop.xlane.xlu0 %549
      %v551 = vrot.slane %v550, 4
      %v552 = vadd.f32 %v550, %v551
      %v553 = vrot.slane %v552, 2
      %v554 = vadd.f32 %v552, %v553
      %v555 = vrot.slane %v554, 1
      %v556 = vadd.f32 %v554, %v555
      %s557 = vtos %v556
      %v558 = vstv %s557
      %v559 = vmul.f32 %v318, %v366
      %v560 = vmul.f32 %v319, %v367
      %563 = vrot.lane.b32.xlu0 %v559, 127
      %v564 = vpop.permute.xlu0 %563
      %565 = vrot.lane.b32.xlu0 %v560, 127
      %v566 = vpop.permute.xlu0 %565
      %v569 = vsel %vm378, %v564, 0.0
      %v570 = vsel %vm378, %v566, 0.0
      %v571 = vadd.f32 %v569, %v570
      %572 = vadd.xlane.f32.xlu0 %v571
      %v573 = vpop.xlane.xlu0 %572
      %v574 = vrot.slane %v573, 4
      %v575 = vadd.f32 %v573, %v574
      %v576 = vrot.slane %v575, 2
      %v577 = vadd.f32 %v575, %v576
      %v578 = vrot.slane %v577, 1
      %v579 = vadd.f32 %v577, %v578
      %s580 = vtos %v579
      %v581 = vstv %s580
      %v582 = vsel %vm438, %v535, %v558
      %v583 = vsel %vm440, %v582, %v581
      %v585 = vrot.slane %v512, 7
      %v588 = vrot.slane %v583, 6
      %vm590 = vcmask 1040384
      %v591 = vsel %vm590, %v441, %v585
      %vm592 = vcmask 1041408
      %v593 = vsel %vm592, %v591, %v588
      %vm594 = vcmask 18432
      %595 = vst.msk [vmem:[%s259] sm:$0x7] %vm594, %v593
      %v596 = vrot.slane %v260, 7
      %v597 = vrot.slane %v261, 7
      %v598 = vsel %vm590, %v596, %v597
      %v599 = vrot.slane %v262, 7
      %v600 = vrot.slane %v263, 7
      %v601 = vsel %vm590, %v599, %v600
      %v602 = vrot.slane %v264, 7
      %v603 = vrot.slane %v265, 7
      %v604 = vsel %vm590, %v602, %v603
      %v611 = vsub.f32 %v260, %v596
      %v612 = vsub.f32 %v261, %v598
      %v613 = vsub.f32 %v262, %v599
      %v614 = vsub.f32 %v263, %v601
      %v615 = vsub.f32 %v264, %v602
      %v616 = vsub.f32 %v265, %v604
      %v617 = vmul.f32 %v611, 0.5
      %v618 = vmul.f32 %v612, 0.5
      %v619 = vmul.f32 %v613, 0.5
      %v620 = vmul.f32 %v614, 0.5
      %v621 = vmul.f32 %v615, 0.5
      %v622 = vmul.f32 %v616, 0.5
      %v623 = vtanh.pop %v617
      %v624 = vtanh.pop %v618
      %v625 = vtanh.pop %v619
      %v626 = vtanh.pop %v620
      %v627 = vtanh.pop %v621
      %v628 = vtanh.pop %v622
      %v629 = vmul.f32 %v623, %v623
      %v630 = vmul.f32 %v624, %v624
      %v631 = vmul.f32 %v625, %v625
      %v632 = vmul.f32 %v626, %v626
      %v633 = vmul.f32 %v627, %v627
      %v634 = vmul.f32 %v628, %v628
      %v635 = vrot.slane %v266, 7
      %v636 = vrot.slane %v267, 7
      %v637 = vsel %vm590, %v635, %v636
      %v638 = vrot.slane %v268, 7
      %v639 = vrot.slane %v269, 7
      %v640 = vsel %vm590, %v638, %v639
      %v641 = vrot.slane %v270, 7
      %v642 = vrot.slane %v271, 7
      %v643 = vsel %vm590, %v641, %v642
      %v650 = vsub.f32 %v266, %v635
      %v651 = vsub.f32 %v267, %v637
      %v652 = vsub.f32 %v268, %v638
      %v653 = vsub.f32 %v269, %v640
      %v654 = vsub.f32 %v270, %v641
      %v655 = vsub.f32 %v271, %v643
      %v656 = vmul.f32 %v650, 0.5
      %v657 = vmul.f32 %v651, 0.5
      %v658 = vmul.f32 %v652, 0.5
      %v659 = vmul.f32 %v653, 0.5
      %v660 = vmul.f32 %v654, 0.5
      %v661 = vmul.f32 %v655, 0.5
      %v662 = vtanh.pop %v656
      %v663 = vtanh.pop %v657
      %v664 = vtanh.pop %v658
      %v665 = vtanh.pop %v659
      %v666 = vtanh.pop %v660
      %v667 = vtanh.pop %v661
      %v668 = vmul.f32 %v662, %v662
      %v669 = vmul.f32 %v663, %v663
      %v670 = vmul.f32 %v664, %v664
      %v671 = vmul.f32 %v665, %v665
      %v672 = vmul.f32 %v666, %v666
      %v673 = vmul.f32 %v667, %v667
      %v674 = vmul.f32 %v629, %v668
      %v675 = vmul.f32 %v630, %v669
      %vm678 = vcmask 1046528
      %v679 = vrot.slane %v674, 1
      %v680 = vrot.slane %v675, 1
      %v681 = vsel %vm678, %v679, %v680
      %vm684 = vcmask 130048
      %v685 = vsel %vm684, %v681, 0.0
      %vm686 = vcmask 129024
      %v687 = vsel %vm686, %v680, 0.0
      %v688 = vadd.f32 %v685, %v687
      %689 = vadd.xlane.f32.xlu0 %v688
      %v690 = vpop.xlane.xlu0 %689
      %v691 = vrot.slane %v690, 4
      %v692 = vadd.f32 %v690, %v691
      %v693 = vrot.slane %v692, 2
      %v694 = vadd.f32 %v692, %v693
      %v695 = vrot.slane %v694, 1
      %v696 = vadd.f32 %v694, %v695
      %s697 = vtos %v696
      %v698 = vstv %s697
      %v699 = vmul.f32 %v629, %v670
      %v700 = vmul.f32 %v630, %v671
      %v703 = vrot.slane %v699, 1
      %v704 = vrot.slane %v700, 1
      %v705 = vsel %vm678, %v703, %v704
      %v708 = vsel %vm684, %v705, 0.0
      %v709 = vsel %vm686, %v704, 0.0
      %v710 = vadd.f32 %v708, %v709
      %711 = vadd.xlane.f32.xlu0 %v710
      %v712 = vpop.xlane.xlu0 %711
      %v713 = vrot.slane %v712, 4
      %v714 = vadd.f32 %v712, %v713
      %v715 = vrot.slane %v714, 2
      %v716 = vadd.f32 %v714, %v715
      %v717 = vrot.slane %v716, 1
      %v718 = vadd.f32 %v716, %v717
      %s719 = vtos %v718
      %v720 = vstv %s719
      %v721 = vmul.f32 %v629, %v672
      %v722 = vmul.f32 %v630, %v673
      %v725 = vrot.slane %v721, 1
      %v726 = vrot.slane %v722, 1
      %v727 = vsel %vm678, %v725, %v726
      %v730 = vsel %vm684, %v727, 0.0
      %v731 = vsel %vm686, %v726, 0.0
      %v732 = vadd.f32 %v730, %v731
      %733 = vadd.xlane.f32.xlu0 %v732
      %v734 = vpop.xlane.xlu0 %733
      %v735 = vrot.slane %v734, 4
      %v736 = vadd.f32 %v734, %v735
      %v737 = vrot.slane %v736, 2
      %v738 = vadd.f32 %v736, %v737
      %v739 = vrot.slane %v738, 1
      %v740 = vadd.f32 %v738, %v739
      %s741 = vtos %v740
      %v742 = vstv %s741
      %v743 = vsel %vm438, %v698, %v720
      %v744 = vsel %vm440, %v743, %v742
      %v745 = vmul.f32 %v631, %v668
      %v746 = vmul.f32 %v632, %v669
      %v749 = vrot.slane %v745, 1
      %v750 = vrot.slane %v746, 1
      %v751 = vsel %vm678, %v749, %v750
      %v754 = vsel %vm684, %v751, 0.0
      %v755 = vsel %vm686, %v750, 0.0
      %v756 = vadd.f32 %v754, %v755
      %757 = vadd.xlane.f32.xlu0 %v756
      %v758 = vpop.xlane.xlu0 %757
      %v759 = vrot.slane %v758, 4
      %v760 = vadd.f32 %v758, %v759
      %v761 = vrot.slane %v760, 2
      %v762 = vadd.f32 %v760, %v761
      %v763 = vrot.slane %v762, 1
      %v764 = vadd.f32 %v762, %v763
      %s765 = vtos %v764
      %v766 = vstv %s765
      %v767 = vmul.f32 %v631, %v670
      %v768 = vmul.f32 %v632, %v671
      %v771 = vrot.slane %v767, 1
      %v772 = vrot.slane %v768, 1
      %v773 = vsel %vm678, %v771, %v772
      %v776 = vsel %vm684, %v773, 0.0
      %v777 = vsel %vm686, %v772, 0.0
      %v778 = vadd.f32 %v776, %v777
      %779 = vadd.xlane.f32.xlu0 %v778
      %v780 = vpop.xlane.xlu0 %779
      %v781 = vrot.slane %v780, 4
      %v782 = vadd.f32 %v780, %v781
      %v783 = vrot.slane %v782, 2
      %v784 = vadd.f32 %v782, %v783
      %v785 = vrot.slane %v784, 1
      %v786 = vadd.f32 %v784, %v785
      %s787 = vtos %v786
      %v788 = vstv %s787
      %v789 = vmul.f32 %v631, %v672
      %v790 = vmul.f32 %v632, %v673
      %v793 = vrot.slane %v789, 1
      %v794 = vrot.slane %v790, 1
      %v795 = vsel %vm678, %v793, %v794
      %v798 = vsel %vm684, %v795, 0.0
      %v799 = vsel %vm686, %v794, 0.0
      %v800 = vadd.f32 %v798, %v799
      %801 = vadd.xlane.f32.xlu0 %v800
      %v802 = vpop.xlane.xlu0 %801
      %v803 = vrot.slane %v802, 4
      %v804 = vadd.f32 %v802, %v803
      %v805 = vrot.slane %v804, 2
      %v806 = vadd.f32 %v804, %v805
      %v807 = vrot.slane %v806, 1
      %v808 = vadd.f32 %v806, %v807
      %s809 = vtos %v808
      %v810 = vstv %s809
      %v811 = vsel %vm438, %v766, %v788
      %v812 = vsel %vm440, %v811, %v810
      %v813 = vmul.f32 %v633, %v668
      %v814 = vmul.f32 %v634, %v669
      %v817 = vrot.slane %v813, 1
      %v818 = vrot.slane %v814, 1
      %v819 = vsel %vm678, %v817, %v818
      %v822 = vsel %vm684, %v819, 0.0
      %v823 = vsel %vm686, %v818, 0.0
      %v824 = vadd.f32 %v822, %v823
      %825 = vadd.xlane.f32.xlu0 %v824
      %v826 = vpop.xlane.xlu0 %825
      %v827 = vrot.slane %v826, 4
      %v828 = vadd.f32 %v826, %v827
      %v829 = vrot.slane %v828, 2
      %v830 = vadd.f32 %v828, %v829
      %v831 = vrot.slane %v830, 1
      %v832 = vadd.f32 %v830, %v831
      %s833 = vtos %v832
      %v834 = vstv %s833
      %v835 = vmul.f32 %v633, %v670
      %v836 = vmul.f32 %v634, %v671
      %v839 = vrot.slane %v835, 1
      %v840 = vrot.slane %v836, 1
      %v841 = vsel %vm678, %v839, %v840
      %v844 = vsel %vm684, %v841, 0.0
      %v845 = vsel %vm686, %v840, 0.0
      %v846 = vadd.f32 %v844, %v845
      %847 = vadd.xlane.f32.xlu0 %v846
      %v848 = vpop.xlane.xlu0 %847
      %v849 = vrot.slane %v848, 4
      %v850 = vadd.f32 %v848, %v849
      %v851 = vrot.slane %v850, 2
      %v852 = vadd.f32 %v850, %v851
      %v853 = vrot.slane %v852, 1
      %v854 = vadd.f32 %v852, %v853
      %s855 = vtos %v854
      %v856 = vstv %s855
      %v857 = vmul.f32 %v633, %v672
      %v858 = vmul.f32 %v634, %v673
      %v861 = vrot.slane %v857, 1
      %v862 = vrot.slane %v858, 1
      %v863 = vsel %vm678, %v861, %v862
      %v866 = vsel %vm684, %v863, 0.0
      %v867 = vsel %vm686, %v862, 0.0
      %v868 = vadd.f32 %v866, %v867
      %869 = vadd.xlane.f32.xlu0 %v868
      %v870 = vpop.xlane.xlu0 %869
      %v871 = vrot.slane %v870, 4
      %v872 = vadd.f32 %v870, %v871
      %v873 = vrot.slane %v872, 2
      %v874 = vadd.f32 %v872, %v873
      %v875 = vrot.slane %v874, 1
      %v876 = vadd.f32 %v874, %v875
      %s877 = vtos %v876
      %v878 = vstv %s877
      %v879 = vsel %vm438, %v834, %v856
      %v880 = vsel %vm440, %v879, %v878
      %v882 = vrot.slane %v812, 7
      %v885 = vrot.slane %v880, 6
      %v887 = vsel %vm590, %v744, %v882
      %v888 = vsel %vm592, %v887, %v885
      %889 = vst.msk [vmem:[%s252] sm:$0x7] %vm594, %v888
      %p890 = scmp.lt.s32.totalorder %s19, 1
      %s891 = scalar_select %p890, %s19, 1
      %p892 = scmp.lt.s32.totalorder %s20, 0
      %s893 = scalar_select %p892, %s20, 0
      %s894 = sadd.s32 %s893, %s891
      %s895 = smul.addr %s894, 4
      %s896 = scalar_lea.vmem %s2, %s895
      %p897 = scmp.lt.s32.totalorder %s19, 1
      %s898 = scalar_select %p897, %s19, 1
      %p899 = scmp.lt.s32.totalorder %s20, 0
      %s900 = scalar_select %p899, %s20, 0
      %s901 = sadd.s32 %s900, %s898
      %s902 = smul.addr %s901, 4
      %s903 = scalar_lea.vmem %s3, %s902
      // Predicated region
      $region29: #{exclusion_loss.3} parent=27 // pred_check
        %p904 = pneg %p103
      $region30: #{exclusion_loss.3} parent=27 // pred_check_branch
        %906 = sbr.rel (%p904) target = $region32
      $region31: #{exclusion_loss.3} parent=27 // pred_region
        _
      $region32: #{exclusion_loss.3} parent=27 // pred_fallthru
        _
      // Predicated region
      $region33: #{exclusion_loss.3} parent=27 // pred_check
        %p907 = pneg %p131
      $region34: #{exclusion_loss.3} parent=27 // pred_check_branch
        %909 = sbr.rel (%p907) target = $region36
      $region35: #{exclusion_loss.3} parent=27 // pred_region
        _
      $region36: #{exclusion_loss.3} parent=27 // pred_fallthru
        _
    $region28: #{exclusion_loss.3} parent=5 // pred_fallthru
      _
    %p910 = scmp.le.s32.totalorder 2, %s10
    // Predicated region
    $region37: #{exclusion_loss.3} parent=5 // pred_check
      %p911 = pneg %p910
    $region38: #{exclusion_loss.3} parent=5 // pred_check_branch
      %913 = sbr.rel (%p911) target = $region40
    $region39: #{exclusion_loss.3} parent=5 // pred_region
      %s914 = ssub.s32 %s10, 2
      // Predicated region
      $region41: #{exclusion_loss.3} parent=39 // pred_check
        %p915 = pneg %p109
      $region42: #{exclusion_loss.3} parent=39 // pred_check_branch
        %917 = sbr.rel (%p915) target = $region44
      $region43: #{exclusion_loss.3} parent=39 // pred_region
        %p918 = scmp.lt.s32.totalorder %s21, 1
        %s919 = scalar_select %p918, %s21, 1
        %p920 = scmp.lt.s32.totalorder %s22, 0
        %s921 = scalar_select %p920, %s22, 0
        %s922 = sadd.s32 %s921, %s919
        %s923 = smul.addr %s922, 4
        %s924 = scalar_lea.vmem %s2, %s923
      $region44: #{exclusion_loss.3} parent=39 // pred_fallthru
        _
      // Predicated region
      $region45: #{exclusion_loss.3} parent=39 // pred_check
        %p925 = pneg %p137
      $region46: #{exclusion_loss.3} parent=39 // pred_check_branch
        %927 = sbr.rel (%p925) target = $region48
      $region47: #{exclusion_loss.3} parent=39 // pred_region
        %p928 = scmp.lt.s32.totalorder %s21, 1
        %s929 = scalar_select %p928, %s21, 1
        %p930 = scmp.lt.s32.totalorder %s22, 0
        %s931 = scalar_select %p930, %s22, 0
        %s932 = sadd.s32 %s931, %s929
        %s933 = smul.addr %s932, 4
        %s934 = scalar_lea.vmem %s3, %s933
      $region48: #{exclusion_loss.3} parent=39 // pred_fallthru
        _
    $region40: #{exclusion_loss.3} parent=5 // pred_fallthru
      _
  $region6: #{exclusion_loss.3} parent=0 // loop_footer
    %s14 = sadd.s32 1, %s10
  $region7: #{exclusion_loss.3} parent=0 // loop_footer_branch
    %9 = sbr.rel target = $region3
  $region8: #{exclusion_loss.3} parent=0 // loop_exit
    _

</llo_original>
